<compile_context>
chip_gen: v6e
topology: v6e:2x2x1
jax: 0.10.0
libtpu: 0.0.40
codegen_flags: <defaults>
</compile_context>

<pallas_src>
import functools

import jax
import jax.numpy as jnp
import numpy as np
from jax.experimental import pallas as pl
from jax.experimental.pallas import tpu as pltpu


def model16_kernel(seq_ref, mask_ref, w_ih_ref, w_hh_ref, b_gi_ref, b_hn_ref,
                   w_out_ref, b_out_ref, out_ref, gi_sc):
    T = mask_ref.shape[0]
    Bp = mask_ref.shape[1]
    H = mask_ref.shape[2]

    # ---- Hoisted input projection: one matmul per gate over ALL timesteps ----
    # (no recurrence dependence -> keep it off the sequential critical path).
    x2d = seq_ref[...]                                           # (T*Bp, E)
    gi_sc[0] = jnp.dot(x2d, w_ih_ref[0],
                       preferred_element_type=jnp.float32) + b_gi_ref[0]
    gi_sc[1] = jnp.dot(x2d, w_ih_ref[1],
                       preferred_element_type=jnp.float32) + b_gi_ref[1]
    gi_sc[2] = jnp.dot(x2d, w_ih_ref[2],
                       preferred_element_type=jnp.float32) + b_gi_ref[2]

    # ---- Loop-invariant loads, hoisted out of the recurrence ----
    w_hr = w_hh_ref[0]                                           # (H, H)
    w_hz = w_hh_ref[1]
    w_hn = w_hh_ref[2]
    b_hn = b_hn_ref[...]                                         # (1, H)

    # ---- Sequential GRU recurrence, fully unrolled (T small & static) ----
    h = jnp.zeros((Bp, H), jnp.float32)
    for t in range(T):
        lo = t * Bp                                              # sublane-aligned (Bp % 8 == 0)
        gi_r = gi_sc[0, lo:lo + Bp, :]                           # (Bp, H), bias-folded
        gi_z = gi_sc[1, lo:lo + Bp, :]
        gi_n = gi_sc[2, lo:lo + Bp, :]
        gh_r = jnp.dot(h, w_hr, preferred_element_type=jnp.float32)
        gh_z = jnp.dot(h, w_hz, preferred_element_type=jnp.float32)
        gh_n = jnp.dot(h, w_hn, preferred_element_type=jnp.float32) + b_hn
        r = jax.nn.sigmoid(gi_r + gh_r)
        z = jax.nn.sigmoid(gi_z + gh_z)
        n = jnp.tanh(gi_n + r * gh_n)
        h_new = n + z * (h - n)                                  # (1 - z) * n + z * h
        # Freeze h past each sequence's length (pack_padded_sequence semantics).
        h = jnp.where(mask_ref[t] == 1.0, h_new, h)

    # ---- out = log_softmax(h @ W_out^T + b_out) ----
    logits = jnp.dot(h, w_out_ref[...],
                     preferred_element_type=jnp.float32) + b_out_ref[...]
    m = jnp.max(logits, axis=-1, keepdims=True)
    s = logits - m
    out_ref[...] = s - jnp.log(jnp.sum(jnp.exp(s), axis=-1, keepdims=True))


@jax.jit
def model16_forward(seq, lengths, params):
    T, B, E = seq.shape
    H = params["w_hh"].shape[1]
    n_out = params["w_out"].shape[0]
    Bp = ((B + 7) // 8) * 8                 # pad batch to a full sublane tile

    seq = seq.astype(jnp.float32)
    lengths = lengths.astype(jnp.int32)

    # Pad batch; padded rows get length 0 -> their hidden stays 0 and is sliced off.
    seq_p = jnp.pad(seq, ((0, 0), (0, Bp - B), (0, 0)))
    len_p = jnp.pad(lengths, (0, Bp - B))

    # Lane/sublane-dense sequence layout for the hoisted projection.
    seq2d = seq_p.reshape(T * Bp, E)

    # Precomputed validity mask (lengths > t), broadcast once outside the kernel.
    mask = (jnp.arange(T, dtype=jnp.int32)[:, None] < len_p[None, :]).astype(jnp.float32)
    mask = jnp.broadcast_to(mask[:, :, None], (T, Bp, H))

    # PyTorch GRU weights: (3H, E)/(3H, H), gate order [r | z | n].
    w_ih = params["w_ih"].astype(jnp.float32)
    w_hh = params["w_hh"].astype(jnp.float32)
    b_ih = params["b_ih"].astype(jnp.float32)
    b_hh = params["b_hh"].astype(jnp.float32)

    w_ih_s = jnp.transpose(w_ih.reshape(3, H, E), (0, 2, 1))     # (3, E, H)
    w_hh_s = jnp.transpose(w_hh.reshape(3, H, H), (0, 2, 1))     # (3, H, H)
    b_ih3 = b_ih.reshape(3, 1, H)
    b_hh3 = b_hh.reshape(3, 1, H)
    # Fold biases: r/z gates get b_ih+b_hh up front; n gate gets only b_ih up
    # front (its hidden bias b_hn is multiplied by r inside the loop).
    b_gi = jnp.concatenate([b_ih3[0:2] + b_hh3[0:2], b_ih3[2:3]], axis=0)  # (3,1,H)
    b_hn = b_hh3[2]                                                        # (1,H)

    w_out_t = params["w_out"].astype(jnp.float32).T              # (H, n_out)
    b_out = params["b_out"].astype(jnp.float32).reshape(1, n_out)

    vmem = pl.BlockSpec(memory_space=pltpu.MemorySpace.VMEM)
    inputs = (seq2d, mask, w_ih_s, w_hh_s, b_gi, b_hn, w_out_t, b_out)
    out_p = pl.pallas_call(
        model16_kernel,
        out_shape=jax.ShapeDtypeStruct((Bp, n_out), jnp.float32),
        in_specs=[vmem] * len(inputs),
        out_specs=vmem,
        scratch_shapes=[pltpu.VMEM((3, T * Bp, H), jnp.float32)],
    )(*inputs)
    return out_p[:B]


def model16_reference(seq, lengths, params):
    """Pure-JAX transcription of the PyTorch forward (train=False)."""
    T, B, E = seq.shape
    H = params["w_hh"].shape[1]
    h = jnp.zeros((B, H), jnp.float32)
    for t in range(T):
        x_t = seq[t].astype(jnp.float32)
        gi = x_t @ params["w_ih"].T + params["b_ih"]
        gh = h @ params["w_hh"].T + params["b_hh"]
        r = jax.nn.sigmoid(gi[:, 0:H] + gh[:, 0:H])
        z = jax.nn.sigmoid(gi[:, H:2 * H] + gh[:, H:2 * H])
        n = jnp.tanh(gi[:, 2 * H:3 * H] + r * gh[:, 2 * H:3 * H])
        h_new = (1.0 - z) * n + z * h
        valid = (lengths > t).reshape(B, 1)
        h = jnp.where(valid, h_new, h)                 # packed-sequence freeze
    logits = h @ params["w_out"].T + params["b_out"]
    return jax.nn.log_softmax(logits, axis=-1)


if __name__ == "__main__":
    # Small shapes consistent with the module: embedding_dim, n_hidden, n_out.
    E, H, n_out = 16, 32, 8
    T, B = 12, 4

    key = jax.random.PRNGKey(0)
    ks = jax.random.split(key, 8)

    def init(k, shape, scale=0.1):
        return (scale * jax.random.normal(k, shape)).astype(jnp.float32)

    params = {
        "w_ih": init(ks[0], (3 * H, E)),
        "b_ih": init(ks[1], (3 * H,)),
        "w_hh": init(ks[2], (3 * H, H)),
        "b_hh": init(ks[3], (3 * H,)),
        "w_out": init(ks[4], (n_out, H)),
        "b_out": init(ks[5], (n_out,)),
    }

    seq = jax.random.normal(ks[6], (T, B, E), dtype=jnp.float32)
    lengths = jnp.array([12, 10, 7, 3], dtype=jnp.int32)   # sorted desc, max == T

    out = model16_forward(seq, lengths, params)
    out = jax.block_until_ready(out)

    ref = model16_reference(seq, lengths, params)
    np.testing.assert_allclose(np.asarray(out), np.asarray(ref),
                               atol=5e-5, rtol=5e-5)
    assert out.shape == (B, n_out)

    print("KERNEL_OK")
</pallas_src>

<mosaic_0001>
module attributes {stable_mosaic.version = 11 : i64} {
  func.func @model16_kernel(%arg0: memref<96x16xf32, #tpu.memory_space<vmem>>, %arg1: memref<12x8x32xf32, #tpu.memory_space<vmem>>, %arg2: memref<3x16x32xf32, #tpu.memory_space<vmem>>, %arg3: memref<3x32x32xf32, #tpu.memory_space<vmem>>, %arg4: memref<3x1x32xf32, #tpu.memory_space<vmem>>, %arg5: memref<1x32xf32, #tpu.memory_space<vmem>>, %arg6: memref<32x8xf32, #tpu.memory_space<vmem>>, %arg7: memref<1x8xf32, #tpu.memory_space<vmem>>, %arg8: memref<8x8xf32, #tpu.memory_space<vmem>>, %arg9: memref<3x96x32xf32, #tpu.memory_space<vmem>>) attributes {dimension_semantics = [], scalar_prefetch = 0 : i64, scratch_operands = 1 : i64, tpu.core_type = #tpu.core_type<tc>} {
    %c0 = arith.constant 0 : index
    %c0_0 = arith.constant 0 : index
    %0 = vector.load %arg0[%c0, %c0_0] : memref<96x16xf32, #tpu.memory_space<vmem>>, vector<96x16xf32>
    %c0_1 = arith.constant 0 : index
    %c0_2 = arith.constant 0 : index
    %c0_3 = arith.constant 0 : index
    %1 = vector.load %arg2[%c0_1, %c0_2, %c0_3] : memref<3x16x32xf32, #tpu.memory_space<vmem>>, vector<1x16x32xf32>
    %2 = vector.shape_cast %1 : vector<1x16x32xf32> to vector<16x32xf32>
    %cst = arith.constant dense<0.000000e+00> : vector<96x32xf32>
    %3 = tpu.matmul %0, %2, %cst {dimension_numbers = #tpu.dot_dimension_numbers<[1], [0], [0], [1], [0, 0, 1, 1], [], []>} : vector<96x16xf32>, vector<16x32xf32>, vector<96x32xf32> -> vector<96x32xf32>
    %c0_4 = arith.constant 0 : index
    %c0_5 = arith.constant 0 : index
    %c0_6 = arith.constant 0 : index
    %4 = vector.load %arg4[%c0_4, %c0_5, %c0_6] : memref<3x1x32xf32, #tpu.memory_space<vmem>>, vector<1x1x32xf32>
    %5 = vector.shape_cast %4 : vector<1x1x32xf32> to vector<1x32xf32>
    %6 = vector.broadcast %5 : vector<1x32xf32> to vector<96x32xf32>
    %7 = arith.addf %3, %6 : vector<96x32xf32>
    %c0_7 = arith.constant 0 : index
    %c0_8 = arith.constant 0 : index
    %c0_9 = arith.constant 0 : index
    %8 = vector.load %arg9[%c0_7, %c0_8, %c0_9] : memref<3x96x32xf32, #tpu.memory_space<vmem>>, vector<1x96x32xf32>
    %9 = vector.shape_cast %8 : vector<1x96x32xf32> to vector<96x32xf32>
    %10 = vector.shape_cast %7 : vector<96x32xf32> to vector<1x96x32xf32>
    tpu.vector_store %arg9[%c0_7, %c0_8, %c0_9], %10 {strides = array<i32>} : memref<3x96x32xf32, #tpu.memory_space<vmem>>, vector<1x96x32xf32>,
    %c1 = arith.constant 1 : index
    %c0_10 = arith.constant 0 : index
    %c0_11 = arith.constant 0 : index
    %11 = vector.load %arg2[%c1, %c0_10, %c0_11] : memref<3x16x32xf32, #tpu.memory_space<vmem>>, vector<1x16x32xf32>
    %12 = vector.shape_cast %11 : vector<1x16x32xf32> to vector<16x32xf32>
    %cst_12 = arith.constant dense<0.000000e+00> : vector<96x32xf32>
    %13 = tpu.matmul %0, %12, %cst_12 {dimension_numbers = #tpu.dot_dimension_numbers<[1], [0], [0], [1], [0, 0, 1, 1], [], []>} : vector<96x16xf32>, vector<16x32xf32>, vector<96x32xf32> -> vector<96x32xf32>
    %c1_13 = arith.constant 1 : index
    %c0_14 = arith.constant 0 : index
    %c0_15 = arith.constant 0 : index
    %14 = vector.load %arg4[%c1_13, %c0_14, %c0_15] : memref<3x1x32xf32, #tpu.memory_space<vmem>>, vector<1x1x32xf32>
    %15 = vector.shape_cast %14 : vector<1x1x32xf32> to vector<1x32xf32>
    %16 = vector.broadcast %15 : vector<1x32xf32> to vector<96x32xf32>
    %17 = arith.addf %13, %16 : vector<96x32xf32>
    %c1_16 = arith.constant 1 : index
    %c0_17 = arith.constant 0 : index
    %c0_18 = arith.constant 0 : index
    %18 = vector.load %arg9[%c1_16, %c0_17, %c0_18] : memref<3x96x32xf32, #tpu.memory_space<vmem>>, vector<1x96x32xf32>
    %19 = vector.shape_cast %18 : vector<1x96x32xf32> to vector<96x32xf32>
    %20 = vector.shape_cast %17 : vector<96x32xf32> to vector<1x96x32xf32>
    tpu.vector_store %arg9[%c1_16, %c0_17, %c0_18], %20 {strides = array<i32>} : memref<3x96x32xf32, #tpu.memory_space<vmem>>, vector<1x96x32xf32>,
    %c2 = arith.constant 2 : index
    %c0_19 = arith.constant 0 : index
    %c0_20 = arith.constant 0 : index
    %21 = vector.load %arg2[%c2, %c0_19, %c0_20] : memref<3x16x32xf32, #tpu.memory_space<vmem>>, vector<1x16x32xf32>
    %22 = vector.shape_cast %21 : vector<1x16x32xf32> to vector<16x32xf32>
    %cst_21 = arith.constant dense<0.000000e+00> : vector<96x32xf32>
    %23 = tpu.matmul %0, %22, %cst_21 {dimension_numbers = #tpu.dot_dimension_numbers<[1], [0], [0], [1], [0, 0, 1, 1], [], []>} : vector<96x16xf32>, vector<16x32xf32>, vector<96x32xf32> -> vector<96x32xf32>
    %c2_22 = arith.constant 2 : index
    %c0_23 = arith.constant 0 : index
    %c0_24 = arith.constant 0 : index
    %24 = vector.load %arg4[%c2_22, %c0_23, %c0_24] : memref<3x1x32xf32, #tpu.memory_space<vmem>>, vector<1x1x32xf32>
    %25 = vector.shape_cast %24 : vector<1x1x32xf32> to vector<1x32xf32>
    %26 = vector.broadcast %25 : vector<1x32xf32> to vector<96x32xf32>
    %27 = arith.addf %23, %26 : vector<96x32xf32>
    %c2_25 = arith.constant 2 : index
    %c0_26 = arith.constant 0 : index
    %c0_27 = arith.constant 0 : index
    %28 = vector.load %arg9[%c2_25, %c0_26, %c0_27] : memref<3x96x32xf32, #tpu.memory_space<vmem>>, vector<1x96x32xf32>
    %29 = vector.shape_cast %28 : vector<1x96x32xf32> to vector<96x32xf32>
    %30 = vector.shape_cast %27 : vector<96x32xf32> to vector<1x96x32xf32>
    tpu.vector_store %arg9[%c2_25, %c0_26, %c0_27], %30 {strides = array<i32>} : memref<3x96x32xf32, #tpu.memory_space<vmem>>, vector<1x96x32xf32>,
    %c0_28 = arith.constant 0 : index
    %c0_29 = arith.constant 0 : index
    %c0_30 = arith.constant 0 : index
    %31 = vector.load %arg3[%c0_28, %c0_29, %c0_30] : memref<3x32x32xf32, #tpu.memory_space<vmem>>, vector<1x32x32xf32>
    %32 = vector.shape_cast %31 : vector<1x32x32xf32> to vector<32x32xf32>
    %c1_31 = arith.constant 1 : index
    %c0_32 = arith.constant 0 : index
    %c0_33 = arith.constant 0 : index
    %33 = vector.load %arg3[%c1_31, %c0_32, %c0_33] : memref<3x32x32xf32, #tpu.memory_space<vmem>>, vector<1x32x32xf32>
    %34 = vector.shape_cast %33 : vector<1x32x32xf32> to vector<32x32xf32>
    %c2_34 = arith.constant 2 : index
    %c0_35 = arith.constant 0 : index
    %c0_36 = arith.constant 0 : index
    %35 = vector.load %arg3[%c2_34, %c0_35, %c0_36] : memref<3x32x32xf32, #tpu.memory_space<vmem>>, vector<1x32x32xf32>
    %36 = vector.shape_cast %35 : vector<1x32x32xf32> to vector<32x32xf32>
    %c0_37 = arith.constant 0 : index
    %c0_38 = arith.constant 0 : index
    %37 = vector.load %arg5[%c0_37, %c0_38] : memref<1x32xf32, #tpu.memory_space<vmem>>, vector<1x32xf32>
    %cst_39 = arith.constant 0.000000e+00 : f32
    %38 = vector.broadcast %cst_39 : f32 to vector<8x32xf32>
    %c0_40 = arith.constant 0 : index
    %c0_41 = arith.constant 0 : index
    %c0_42 = arith.constant 0 : index
    %39 = vector.load %arg9[%c0_40, %c0_41, %c0_42] : memref<3x96x32xf32, #tpu.memory_space<vmem>>, vector<1x8x32xf32>
    %40 = vector.shape_cast %39 : vector<1x8x32xf32> to vector<8x32xf32>
    %c1_43 = arith.constant 1 : index
    %c0_44 = arith.constant 0 : index
    %c0_45 = arith.constant 0 : index
    %41 = vector.load %arg9[%c1_43, %c0_44, %c0_45] : memref<3x96x32xf32, #tpu.memory_space<vmem>>, vector<1x8x32xf32>
    %42 = vector.shape_cast %41 : vector<1x8x32xf32> to vector<8x32xf32>
    %c2_46 = arith.constant 2 : index
    %c0_47 = arith.constant 0 : index
    %c0_48 = arith.constant 0 : index
    %43 = vector.load %arg9[%c2_46, %c0_47, %c0_48] : memref<3x96x32xf32, #tpu.memory_space<vmem>>, vector<1x8x32xf32>
    %44 = vector.shape_cast %43 : vector<1x8x32xf32> to vector<8x32xf32>
    %cst_49 = arith.constant dense<0.000000e+00> : vector<8x32xf32>
    %45 = tpu.matmul %38, %32, %cst_49 {dimension_numbers = #tpu.dot_dimension_numbers<[1], [0], [0], [1], [0, 0, 1, 1], [], []>} : vector<8x32xf32>, vector<32x32xf32>, vector<8x32xf32> -> vector<8x32xf32>
    %cst_50 = arith.constant dense<0.000000e+00> : vector<8x32xf32>
    %46 = tpu.matmul %38, %34, %cst_50 {dimension_numbers = #tpu.dot_dimension_numbers<[1], [0], [0], [1], [0, 0, 1, 1], [], []>} : vector<8x32xf32>, vector<32x32xf32>, vector<8x32xf32> -> vector<8x32xf32>
    %cst_51 = arith.constant dense<0.000000e+00> : vector<8x32xf32>
    %47 = tpu.matmul %38, %36, %cst_51 {dimension_numbers = #tpu.dot_dimension_numbers<[1], [0], [0], [1], [0, 0, 1, 1], [], []>} : vector<8x32xf32>, vector<32x32xf32>, vector<8x32xf32> -> vector<8x32xf32>
    %48 = vector.broadcast %37 : vector<1x32xf32> to vector<8x32xf32>
    %49 = arith.addf %47, %48 : vector<8x32xf32>
    %50 = arith.addf %40, %45 : vector<8x32xf32>
    %51 = arith.negf %50 : vector<8x32xf32>
    %52 = math.exp %51 : vector<8x32xf32>
    %cst_52 = arith.constant 1.000000e+00 : f32
    %53 = vector.broadcast %cst_52 : f32 to vector<8x32xf32>
    %54 = arith.addf %53, %52 : vector<8x32xf32>
    %55 = arith.divf %53, %54 : vector<8x32xf32>
    %56 = arith.addf %42, %46 : vector<8x32xf32>
    %57 = arith.negf %56 : vector<8x32xf32>
    %58 = math.exp %57 : vector<8x32xf32>
    %cst_53 = arith.constant 1.000000e+00 : f32
    %59 = vector.broadcast %cst_53 : f32 to vector<8x32xf32>
    %60 = arith.addf %59, %58 : vector<8x32xf32>
    %61 = arith.divf %59, %60 : vector<8x32xf32>
    %62 = arith.mulf %55, %49 : vector<8x32xf32>
    %63 = arith.addf %44, %62 : vector<8x32xf32>
    %64 = math.tanh %63 : vector<8x32xf32>
    %65 = arith.subf %38, %64 : vector<8x32xf32>
    %66 = arith.mulf %61, %65 : vector<8x32xf32>
    %67 = arith.addf %64, %66 : vector<8x32xf32>
    %c0_54 = arith.constant 0 : index
    %c0_55 = arith.constant 0 : index
    %c0_56 = arith.constant 0 : index
    %68 = vector.load %arg1[%c0_54, %c0_55, %c0_56] : memref<12x8x32xf32, #tpu.memory_space<vmem>>, vector<1x8x32xf32>
    %69 = vector.shape_cast %68 : vector<1x8x32xf32> to vector<8x32xf32>
    %cst_57 = arith.constant 1.000000e+00 : f32
    %70 = vector.broadcast %cst_57 : f32 to vector<8x32xf32>
    %71 = arith.cmpf oeq, %69, %70 : vector<8x32xf32>
    %72 = arith.select %71, %67, %38 : vector<8x32xi1>, vector<8x32xf32>
    %c0_58 = arith.constant 0 : index
    %c8 = arith.constant 8 : index
    %c0_59 = arith.constant 0 : index
    %73 = vector.load %arg9[%c0_58, %c8, %c0_59] : memref<3x96x32xf32, #tpu.memory_space<vmem>>, vector<1x8x32xf32>
    %74 = vector.shape_cast %73 : vector<1x8x32xf32> to vector<8x32xf32>
    %c1_60 = arith.constant 1 : index
    %c8_61 = arith.constant 8 : index
    %c0_62 = arith.constant 0 : index
    %75 = vector.load %arg9[%c1_60, %c8_61, %c0_62] : memref<3x96x32xf32, #tpu.memory_space<vmem>>, vector<1x8x32xf32>
    %76 = vector.shape_cast %75 : vector<1x8x32xf32> to vector<8x32xf32>
    %c2_63 = arith.constant 2 : index
    %c8_64 = arith.constant 8 : index
    %c0_65 = arith.constant 0 : index
    %77 = vector.load %arg9[%c2_63, %c8_64, %c0_65] : memref<3x96x32xf32, #tpu.memory_space<vmem>>, vector<1x8x32xf32>
    %78 = vector.shape_cast %77 : vector<1x8x32xf32> to vector<8x32xf32>
    %cst_66 = arith.constant dense<0.000000e+00> : vector<8x32xf32>
    %79 = tpu.matmul %72, %32, %cst_66 {dimension_numbers = #tpu.dot_dimension_numbers<[1], [0], [0], [1], [0, 0, 1, 1], [], []>} : vector<8x32xf32>, vector<32x32xf32>, vector<8x32xf32> -> vector<8x32xf32>
    %cst_67 = arith.constant dense<0.000000e+00> : vector<8x32xf32>
    %80 = tpu.matmul %72, %34, %cst_67 {dimension_numbers = #tpu.dot_dimension_numbers<[1], [0], [0], [1], [0, 0, 1, 1], [], []>} : vector<8x32xf32>, vector<32x32xf32>, vector<8x32xf32> -> vector<8x32xf32>
    %cst_68 = arith.constant dense<0.000000e+00> : vector<8x32xf32>
    %81 = tpu.matmul %72, %36, %cst_68 {dimension_numbers = #tpu.dot_dimension_numbers<[1], [0], [0], [1], [0, 0, 1, 1], [], []>} : vector<8x32xf32>, vector<32x32xf32>, vector<8x32xf32> -> vector<8x32xf32>
    %82 = vector.broadcast %37 : vector<1x32xf32> to vector<8x32xf32>
    %83 = arith.addf %81, %82 : vector<8x32xf32>
    %84 = arith.addf %74, %79 : vector<8x32xf32>
    %85 = arith.negf %84 : vector<8x32xf32>
    %86 = math.exp %85 : vector<8x32xf32>
    %cst_69 = arith.constant 1.000000e+00 : f32
    %87 = vector.broadcast %cst_69 : f32 to vector<8x32xf32>
    %88 = arith.addf %87, %86 : vector<8x32xf32>
    %89 = arith.divf %87, %88 : vector<8x32xf32>
    %90 = arith.addf %76, %80 : vector<8x32xf32>
    %91 = arith.negf %90 : vector<8x32xf32>
    %92 = math.exp %91 : vector<8x32xf32>
    %cst_70 = arith.constant 1.000000e+00 : f32
    %93 = vector.broadcast %cst_70 : f32 to vector<8x32xf32>
    %94 = arith.addf %93, %92 : vector<8x32xf32>
    %95 = arith.divf %93, %94 : vector<8x32xf32>
    %96 = arith.mulf %89, %83 : vector<8x32xf32>
    %97 = arith.addf %78, %96 : vector<8x32xf32>
    %98 = math.tanh %97 : vector<8x32xf32>
    %99 = arith.subf %72, %98 : vector<8x32xf32>
    %100 = arith.mulf %95, %99 : vector<8x32xf32>
    %101 = arith.addf %98, %100 : vector<8x32xf32>
    %c1_71 = arith.constant 1 : index
    %c0_72 = arith.constant 0 : index
    %c0_73 = arith.constant 0 : index
    %102 = vector.load %arg1[%c1_71, %c0_72, %c0_73] : memref<12x8x32xf32, #tpu.memory_space<vmem>>, vector<1x8x32xf32>
    %103 = vector.shape_cast %102 : vector<1x8x32xf32> to vector<8x32xf32>
    %cst_74 = arith.constant 1.000000e+00 : f32
    %104 = vector.broadcast %cst_74 : f32 to vector<8x32xf32>
    %105 = arith.cmpf oeq, %103, %104 : vector<8x32xf32>
    %106 = arith.select %105, %101, %72 : vector<8x32xi1>, vector<8x32xf32>
    %c0_75 = arith.constant 0 : index
    %c16 = arith.constant 16 : index
    %c0_76 = arith.constant 0 : index
    %107 = vector.load %arg9[%c0_75, %c16, %c0_76] : memref<3x96x32xf32, #tpu.memory_space<vmem>>, vector<1x8x32xf32>
    %108 = vector.shape_cast %107 : vector<1x8x32xf32> to vector<8x32xf32>
    %c1_77 = arith.constant 1 : index
    %c16_78 = arith.constant 16 : index
    %c0_79 = arith.constant 0 : index
    %109 = vector.load %arg9[%c1_77, %c16_78, %c0_79] : memref<3x96x32xf32, #tpu.memory_space<vmem>>, vector<1x8x32xf32>
    %110 = vector.shape_cast %109 : vector<1x8x32xf32> to vector<8x32xf32>
    %c2_80 = arith.constant 2 : index
    %c16_81 = arith.constant 16 : index
    %c0_82 = arith.constant 0 : index
    %111 = vector.load %arg9[%c2_80, %c16_81, %c0_82] : memref<3x96x32xf32, #tpu.memory_space<vmem>>, vector<1x8x32xf32>
    %112 = vector.shape_cast %111 : vector<1x8x32xf32> to vector<8x32xf32>
    %cst_83 = arith.constant dense<0.000000e+00> : vector<8x32xf32>
    %113 = tpu.matmul %106, %32, %cst_83 {dimension_numbers = #tpu.dot_dimension_numbers<[1], [0], [0], [1], [0, 0, 1, 1], [], []>} : vector<8x32xf32>, vector<32x32xf32>, vector<8x32xf32> -> vector<8x32xf32>
    %cst_84 = arith.constant dense<0.000000e+00> : vector<8x32xf32>
    %114 = tpu.matmul %106, %34, %cst_84 {dimension_numbers = #tpu.dot_dimension_numbers<[1], [0], [0], [1], [0, 0, 1, 1], [], []>} : vector<8x32xf32>, vector<32x32xf32>, vector<8x32xf32> -> vector<8x32xf32>
    %cst_85 = arith.constant dense<0.000000e+00> : vector<8x32xf32>
    %115 = tpu.matmul %106, %36, %cst_85 {dimension_numbers = #tpu.dot_dimension_numbers<[1], [0], [0], [1], [0, 0, 1, 1], [], []>} : vector<8x32xf32>, vector<32x32xf32>, vector<8x32xf32> -> vector<8x32xf32>
    %116 = vector.broadcast %37 : vector<1x32xf32> to vector<8x32xf32>
    %117 = arith.addf %115, %116 : vector<8x32xf32>
    %118 = arith.addf %108, %113 : vector<8x32xf32>
    %119 = arith.negf %118 : vector<8x32xf32>
    %120 = math.exp %119 : vector<8x32xf32>
    %cst_86 = arith.constant 1.000000e+00 : f32
    %121 = vector.broadcast %cst_86 : f32 to vector<8x32xf32>
    %122 = arith.addf %121, %120 : vector<8x32xf32>
    %123 = arith.divf %121, %122 : vector<8x32xf32>
    %124 = arith.addf %110, %114 : vector<8x32xf32>
    %125 = arith.negf %124 : vector<8x32xf32>
    %126 = math.exp %125 : vector<8x32xf32>
    %cst_87 = arith.constant 1.000000e+00 : f32
    %127 = vector.broadcast %cst_87 : f32 to vector<8x32xf32>
    %128 = arith.addf %127, %126 : vector<8x32xf32>
    %129 = arith.divf %127, %128 : vector<8x32xf32>
    %130 = arith.mulf %123, %117 : vector<8x32xf32>
    %131 = arith.addf %112, %130 : vector<8x32xf32>
    %132 = math.tanh %131 : vector<8x32xf32>
    %133 = arith.subf %106, %132 : vector<8x32xf32>
    %134 = arith.mulf %129, %133 : vector<8x32xf32>
    %135 = arith.addf %132, %134 : vector<8x32xf32>
    %c2_88 = arith.constant 2 : index
    %c0_89 = arith.constant 0 : index
    %c0_90 = arith.constant 0 : index
    %136 = vector.load %arg1[%c2_88, %c0_89, %c0_90] : memref<12x8x32xf32, #tpu.memory_space<vmem>>, vector<1x8x32xf32>
    %137 = vector.shape_cast %136 : vector<1x8x32xf32> to vector<8x32xf32>
    %cst_91 = arith.constant 1.000000e+00 : f32
    %138 = vector.broadcast %cst_91 : f32 to vector<8x32xf32>
    %139 = arith.cmpf oeq, %137, %138 : vector<8x32xf32>
    %140 = arith.select %139, %135, %106 : vector<8x32xi1>, vector<8x32xf32>
    %c0_92 = arith.constant 0 : index
    %c24 = arith.constant 24 : index
    %c0_93 = arith.constant 0 : index
    %141 = vector.load %arg9[%c0_92, %c24, %c0_93] : memref<3x96x32xf32, #tpu.memory_space<vmem>>, vector<1x8x32xf32>
    %142 = vector.shape_cast %141 : vector<1x8x32xf32> to vector<8x32xf32>
    %c1_94 = arith.constant 1 : index
    %c24_95 = arith.constant 24 : index
    %c0_96 = arith.constant 0 : index
    %143 = vector.load %arg9[%c1_94, %c24_95, %c0_96] : memref<3x96x32xf32, #tpu.memory_space<vmem>>, vector<1x8x32xf32>
    %144 = vector.shape_cast %143 : vector<1x8x32xf32> to vector<8x32xf32>
    %c2_97 = arith.constant 2 : index
    %c24_98 = arith.constant 24 : index
    %c0_99 = arith.constant 0 : index
    %145 = vector.load %arg9[%c2_97, %c24_98, %c0_99] : memref<3x96x32xf32, #tpu.memory_space<vmem>>, vector<1x8x32xf32>
    %146 = vector.shape_cast %145 : vector<1x8x32xf32> to vector<8x32xf32>
    %cst_100 = arith.constant dense<0.000000e+00> : vector<8x32xf32>
    %147 = tpu.matmul %140, %32, %cst_100 {dimension_numbers = #tpu.dot_dimension_numbers<[1], [0], [0], [1], [0, 0, 1, 1], [], []>} : vector<8x32xf32>, vector<32x32xf32>, vector<8x32xf32> -> vector<8x32xf32>
    %cst_101 = arith.constant dense<0.000000e+00> : vector<8x32xf32>
    %148 = tpu.matmul %140, %34, %cst_101 {dimension_numbers = #tpu.dot_dimension_numbers<[1], [0], [0], [1], [0, 0, 1, 1], [], []>} : vector<8x32xf32>, vector<32x32xf32>, vector<8x32xf32> -> vector<8x32xf32>
    %cst_102 = arith.constant dense<0.000000e+00> : vector<8x32xf32>
    %149 = tpu.matmul %140, %36, %cst_102 {dimension_numbers = #tpu.dot_dimension_numbers<[1], [0], [0], [1], [0, 0, 1, 1], [], []>} : vector<8x32xf32>, vector<32x32xf32>, vector<8x32xf32> -> vector<8x32xf32>
    %150 = vector.broadcast %37 : vector<1x32xf32> to vector<8x32xf32>
    %151 = arith.addf %149, %150 : vector<8x32xf32>
    %152 = arith.addf %142, %147 : vector<8x32xf32>
    %153 = arith.negf %152 : vector<8x32xf32>
    %154 = math.exp %153 : vector<8x32xf32>
    %cst_103 = arith.constant 1.000000e+00 : f32
    %155 = vector.broadcast %cst_103 : f32 to vector<8x32xf32>
    %156 = arith.addf %155, %154 : vector<8x32xf32>
    %157 = arith.divf %155, %156 : vector<8x32xf32>
    %158 = arith.addf %144, %148 : vector<8x32xf32>
    %159 = arith.negf %158 : vector<8x32xf32>
    %160 = math.exp %159 : vector<8x32xf32>
    %cst_104 = arith.constant 1.000000e+00 : f32
    %161 = vector.broadcast %cst_104 : f32 to vector<8x32xf32>
    %162 = arith.addf %161, %160 : vector<8x32xf32>
    %163 = arith.divf %161, %162 : vector<8x32xf32>
    %164 = arith.mulf %157, %151 : vector<8x32xf32>
    %165 = arith.addf %146, %164 : vector<8x32xf32>
    %166 = math.tanh %165 : vector<8x32xf32>
    %167 = arith.subf %140, %166 : vector<8x32xf32>
    %168 = arith.mulf %163, %167 : vector<8x32xf32>
    %169 = arith.addf %166, %168 : vector<8x32xf32>
    %c3 = arith.constant 3 : index
    %c0_105 = arith.constant 0 : index
    %c0_106 = arith.constant 0 : index
    %170 = vector.load %arg1[%c3, %c0_105, %c0_106] : memref<12x8x32xf32, #tpu.memory_space<vmem>>, vector<1x8x32xf32>
    %171 = vector.shape_cast %170 : vector<1x8x32xf32> to vector<8x32xf32>
    %cst_107 = arith.constant 1.000000e+00 : f32
    %172 = vector.broadcast %cst_107 : f32 to vector<8x32xf32>
    %173 = arith.cmpf oeq, %171, %172 : vector<8x32xf32>
    %174 = arith.select %173, %169, %140 : vector<8x32xi1>, vector<8x32xf32>
    %c0_108 = arith.constant 0 : index
    %c32 = arith.constant 32 : index
    %c0_109 = arith.constant 0 : index
    %175 = vector.load %arg9[%c0_108, %c32, %c0_109] : memref<3x96x32xf32, #tpu.memory_space<vmem>>, vector<1x8x32xf32>
    %176 = vector.shape_cast %175 : vector<1x8x32xf32> to vector<8x32xf32>
    %c1_110 = arith.constant 1 : index
    %c32_111 = arith.constant 32 : index
    %c0_112 = arith.constant 0 : index
    %177 = vector.load %arg9[%c1_110, %c32_111, %c0_112] : memref<3x96x32xf32, #tpu.memory_space<vmem>>, vector<1x8x32xf32>
    %178 = vector.shape_cast %177 : vector<1x8x32xf32> to vector<8x32xf32>
    %c2_113 = arith.constant 2 : index
    %c32_114 = arith.constant 32 : index
    %c0_115 = arith.constant 0 : index
    %179 = vector.load %arg9[%c2_113, %c32_114, %c0_115] : memref<3x96x32xf32, #tpu.memory_space<vmem>>, vector<1x8x32xf32>
    %180 = vector.shape_cast %179 : vector<1x8x32xf32> to vector<8x32xf32>
    %cst_116 = arith.constant dense<0.000000e+00> : vector<8x32xf32>
    %181 = tpu.matmul %174, %32, %cst_116 {dimension_numbers = #tpu.dot_dimension_numbers<[1], [0], [0], [1], [0, 0, 1, 1], [], []>} : vector<8x32xf32>, vector<32x32xf32>, vector<8x32xf32> -> vector<8x32xf32>
    %cst_117 = arith.constant dense<0.000000e+00> : vector<8x32xf32>
    %182 = tpu.matmul %174, %34, %cst_117 {dimension_numbers = #tpu.dot_dimension_numbers<[1], [0], [0], [1], [0, 0, 1, 1], [], []>} : vector<8x32xf32>, vector<32x32xf32>, vector<8x32xf32> -> vector<8x32xf32>
    %cst_118 = arith.constant dense<0.000000e+00> : vector<8x32xf32>
    %183 = tpu.matmul %174, %36, %cst_118 {dimension_numbers = #tpu.dot_dimension_numbers<[1], [0], [0], [1], [0, 0, 1, 1], [], []>} : vector<8x32xf32>, vector<32x32xf32>, vector<8x32xf32> -> vector<8x32xf32>
    %184 = vector.broadcast %37 : vector<1x32xf32> to vector<8x32xf32>
    %185 = arith.addf %183, %184 : vector<8x32xf32>
    %186 = arith.addf %176, %181 : vector<8x32xf32>
    %187 = arith.negf %186 : vector<8x32xf32>
    %188 = math.exp %187 : vector<8x32xf32>
    %cst_119 = arith.constant 1.000000e+00 : f32
    %189 = vector.broadcast %cst_119 : f32 to vector<8x32xf32>
    %190 = arith.addf %189, %188 : vector<8x32xf32>
    %191 = arith.divf %189, %190 : vector<8x32xf32>
    %192 = arith.addf %178, %182 : vector<8x32xf32>
    %193 = arith.negf %192 : vector<8x32xf32>
    %194 = math.exp %193 : vector<8x32xf32>
    %cst_120 = arith.constant 1.000000e+00 : f32
    %195 = vector.broadcast %cst_120 : f32 to vector<8x32xf32>
    %196 = arith.addf %195, %194 : vector<8x32xf32>
    %197 = arith.divf %195, %196 : vector<8x32xf32>
    %198 = arith.mulf %191, %185 : vector<8x32xf32>
    %199 = arith.addf %180, %198 : vector<8x32xf32>
    %200 = math.tanh %199 : vector<8x32xf32>
    %201 = arith.subf %174, %200 : vector<8x32xf32>
    %202 = arith.mulf %197, %201 : vector<8x32xf32>
    %203 = arith.addf %200, %202 : vector<8x32xf32>
    %c4 = arith.constant 4 : index
    %c0_121 = arith.constant 0 : index
    %c0_122 = arith.constant 0 : index
    %204 = vector.load %arg1[%c4, %c0_121, %c0_122] : memref<12x8x32xf32, #tpu.memory_space<vmem>>, vector<1x8x32xf32>
    %205 = vector.shape_cast %204 : vector<1x8x32xf32> to vector<8x32xf32>
    %cst_123 = arith.constant 1.000000e+00 : f32
    %206 = vector.broadcast %cst_123 : f32 to vector<8x32xf32>
    %207 = arith.cmpf oeq, %205, %206 : vector<8x32xf32>
    %208 = arith.select %207, %203, %174 : vector<8x32xi1>, vector<8x32xf32>
    %c0_124 = arith.constant 0 : index
    %c40 = arith.constant 40 : index
    %c0_125 = arith.constant 0 : index
    %209 = vector.load %arg9[%c0_124, %c40, %c0_125] : memref<3x96x32xf32, #tpu.memory_space<vmem>>, vector<1x8x32xf32>
    %210 = vector.shape_cast %209 : vector<1x8x32xf32> to vector<8x32xf32>
    %c1_126 = arith.constant 1 : index
    %c40_127 = arith.constant 40 : index
    %c0_128 = arith.constant 0 : index
    %211 = vector.load %arg9[%c1_126, %c40_127, %c0_128] : memref<3x96x32xf32, #tpu.memory_space<vmem>>, vector<1x8x32xf32>
    %212 = vector.shape_cast %211 : vector<1x8x32xf32> to vector<8x32xf32>
    %c2_129 = arith.constant 2 : index
    %c40_130 = arith.constant 40 : index
    %c0_131 = arith.constant 0 : index
    %213 = vector.load %arg9[%c2_129, %c40_130, %c0_131] : memref<3x96x32xf32, #tpu.memory_space<vmem>>, vector<1x8x32xf32>
    %214 = vector.shape_cast %213 : vector<1x8x32xf32> to vector<8x32xf32>
    %cst_132 = arith.constant dense<0.000000e+00> : vector<8x32xf32>
    %215 = tpu.matmul %208, %32, %cst_132 {dimension_numbers = #tpu.dot_dimension_numbers<[1], [0], [0], [1], [0, 0, 1, 1], [], []>} : vector<8x32xf32>, vector<32x32xf32>, vector<8x32xf32> -> vector<8x32xf32>
    %cst_133 = arith.constant dense<0.000000e+00> : vector<8x32xf32>
    %216 = tpu.matmul %208, %34, %cst_133 {dimension_numbers = #tpu.dot_dimension_numbers<[1], [0], [0], [1], [0, 0, 1, 1], [], []>} : vector<8x32xf32>, vector<32x32xf32>, vector<8x32xf32> -> vector<8x32xf32>
    %cst_134 = arith.constant dense<0.000000e+00> : vector<8x32xf32>
    %217 = tpu.matmul %208, %36, %cst_134 {dimension_numbers = #tpu.dot_dimension_numbers<[1], [0], [0], [1], [0, 0, 1, 1], [], []>} : vector<8x32xf32>, vector<32x32xf32>, vector<8x32xf32> -> vector<8x32xf32>
    %218 = vector.broadcast %37 : vector<1x32xf32> to vector<8x32xf32>
    %219 = arith.addf %217, %218 : vector<8x32xf32>
    %220 = arith.addf %210, %215 : vector<8x32xf32>
    %221 = arith.negf %220 : vector<8x32xf32>
    %222 = math.exp %221 : vector<8x32xf32>
    %cst_135 = arith.constant 1.000000e+00 : f32
    %223 = vector.broadcast %cst_135 : f32 to vector<8x32xf32>
    %224 = arith.addf %223, %222 : vector<8x32xf32>
    %225 = arith.divf %223, %224 : vector<8x32xf32>
    %226 = arith.addf %212, %216 : vector<8x32xf32>
    %227 = arith.negf %226 : vector<8x32xf32>
    %228 = math.exp %227 : vector<8x32xf32>
    %cst_136 = arith.constant 1.000000e+00 : f32
    %229 = vector.broadcast %cst_136 : f32 to vector<8x32xf32>
    %230 = arith.addf %229, %228 : vector<8x32xf32>
    %231 = arith.divf %229, %230 : vector<8x32xf32>
    %232 = arith.mulf %225, %219 : vector<8x32xf32>
    %233 = arith.addf %214, %232 : vector<8x32xf32>
    %234 = math.tanh %233 : vector<8x32xf32>
    %235 = arith.subf %208, %234 : vector<8x32xf32>
    %236 = arith.mulf %231, %235 : vector<8x32xf32>
    %237 = arith.addf %234, %236 : vector<8x32xf32>
    %c5 = arith.constant 5 : index
    %c0_137 = arith.constant 0 : index
    %c0_138 = arith.constant 0 : index
    %238 = vector.load %arg1[%c5, %c0_137, %c0_138] : memref<12x8x32xf32, #tpu.memory_space<vmem>>, vector<1x8x32xf32>
    %239 = vector.shape_cast %238 : vector<1x8x32xf32> to vector<8x32xf32>
    %cst_139 = arith.constant 1.000000e+00 : f32
    %240 = vector.broadcast %cst_139 : f32 to vector<8x32xf32>
    %241 = arith.cmpf oeq, %239, %240 : vector<8x32xf32>
    %242 = arith.select %241, %237, %208 : vector<8x32xi1>, vector<8x32xf32>
    %c0_140 = arith.constant 0 : index
    %c48 = arith.constant 48 : index
    %c0_141 = arith.constant 0 : index
    %243 = vector.load %arg9[%c0_140, %c48, %c0_141] : memref<3x96x32xf32, #tpu.memory_space<vmem>>, vector<1x8x32xf32>
    %244 = vector.shape_cast %243 : vector<1x8x32xf32> to vector<8x32xf32>
    %c1_142 = arith.constant 1 : index
    %c48_143 = arith.constant 48 : index
    %c0_144 = arith.constant 0 : index
    %245 = vector.load %arg9[%c1_142, %c48_143, %c0_144] : memref<3x96x32xf32, #tpu.memory_space<vmem>>, vector<1x8x32xf32>
    %246 = vector.shape_cast %245 : vector<1x8x32xf32> to vector<8x32xf32>
    %c2_145 = arith.constant 2 : index
    %c48_146 = arith.constant 48 : index
    %c0_147 = arith.constant 0 : index
    %247 = vector.load %arg9[%c2_145, %c48_146, %c0_147] : memref<3x96x32xf32, #tpu.memory_space<vmem>>, vector<1x8x32xf32>
    %248 = vector.shape_cast %247 : vector<1x8x32xf32> to vector<8x32xf32>
    %cst_148 = arith.constant dense<0.000000e+00> : vector<8x32xf32>
    %249 = tpu.matmul %242, %32, %cst_148 {dimension_numbers = #tpu.dot_dimension_numbers<[1], [0], [0], [1], [0, 0, 1, 1], [], []>} : vector<8x32xf32>, vector<32x32xf32>, vector<8x32xf32> -> vector<8x32xf32>
    %cst_149 = arith.constant dense<0.000000e+00> : vector<8x32xf32>
    %250 = tpu.matmul %242, %34, %cst_149 {dimension_numbers = #tpu.dot_dimension_numbers<[1], [0], [0], [1], [0, 0, 1, 1], [], []>} : vector<8x32xf32>, vector<32x32xf32>, vector<8x32xf32> -> vector<8x32xf32>
    %cst_150 = arith.constant dense<0.000000e+00> : vector<8x32xf32>
    %251 = tpu.matmul %242, %36, %cst_150 {dimension_numbers = #tpu.dot_dimension_numbers<[1], [0], [0], [1], [0, 0, 1, 1], [], []>} : vector<8x32xf32>, vector<32x32xf32>, vector<8x32xf32> -> vector<8x32xf32>
    %252 = vector.broadcast %37 : vector<1x32xf32> to vector<8x32xf32>
    %253 = arith.addf %251, %252 : vector<8x32xf32>
    %254 = arith.addf %244, %249 : vector<8x32xf32>
    %255 = arith.negf %254 : vector<8x32xf32>
    %256 = math.exp %255 : vector<8x32xf32>
    %cst_151 = arith.constant 1.000000e+00 : f32
    %257 = vector.broadcast %cst_151 : f32 to vector<8x32xf32>
    %258 = arith.addf %257, %256 : vector<8x32xf32>
    %259 = arith.divf %257, %258 : vector<8x32xf32>
    %260 = arith.addf %246, %250 : vector<8x32xf32>
    %261 = arith.negf %260 : vector<8x32xf32>
    %262 = math.exp %261 : vector<8x32xf32>
    %cst_152 = arith.constant 1.000000e+00 : f32
    %263 = vector.broadcast %cst_152 : f32 to vector<8x32xf32>
    %264 = arith.addf %263, %262 : vector<8x32xf32>
    %265 = arith.divf %263, %264 : vector<8x32xf32>
    %266 = arith.mulf %259, %253 : vector<8x32xf32>
    %267 = arith.addf %248, %266 : vector<8x32xf32>
    %268 = math.tanh %267 : vector<8x32xf32>
    %269 = arith.subf %242, %268 : vector<8x32xf32>
    %270 = arith.mulf %265, %269 : vector<8x32xf32>
    %271 = arith.addf %268, %270 : vector<8x32xf32>
    %c6 = arith.constant 6 : index
    %c0_153 = arith.constant 0 : index
    %c0_154 = arith.constant 0 : index
    %272 = vector.load %arg1[%c6, %c0_153, %c0_154] : memref<12x8x32xf32, #tpu.memory_space<vmem>>, vector<1x8x32xf32>
    %273 = vector.shape_cast %272 : vector<1x8x32xf32> to vector<8x32xf32>
    %cst_155 = arith.constant 1.000000e+00 : f32
    %274 = vector.broadcast %cst_155 : f32 to vector<8x32xf32>
    %275 = arith.cmpf oeq, %273, %274 : vector<8x32xf32>
    %276 = arith.select %275, %271, %242 : vector<8x32xi1>, vector<8x32xf32>
    %c0_156 = arith.constant 0 : index
    %c56 = arith.constant 56 : index
    %c0_157 = arith.constant 0 : index
    %277 = vector.load %arg9[%c0_156, %c56, %c0_157] : memref<3x96x32xf32, #tpu.memory_space<vmem>>, vector<1x8x32xf32>
    %278 = vector.shape_cast %277 : vector<1x8x32xf32> to vector<8x32xf32>
    %c1_158 = arith.constant 1 : index
    %c56_159 = arith.constant 56 : index
    %c0_160 = arith.constant 0 : index
    %279 = vector.load %arg9[%c1_158, %c56_159, %c0_160] : memref<3x96x32xf32, #tpu.memory_space<vmem>>, vector<1x8x32xf32>
    %280 = vector.shape_cast %279 : vector<1x8x32xf32> to vector<8x32xf32>
    %c2_161 = arith.constant 2 : index
    %c56_162 = arith.constant 56 : index
    %c0_163 = arith.constant 0 : index
    %281 = vector.load %arg9[%c2_161, %c56_162, %c0_163] : memref<3x96x32xf32, #tpu.memory_space<vmem>>, vector<1x8x32xf32>
    %282 = vector.shape_cast %281 : vector<1x8x32xf32> to vector<8x32xf32>
    %cst_164 = arith.constant dense<0.000000e+00> : vector<8x32xf32>
    %283 = tpu.matmul %276, %32, %cst_164 {dimension_numbers = #tpu.dot_dimension_numbers<[1], [0], [0], [1], [0, 0, 1, 1], [], []>} : vector<8x32xf32>, vector<32x32xf32>, vector<8x32xf32> -> vector<8x32xf32>
    %cst_165 = arith.constant dense<0.000000e+00> : vector<8x32xf32>
    %284 = tpu.matmul %276, %34, %cst_165 {dimension_numbers = #tpu.dot_dimension_numbers<[1], [0], [0], [1], [0, 0, 1, 1], [], []>} : vector<8x32xf32>, vector<32x32xf32>, vector<8x32xf32> -> vector<8x32xf32>
    %cst_166 = arith.constant dense<0.000000e+00> : vector<8x32xf32>
    %285 = tpu.matmul %276, %36, %cst_166 {dimension_numbers = #tpu.dot_dimension_numbers<[1], [0], [0], [1], [0, 0, 1, 1], [], []>} : vector<8x32xf32>, vector<32x32xf32>, vector<8x32xf32> -> vector<8x32xf32>
    %286 = vector.broadcast %37 : vector<1x32xf32> to vector<8x32xf32>
    %287 = arith.addf %285, %286 : vector<8x32xf32>
    %288 = arith.addf %278, %283 : vector<8x32xf32>
    %289 = arith.negf %288 : vector<8x32xf32>
    %290 = math.exp %289 : vector<8x32xf32>
    %cst_167 = arith.constant 1.000000e+00 : f32
    %291 = vector.broadcast %cst_167 : f32 to vector<8x32xf32>
    %292 = arith.addf %291, %290 : vector<8x32xf32>
    %293 = arith.divf %291, %292 : vector<8x32xf32>
    %294 = arith.addf %280, %284 : vector<8x32xf32>
    %295 = arith.negf %294 : vector<8x32xf32>
    %296 = math.exp %295 : vector<8x32xf32>
    %cst_168 = arith.constant 1.000000e+00 : f32
    %297 = vector.broadcast %cst_168 : f32 to vector<8x32xf32>
    %298 = arith.addf %297, %296 : vector<8x32xf32>
    %299 = arith.divf %297, %298 : vector<8x32xf32>
    %300 = arith.mulf %293, %287 : vector<8x32xf32>
    %301 = arith.addf %282, %300 : vector<8x32xf32>
    %302 = math.tanh %301 : vector<8x32xf32>
    %303 = arith.subf %276, %302 : vector<8x32xf32>
    %304 = arith.mulf %299, %303 : vector<8x32xf32>
    %305 = arith.addf %302, %304 : vector<8x32xf32>
    %c7 = arith.constant 7 : index
    %c0_169 = arith.constant 0 : index
    %c0_170 = arith.constant 0 : index
    %306 = vector.load %arg1[%c7, %c0_169, %c0_170] : memref<12x8x32xf32, #tpu.memory_space<vmem>>, vector<1x8x32xf32>
    %307 = vector.shape_cast %306 : vector<1x8x32xf32> to vector<8x32xf32>
    %cst_171 = arith.constant 1.000000e+00 : f32
    %308 = vector.broadcast %cst_171 : f32 to vector<8x32xf32>
    %309 = arith.cmpf oeq, %307, %308 : vector<8x32xf32>
    %310 = arith.select %309, %305, %276 : vector<8x32xi1>, vector<8x32xf32>
    %c0_172 = arith.constant 0 : index
    %c64 = arith.constant 64 : index
    %c0_173 = arith.constant 0 : index
    %311 = vector.load %arg9[%c0_172, %c64, %c0_173] : memref<3x96x32xf32, #tpu.memory_space<vmem>>, vector<1x8x32xf32>
    %312 = vector.shape_cast %311 : vector<1x8x32xf32> to vector<8x32xf32>
    %c1_174 = arith.constant 1 : index
    %c64_175 = arith.constant 64 : index
    %c0_176 = arith.constant 0 : index
    %313 = vector.load %arg9[%c1_174, %c64_175, %c0_176] : memref<3x96x32xf32, #tpu.memory_space<vmem>>, vector<1x8x32xf32>
    %314 = vector.shape_cast %313 : vector<1x8x32xf32> to vector<8x32xf32>
    %c2_177 = arith.constant 2 : index
    %c64_178 = arith.constant 64 : index
    %c0_179 = arith.constant 0 : index
    %315 = vector.load %arg9[%c2_177, %c64_178, %c0_179] : memref<3x96x32xf32, #tpu.memory_space<vmem>>, vector<1x8x32xf32>
    %316 = vector.shape_cast %315 : vector<1x8x32xf32> to vector<8x32xf32>
    %cst_180 = arith.constant dense<0.000000e+00> : vector<8x32xf32>
    %317 = tpu.matmul %310, %32, %cst_180 {dimension_numbers = #tpu.dot_dimension_numbers<[1], [0], [0], [1], [0, 0, 1, 1], [], []>} : vector<8x32xf32>, vector<32x32xf32>, vector<8x32xf32> -> vector<8x32xf32>
    %cst_181 = arith.constant dense<0.000000e+00> : vector<8x32xf32>
    %318 = tpu.matmul %310, %34, %cst_181 {dimension_numbers = #tpu.dot_dimension_numbers<[1], [0], [0], [1], [0, 0, 1, 1], [], []>} : vector<8x32xf32>, vector<32x32xf32>, vector<8x32xf32> -> vector<8x32xf32>
    %cst_182 = arith.constant dense<0.000000e+00> : vector<8x32xf32>
    %319 = tpu.matmul %310, %36, %cst_182 {dimension_numbers = #tpu.dot_dimension_numbers<[1], [0], [0], [1], [0, 0, 1, 1], [], []>} : vector<8x32xf32>, vector<32x32xf32>, vector<8x32xf32> -> vector<8x32xf32>
    %320 = vector.broadcast %37 : vector<1x32xf32> to vector<8x32xf32>
    %321 = arith.addf %319, %320 : vector<8x32xf32>
    %322 = arith.addf %312, %317 : vector<8x32xf32>
    %323 = arith.negf %322 : vector<8x32xf32>
    %324 = math.exp %323 : vector<8x32xf32>
    %cst_183 = arith.constant 1.000000e+00 : f32
    %325 = vector.broadcast %cst_183 : f32 to vector<8x32xf32>
    %326 = arith.addf %325, %324 : vector<8x32xf32>
    %327 = arith.divf %325, %326 : vector<8x32xf32>
    %328 = arith.addf %314, %318 : vector<8x32xf32>
    %329 = arith.negf %328 : vector<8x32xf32>
    %330 = math.exp %329 : vector<8x32xf32>
    %cst_184 = arith.constant 1.000000e+00 : f32
    %331 = vector.broadcast %cst_184 : f32 to vector<8x32xf32>
    %332 = arith.addf %331, %330 : vector<8x32xf32>
    %333 = arith.divf %331, %332 : vector<8x32xf32>
    %334 = arith.mulf %327, %321 : vector<8x32xf32>
    %335 = arith.addf %316, %334 : vector<8x32xf32>
    %336 = math.tanh %335 : vector<8x32xf32>
    %337 = arith.subf %310, %336 : vector<8x32xf32>
    %338 = arith.mulf %333, %337 : vector<8x32xf32>
    %339 = arith.addf %336, %338 : vector<8x32xf32>
    %c8_185 = arith.constant 8 : index
    %c0_186 = arith.constant 0 : index
    %c0_187 = arith.constant 0 : index
    %340 = vector.load %arg1[%c8_185, %c0_186, %c0_187] : memref<12x8x32xf32, #tpu.memory_space<vmem>>, vector<1x8x32xf32>
    %341 = vector.shape_cast %340 : vector<1x8x32xf32> to vector<8x32xf32>
    %cst_188 = arith.constant 1.000000e+00 : f32
    %342 = vector.broadcast %cst_188 : f32 to vector<8x32xf32>
    %343 = arith.cmpf oeq, %341, %342 : vector<8x32xf32>
    %344 = arith.select %343, %339, %310 : vector<8x32xi1>, vector<8x32xf32>
    %c0_189 = arith.constant 0 : index
    %c72 = arith.constant 72 : index
    %c0_190 = arith.constant 0 : index
    %345 = vector.load %arg9[%c0_189, %c72, %c0_190] : memref<3x96x32xf32, #tpu.memory_space<vmem>>, vector<1x8x32xf32>
    %346 = vector.shape_cast %345 : vector<1x8x32xf32> to vector<8x32xf32>
    %c1_191 = arith.constant 1 : index
    %c72_192 = arith.constant 72 : index
    %c0_193 = arith.constant 0 : index
    %347 = vector.load %arg9[%c1_191, %c72_192, %c0_193] : memref<3x96x32xf32, #tpu.memory_space<vmem>>, vector<1x8x32xf32>
    %348 = vector.shape_cast %347 : vector<1x8x32xf32> to vector<8x32xf32>
    %c2_194 = arith.constant 2 : index
    %c72_195 = arith.constant 72 : index
    %c0_196 = arith.constant 0 : index
    %349 = vector.load %arg9[%c2_194, %c72_195, %c0_196] : memref<3x96x32xf32, #tpu.memory_space<vmem>>, vector<1x8x32xf32>
    %350 = vector.shape_cast %349 : vector<1x8x32xf32> to vector<8x32xf32>
    %cst_197 = arith.constant dense<0.000000e+00> : vector<8x32xf32>
    %351 = tpu.matmul %344, %32, %cst_197 {dimension_numbers = #tpu.dot_dimension_numbers<[1], [0], [0], [1], [0, 0, 1, 1], [], []>} : vector<8x32xf32>, vector<32x32xf32>, vector<8x32xf32> -> vector<8x32xf32>
    %cst_198 = arith.constant dense<0.000000e+00> : vector<8x32xf32>
    %352 = tpu.matmul %344, %34, %cst_198 {dimension_numbers = #tpu.dot_dimension_numbers<[1], [0], [0], [1], [0, 0, 1, 1], [], []>} : vector<8x32xf32>, vector<32x32xf32>, vector<8x32xf32> -> vector<8x32xf32>
    %cst_199 = arith.constant dense<0.000000e+00> : vector<8x32xf32>
    %353 = tpu.matmul %344, %36, %cst_199 {dimension_numbers = #tpu.dot_dimension_numbers<[1], [0], [0], [1], [0, 0, 1, 1], [], []>} : vector<8x32xf32>, vector<32x32xf32>, vector<8x32xf32> -> vector<8x32xf32>
    %354 = vector.broadcast %37 : vector<1x32xf32> to vector<8x32xf32>
    %355 = arith.addf %353, %354 : vector<8x32xf32>
    %356 = arith.addf %346, %351 : vector<8x32xf32>
    %357 = arith.negf %356 : vector<8x32xf32>
    %358 = math.exp %357 : vector<8x32xf32>
    %cst_200 = arith.constant 1.000000e+00 : f32
    %359 = vector.broadcast %cst_200 : f32 to vector<8x32xf32>
    %360 = arith.addf %359, %358 : vector<8x32xf32>
    %361 = arith.divf %359, %360 : vector<8x32xf32>
    %362 = arith.addf %348, %352 : vector<8x32xf32>
    %363 = arith.negf %362 : vector<8x32xf32>
    %364 = math.exp %363 : vector<8x32xf32>
    %cst_201 = arith.constant 1.000000e+00 : f32
    %365 = vector.broadcast %cst_201 : f32 to vector<8x32xf32>
    %366 = arith.addf %365, %364 : vector<8x32xf32>
    %367 = arith.divf %365, %366 : vector<8x32xf32>
    %368 = arith.mulf %361, %355 : vector<8x32xf32>
    %369 = arith.addf %350, %368 : vector<8x32xf32>
    %370 = math.tanh %369 : vector<8x32xf32>
    %371 = arith.subf %344, %370 : vector<8x32xf32>
    %372 = arith.mulf %367, %371 : vector<8x32xf32>
    %373 = arith.addf %370, %372 : vector<8x32xf32>
    %c9 = arith.constant 9 : index
    %c0_202 = arith.constant 0 : index
    %c0_203 = arith.constant 0 : index
    %374 = vector.load %arg1[%c9, %c0_202, %c0_203] : memref<12x8x32xf32, #tpu.memory_space<vmem>>, vector<1x8x32xf32>
    %375 = vector.shape_cast %374 : vector<1x8x32xf32> to vector<8x32xf32>
    %cst_204 = arith.constant 1.000000e+00 : f32
    %376 = vector.broadcast %cst_204 : f32 to vector<8x32xf32>
    %377 = arith.cmpf oeq, %375, %376 : vector<8x32xf32>
    %378 = arith.select %377, %373, %344 : vector<8x32xi1>, vector<8x32xf32>
    %c0_205 = arith.constant 0 : index
    %c80 = arith.constant 80 : index
    %c0_206 = arith.constant 0 : index
    %379 = vector.load %arg9[%c0_205, %c80, %c0_206] : memref<3x96x32xf32, #tpu.memory_space<vmem>>, vector<1x8x32xf32>
    %380 = vector.shape_cast %379 : vector<1x8x32xf32> to vector<8x32xf32>
    %c1_207 = arith.constant 1 : index
    %c80_208 = arith.constant 80 : index
    %c0_209 = arith.constant 0 : index
    %381 = vector.load %arg9[%c1_207, %c80_208, %c0_209] : memref<3x96x32xf32, #tpu.memory_space<vmem>>, vector<1x8x32xf32>
    %382 = vector.shape_cast %381 : vector<1x8x32xf32> to vector<8x32xf32>
    %c2_210 = arith.constant 2 : index
    %c80_211 = arith.constant 80 : index
    %c0_212 = arith.constant 0 : index
    %383 = vector.load %arg9[%c2_210, %c80_211, %c0_212] : memref<3x96x32xf32, #tpu.memory_space<vmem>>, vector<1x8x32xf32>
    %384 = vector.shape_cast %383 : vector<1x8x32xf32> to vector<8x32xf32>
    %cst_213 = arith.constant dense<0.000000e+00> : vector<8x32xf32>
    %385 = tpu.matmul %378, %32, %cst_213 {dimension_numbers = #tpu.dot_dimension_numbers<[1], [0], [0], [1], [0, 0, 1, 1], [], []>} : vector<8x32xf32>, vector<32x32xf32>, vector<8x32xf32> -> vector<8x32xf32>
    %cst_214 = arith.constant dense<0.000000e+00> : vector<8x32xf32>
    %386 = tpu.matmul %378, %34, %cst_214 {dimension_numbers = #tpu.dot_dimension_numbers<[1], [0], [0], [1], [0, 0, 1, 1], [], []>} : vector<8x32xf32>, vector<32x32xf32>, vector<8x32xf32> -> vector<8x32xf32>
    %cst_215 = arith.constant dense<0.000000e+00> : vector<8x32xf32>
    %387 = tpu.matmul %378, %36, %cst_215 {dimension_numbers = #tpu.dot_dimension_numbers<[1], [0], [0], [1], [0, 0, 1, 1], [], []>} : vector<8x32xf32>, vector<32x32xf32>, vector<8x32xf32> -> vector<8x32xf32>
    %388 = vector.broadcast %37 : vector<1x32xf32> to vector<8x32xf32>
    %389 = arith.addf %387, %388 : vector<8x32xf32>
    %390 = arith.addf %380, %385 : vector<8x32xf32>
    %391 = arith.negf %390 : vector<8x32xf32>
    %392 = math.exp %391 : vector<8x32xf32>
    %cst_216 = arith.constant 1.000000e+00 : f32
    %393 = vector.broadcast %cst_216 : f32 to vector<8x32xf32>
    %394 = arith.addf %393, %392 : vector<8x32xf32>
    %395 = arith.divf %393, %394 : vector<8x32xf32>
    %396 = arith.addf %382, %386 : vector<8x32xf32>
    %397 = arith.negf %396 : vector<8x32xf32>
    %398 = math.exp %397 : vector<8x32xf32>
    %cst_217 = arith.constant 1.000000e+00 : f32
    %399 = vector.broadcast %cst_217 : f32 to vector<8x32xf32>
    %400 = arith.addf %399, %398 : vector<8x32xf32>
    %401 = arith.divf %399, %400 : vector<8x32xf32>
    %402 = arith.mulf %395, %389 : vector<8x32xf32>
    %403 = arith.addf %384, %402 : vector<8x32xf32>
    %404 = math.tanh %403 : vector<8x32xf32>
    %405 = arith.subf %378, %404 : vector<8x32xf32>
    %406 = arith.mulf %401, %405 : vector<8x32xf32>
    %407 = arith.addf %404, %406 : vector<8x32xf32>
    %c10 = arith.constant 10 : index
    %c0_218 = arith.constant 0 : index
    %c0_219 = arith.constant 0 : index
    %408 = vector.load %arg1[%c10, %c0_218, %c0_219] : memref<12x8x32xf32, #tpu.memory_space<vmem>>, vector<1x8x32xf32>
    %409 = vector.shape_cast %408 : vector<1x8x32xf32> to vector<8x32xf32>
    %cst_220 = arith.constant 1.000000e+00 : f32
    %410 = vector.broadcast %cst_220 : f32 to vector<8x32xf32>
    %411 = arith.cmpf oeq, %409, %410 : vector<8x32xf32>
    %412 = arith.select %411, %407, %378 : vector<8x32xi1>, vector<8x32xf32>
    %c0_221 = arith.constant 0 : index
    %c88 = arith.constant 88 : index
    %c0_222 = arith.constant 0 : index
    %413 = vector.load %arg9[%c0_221, %c88, %c0_222] : memref<3x96x32xf32, #tpu.memory_space<vmem>>, vector<1x8x32xf32>
    %414 = vector.shape_cast %413 : vector<1x8x32xf32> to vector<8x32xf32>
    %c1_223 = arith.constant 1 : index
    %c88_224 = arith.constant 88 : index
    %c0_225 = arith.constant 0 : index
    %415 = vector.load %arg9[%c1_223, %c88_224, %c0_225] : memref<3x96x32xf32, #tpu.memory_space<vmem>>, vector<1x8x32xf32>
    %416 = vector.shape_cast %415 : vector<1x8x32xf32> to vector<8x32xf32>
    %c2_226 = arith.constant 2 : index
    %c88_227 = arith.constant 88 : index
    %c0_228 = arith.constant 0 : index
    %417 = vector.load %arg9[%c2_226, %c88_227, %c0_228] : memref<3x96x32xf32, #tpu.memory_space<vmem>>, vector<1x8x32xf32>
    %418 = vector.shape_cast %417 : vector<1x8x32xf32> to vector<8x32xf32>
    %cst_229 = arith.constant dense<0.000000e+00> : vector<8x32xf32>
    %419 = tpu.matmul %412, %32, %cst_229 {dimension_numbers = #tpu.dot_dimension_numbers<[1], [0], [0], [1], [0, 0, 1, 1], [], []>} : vector<8x32xf32>, vector<32x32xf32>, vector<8x32xf32> -> vector<8x32xf32>
    %cst_230 = arith.constant dense<0.000000e+00> : vector<8x32xf32>
    %420 = tpu.matmul %412, %34, %cst_230 {dimension_numbers = #tpu.dot_dimension_numbers<[1], [0], [0], [1], [0, 0, 1, 1], [], []>} : vector<8x32xf32>, vector<32x32xf32>, vector<8x32xf32> -> vector<8x32xf32>
    %cst_231 = arith.constant dense<0.000000e+00> : vector<8x32xf32>
    %421 = tpu.matmul %412, %36, %cst_231 {dimension_numbers = #tpu.dot_dimension_numbers<[1], [0], [0], [1], [0, 0, 1, 1], [], []>} : vector<8x32xf32>, vector<32x32xf32>, vector<8x32xf32> -> vector<8x32xf32>
    %422 = vector.broadcast %37 : vector<1x32xf32> to vector<8x32xf32>
    %423 = arith.addf %421, %422 : vector<8x32xf32>
    %424 = arith.addf %414, %419 : vector<8x32xf32>
    %425 = arith.negf %424 : vector<8x32xf32>
    %426 = math.exp %425 : vector<8x32xf32>
    %cst_232 = arith.constant 1.000000e+00 : f32
    %427 = vector.broadcast %cst_232 : f32 to vector<8x32xf32>
    %428 = arith.addf %427, %426 : vector<8x32xf32>
    %429 = arith.divf %427, %428 : vector<8x32xf32>
    %430 = arith.addf %416, %420 : vector<8x32xf32>
    %431 = arith.negf %430 : vector<8x32xf32>
    %432 = math.exp %431 : vector<8x32xf32>
    %cst_233 = arith.constant 1.000000e+00 : f32
    %433 = vector.broadcast %cst_233 : f32 to vector<8x32xf32>
    %434 = arith.addf %433, %432 : vector<8x32xf32>
    %435 = arith.divf %433, %434 : vector<8x32xf32>
    %436 = arith.mulf %429, %423 : vector<8x32xf32>
    %437 = arith.addf %418, %436 : vector<8x32xf32>
    %438 = math.tanh %437 : vector<8x32xf32>
    %439 = arith.subf %412, %438 : vector<8x32xf32>
    %440 = arith.mulf %435, %439 : vector<8x32xf32>
    %441 = arith.addf %438, %440 : vector<8x32xf32>
    %c11 = arith.constant 11 : index
    %c0_234 = arith.constant 0 : index
    %c0_235 = arith.constant 0 : index
    %442 = vector.load %arg1[%c11, %c0_234, %c0_235] : memref<12x8x32xf32, #tpu.memory_space<vmem>>, vector<1x8x32xf32>
    %443 = vector.shape_cast %442 : vector<1x8x32xf32> to vector<8x32xf32>
    %cst_236 = arith.constant 1.000000e+00 : f32
    %444 = vector.broadcast %cst_236 : f32 to vector<8x32xf32>
    %445 = arith.cmpf oeq, %443, %444 : vector<8x32xf32>
    %446 = arith.select %445, %441, %412 : vector<8x32xi1>, vector<8x32xf32>
    %c0_237 = arith.constant 0 : index
    %c0_238 = arith.constant 0 : index
    %447 = vector.load %arg6[%c0_237, %c0_238] : memref<32x8xf32, #tpu.memory_space<vmem>>, vector<32x8xf32>
    %cst_239 = arith.constant dense<0.000000e+00> : vector<8x8xf32>
    %448 = tpu.matmul %446, %447, %cst_239 {dimension_numbers = #tpu.dot_dimension_numbers<[1], [0], [0], [1], [0, 0, 1, 1], [], []>} : vector<8x32xf32>, vector<32x8xf32>, vector<8x8xf32> -> vector<8x8xf32>
    %c0_240 = arith.constant 0 : index
    %c0_241 = arith.constant 0 : index
    %449 = vector.load %arg7[%c0_240, %c0_241] : memref<1x8xf32, #tpu.memory_space<vmem>>, vector<1x8xf32>
    %450 = vector.broadcast %449 : vector<1x8xf32> to vector<8x8xf32>
    %451 = arith.addf %448, %450 : vector<8x8xf32>
    %cst_242 = arith.constant dense<0xFF800000> : vector<8xf32>
    %452 = vector.multi_reduction <maximumf>, %451, %cst_242 [1] : vector<8x8xf32> to vector<8xf32>
    %453 = vector.shape_cast %452 : vector<8xf32> to vector<8x1xf32>
    %454 = vector.broadcast %453 : vector<8x1xf32> to vector<8x8xf32>
    %455 = arith.subf %451, %454 : vector<8x8xf32>
    %456 = math.exp %455 : vector<8x8xf32>
    %cst_243 = arith.constant dense<0.000000e+00> : vector<8xf32>
    %457 = vector.multi_reduction <add>, %456, %cst_243 [1] : vector<8x8xf32> to vector<8xf32>
    %458 = vector.shape_cast %457 : vector<8xf32> to vector<8x1xf32>
    %459 = math.log %458 : vector<8x1xf32>
    %460 = vector.broadcast %459 : vector<8x1xf32> to vector<8x8xf32>
    %461 = arith.subf %455, %460 : vector<8x8xf32>
    %c0_244 = arith.constant 0 : index
    %c0_245 = arith.constant 0 : index
    %462 = vector.load %arg8[%c0_244, %c0_245] : memref<8x8xf32, #tpu.memory_space<vmem>>, vector<8x8xf32>
    tpu.vector_store %arg8[%c0_244, %c0_245], %461 {strides = array<i32>} : memref<8x8xf32, #tpu.memory_space<vmem>>, vector<8x8xf32>,
    return
  }
}

</mosaic_0001>

<llo_original>
// kernel: model16_forward.1
$region0: #{model16_forward.1}
  #allocation0 [shape = 'u32[]', space=smem, size = 0x4, offset = 0x4, fixed_abs, tag = 'smem constant byte address 0x4 - core index']
  #allocation1 [shape = 'u32[144,128]{1,0:T(1,128)}', space=vmem, size = 0x12000, scoped, tag = 'internal scratch']
  #allocation2 [shape = 'f32[3,96,32]{2,1,0:T(8,128)}', space=vmem, size = 0x24000, scoped, tag = 'scratch operand']
  %s0 = inlined_call_operand.vmem [shape: f32[96,16], index: 0, kind: input, shape index: {}]
  %s1 = inlined_call_operand.vmem [shape: f32[12,8,32], index: 1, kind: input, shape index: {}]
  %s2 = inlined_call_operand.vmem [shape: f32[3,16,32], index: 2, kind: input, shape index: {}]
  %s3 = inlined_call_operand.vmem [shape: f32[3,32,32], index: 3, kind: input, shape index: {}]
  %s4 = inlined_call_operand.vmem [shape: f32[3,1,32], index: 4, kind: input, shape index: {}]
  %s5 = inlined_call_operand.vmem [shape: f32[1,32], index: 5, kind: input, shape index: {}]
  %s6 = inlined_call_operand.vmem [shape: f32[32,8], index: 6, kind: input, shape index: {}]
  %s7 = inlined_call_operand.vmem [shape: f32[1,8], index: 7, kind: input, shape index: {}]
  %s8 = inlined_call_operand.vmem [shape: f32[8,8], index: 8, kind: output, shape index: {}]
  %s9 = sld [smem:[#allocation0]]
  $region42: #{model16_forward.1} parent=0
    _
  %s11 = ssub.s32 1, %s9
  %s12 = scalar_select 0, %s11, %s9
  // Predicated region
  $region2: #{model16_forward.1} parent=0 // pred_check
    _
  $region3: #{model16_forward.1} parent=0 // pred_check_branch
    %14 = sbr.rel (0) target = $region5
  $region4: #{model16_forward.1} parent=0 // pred_region
    _
  $region5: #{model16_forward.1} parent=0 // pred_fallthru
    _
  // Predicated region
  $region6: #{model16_forward.1} parent=0 // pred_check
    _
  $region7: #{model16_forward.1} parent=0 // pred_check_branch
    %16 = sbr.rel (0) target = $region9
  $region8: #{model16_forward.1} parent=0 // pred_region
    _
  $region9: #{model16_forward.1} parent=0 // pred_fallthru
    _
  // Predicated region
  $region10: #{model16_forward.1} parent=0 // pred_check
    _
  $region11: #{model16_forward.1} parent=0 // pred_check_branch
    %18 = sbr.rel (0) target = $region13
  $region12: #{model16_forward.1} parent=0 // pred_region
    _
  $region13: #{model16_forward.1} parent=0 // pred_fallthru
    _
  // Predicated region
  $region14: #{model16_forward.1} parent=0 // pred_check
    _
  $region15: #{model16_forward.1} parent=0 // pred_check_branch
    %20 = sbr.rel (0) target = $region17
  $region16: #{model16_forward.1} parent=0 // pred_region
    _
  $region17: #{model16_forward.1} parent=0 // pred_fallthru
    _
  // Predicated region
  $region18: #{model16_forward.1} parent=0 // pred_check
    _
  $region19: #{model16_forward.1} parent=0 // pred_check_branch
    %22 = sbr.rel (0) target = $region21
  $region20: #{model16_forward.1} parent=0 // pred_region
    _
  $region21: #{model16_forward.1} parent=0 // pred_fallthru
    _
  // Predicated region
  $region22: #{model16_forward.1} parent=0 // pred_check
    _
  $region23: #{model16_forward.1} parent=0 // pred_check_branch
    %24 = sbr.rel (0) target = $region25
  $region24: #{model16_forward.1} parent=0 // pred_region
    _
  $region25: #{model16_forward.1} parent=0 // pred_fallthru
    _
  // Predicated region
  $region26: #{model16_forward.1} parent=0 // pred_check
    _
  $region27: #{model16_forward.1} parent=0 // pred_check_branch
    %26 = sbr.rel (0) target = $region29
  $region28: #{model16_forward.1} parent=0 // pred_region
    _
  $region29: #{model16_forward.1} parent=0 // pred_fallthru
    _
  // Predicated region
  $region30: #{model16_forward.1} parent=0 // pred_check
    _
  $region31: #{model16_forward.1} parent=0 // pred_check_branch
    %28 = sbr.rel (0) target = $region33
  $region32: #{model16_forward.1} parent=0 // pred_region
    _
  $region33: #{model16_forward.1} parent=0 // pred_fallthru
    _
  %v29 = vld [vmem:[%s0] sm:$0xff]
  %v30 = vld [vmem:[%s0 + $0x8] sm:$0xff]
  %v31 = vld [vmem:[%s0 + $0x10] sm:$0xff]
  %v32 = vld [vmem:[%s0 + $0x18] sm:$0xff]
  %v33 = vld [vmem:[%s0 + $0x20] sm:$0xff]
  %v34 = vld [vmem:[%s0 + $0x28] sm:$0xff]
  %v35 = vld [vmem:[%s0 + $0x30] sm:$0xff]
  %v36 = vld [vmem:[%s0 + $0x38] sm:$0xff]
  %v37 = vld [vmem:[%s0 + $0x40] sm:$0xff]
  %v38 = vld [vmem:[%s0 + $0x48] sm:$0xff]
  %v39 = vld [vmem:[%s0 + $0x50] sm:$0xff]
  %v40 = vld [vmem:[%s0 + $0x58] sm:$0xff]
  %v41 = vld [vmem:[%s2] sm:$0xff]
  %v42 = vld [vmem:[%s2 + $0x8] sm:$0xff]
  %v43 = vld [vmem:[%s4] sm:$0x1]
  %v45 = vlaneseq
  %v46 = vshrl.u32 %v45, 7
  %v47 = vsub.s32 0, %v46
  %v48 = vrot.slane %v43, %v47
  %vm50 = vcmask 130048
  %v52 = vsel %vm50, %v29, 0
  %v55 = vsel %vm50, %v30, 0
  %v58 = vsel %vm50, %v31, 0
  %v61 = vsel %vm50, %v32, 0
  %v64 = vsel %vm50, %v33, 0
  %v67 = vsel %vm50, %v34, 0
  %v70 = vsel %vm50, %v35, 0
  %v73 = vsel %vm50, %v36, 0
  %v76 = vsel %vm50, %v37, 0
  %v79 = vsel %vm50, %v38, 0
  %v82 = vsel %vm50, %v39, 0
  %v85 = vsel %vm50, %v40, 0
  %87 = vmatprep.subr.mxu0 0.0
  %88 = vmatpush1.msra.mxu0 0.0
  %89 = vmatprep.subr.mxu0 0.0
  %90 = vmatpush1.msra.mxu0 0.0
  %91 = vmatprep.subr.mxu0 0.0
  %92 = vmatpush1.msra.mxu0 0.0
  %93 = vmatprep.subr.mxu0 0.0
  %94 = vmatpush1.msra.mxu0 0.0
  %95 = vmatprep.subr.mxu0 0.0
  %96 = vmatpush1.msra.mxu0 0.0
  %97 = vmatprep.subr.mxu0 0.0
  %98 = vmatpush1.msra.mxu0 0.0
  %99 = vmatprep.subr.mxu0 0.0
  %100 = vmatpush1.msra.mxu0 0.0
  %101 = vmatprep.subr.mxu0 0.0
  %102 = vmatpush1.msra.mxu0 0.0
  %103 = vmatprep.subr.mxu0 0.0
  %104 = vmatpush1.msra.mxu0 0.0
  %105 = vmatprep.subr.mxu0 0.0
  %106 = vmatpush1.msra.mxu0 0.0
  %107 = vmatprep.subr.mxu0 0.0
  %108 = vmatpush1.msra.mxu0 0.0
  %109 = vmatprep.subr.mxu0 0.0
  %110 = vmatpush1.msra.mxu0 0.0
  %111 = vmatprep.subr.mxu0 0.0
  %112 = vmatpush1.msra.mxu0 0.0
  %113 = vmatprep.subr.mxu0 0.0
  %114 = vmatpush1.msra.mxu0 0.0
  %115 = vmatprep.subr.mxu0 0.0
  %116 = vmatpush1.msra.mxu0 %v42
  %117 = vmatprep.subr.mxu0 0.0
  %118 = vmatpush1.msra.mxu0 %v41
  %119 = vmatprep.subr.mxu0 0.0
  %120 = vmatpush2.msra.mxu0 0.0
  %121 = vmatprep.subr.mxu0 0.0
  %122 = vmatpush2.msra.mxu0 0.0
  %123 = vmatprep.subr.mxu0 0.0
  %124 = vmatpush2.msra.mxu0 0.0
  %125 = vmatprep.subr.mxu0 0.0
  %126 = vmatpush2.msra.mxu0 0.0
  %127 = vmatprep.subr.mxu0 0.0
  %128 = vmatpush2.msra.mxu0 0.0
  %129 = vmatprep.subr.mxu0 0.0
  %130 = vmatpush2.msra.mxu0 0.0
  %131 = vmatprep.subr.mxu0 0.0
  %132 = vmatpush2.msra.mxu0 0.0
  %133 = vmatprep.subr.mxu0 0.0
  %134 = vmatpush2.msra.mxu0 0.0
  %135 = vmatprep.subr.mxu0 0.0
  %136 = vmatpush2.msra.mxu0 0.0
  %137 = vmatprep.subr.mxu0 0.0
  %138 = vmatpush2.msra.mxu0 0.0
  %139 = vmatprep.subr.mxu0 0.0
  %140 = vmatpush2.msra.mxu0 0.0
  %141 = vmatprep.subr.mxu0 0.0
  %142 = vmatpush2.msra.mxu0 0.0
  %143 = vmatprep.subr.mxu0 0.0
  %144 = vmatpush2.msra.mxu0 0.0
  %145 = vmatprep.subr.mxu0 0.0
  %146 = vmatpush2.msra.mxu0 0.0
  %147 = vmatprep.subr.mxu0 0.0
  %148 = vmatpush2.msra.mxu0 0.0
  %149 = vmatprep.subr.mxu0 0.0
  %150 = vmatpush2.msra.mxu0 0.0
  %151 = vmatprep.mubr.f32.mxu0 0.0
  %152 = vmatmul.mubr.f32.gmra.mxu0 %v52
  %v153 = vpop.f32.mrf.mxu0
  %v154 = vadd.f32 %v48, %v153
  %v155 = vpop.f32.mrf.mxu0
  %156 = vmatprep.mubr.f32.mxu0 0.0
  %157 = vmatmul.mubr.f32.gmra.mxu0 %v55
  %v158 = vpop.f32.mrf.mxu0
  %v159 = vadd.f32 %v48, %v158
  %v160 = vpop.f32.mrf.mxu0
  %161 = vmatprep.mubr.f32.mxu0 0.0
  %162 = vmatmul.mubr.f32.gmra.mxu0 %v58
  %v163 = vpop.f32.mrf.mxu0
  %v164 = vadd.f32 %v48, %v163
  %v165 = vpop.f32.mrf.mxu0
  %166 = vmatprep.mubr.f32.mxu0 0.0
  %167 = vmatmul.mubr.f32.gmra.mxu0 %v61
  %v168 = vpop.f32.mrf.mxu0
  %v169 = vadd.f32 %v48, %v168
  %v170 = vpop.f32.mrf.mxu0
  %171 = vmatprep.mubr.f32.mxu0 0.0
  %172 = vmatmul.mubr.f32.gmra.mxu0 %v64
  %v173 = vpop.f32.mrf.mxu0
  %v174 = vadd.f32 %v48, %v173
  %v175 = vpop.f32.mrf.mxu0
  %176 = vmatprep.mubr.f32.mxu0 0.0
  %177 = vmatmul.mubr.f32.gmra.mxu0 %v67
  %v178 = vpop.f32.mrf.mxu0
  %v179 = vadd.f32 %v48, %v178
  %v180 = vpop.f32.mrf.mxu0
  %181 = vmatprep.mubr.f32.mxu0 0.0
  %182 = vmatmul.mubr.f32.gmra.mxu0 %v70
  %v183 = vpop.f32.mrf.mxu0
  %v184 = vadd.f32 %v48, %v183
  %v185 = vpop.f32.mrf.mxu0
  %186 = vmatprep.mubr.f32.mxu0 0.0
  %187 = vmatmul.mubr.f32.gmra.mxu0 %v73
  %v188 = vpop.f32.mrf.mxu0
  %v189 = vadd.f32 %v48, %v188
  %v190 = vpop.f32.mrf.mxu0
  %191 = vmatprep.mubr.f32.mxu0 0.0
  %192 = vmatmul.mubr.f32.gmra.mxu0 %v76
  %v193 = vpop.f32.mrf.mxu0
  %v194 = vadd.f32 %v48, %v193
  %v195 = vpop.f32.mrf.mxu0
  %196 = vmatprep.mubr.f32.mxu0 0.0
  %197 = vmatmul.mubr.f32.gmra.mxu0 %v79
  %v198 = vpop.f32.mrf.mxu0
  %v199 = vadd.f32 %v48, %v198
  %v200 = vpop.f32.mrf.mxu0
  %201 = vmatprep.mubr.f32.mxu0 0.0
  %202 = vmatmul.mubr.f32.gmra.mxu0 %v82
  %v203 = vpop.f32.mrf.mxu0
  %v204 = vadd.f32 %v48, %v203
  %v205 = vpop.f32.mrf.mxu0
  %206 = vmatprep.mubr.f32.mxu0 0.0
  %207 = vmatmul.mubr.f32.gmra.mxu0 %v85
  %v208 = vpop.f32.mrf.mxu0
  %v209 = vadd.f32 %v48, %v208
  %v210 = vpop.f32.mrf.mxu0
  %211 = vdwg.mxu0
  %vm212 = vcmask 261120
  %213 = vst.msk [vmem:[#allocation2] sm:$0xff] %vm212, %v154
  %214 = vst.msk [vmem:[#allocation2 + $0x8] sm:$0xff] %vm212, %v159
  %215 = vst.msk [vmem:[#allocation2 + $0x10] sm:$0xff] %vm212, %v164
  %216 = vst.msk [vmem:[#allocation2 + $0x18] sm:$0xff] %vm212, %v169
  %217 = vst.msk [vmem:[#allocation2 + $0x20] sm:$0xff] %vm212, %v174
  %218 = vst.msk [vmem:[#allocation2 + $0x28] sm:$0xff] %vm212, %v179
  %219 = vst.msk [vmem:[#allocation2 + $0x30] sm:$0xff] %vm212, %v184
  %220 = vst.msk [vmem:[#allocation2 + $0x38] sm:$0xff] %vm212, %v189
  %221 = vst.msk [vmem:[#allocation2 + $0x40] sm:$0xff] %vm212, %v194
  %222 = vst.msk [vmem:[#allocation2 + $0x48] sm:$0xff] %vm212, %v199
  %223 = vst.msk [vmem:[#allocation2 + $0x50] sm:$0xff] %vm212, %v204
  %224 = vst.msk [vmem:[#allocation2 + $0x58] sm:$0xff] %vm212, %v209
  %s225 = scalar_lea.vmem %s2, 16
  %v226 = vld [vmem:[%s225] sm:$0xff]
  %v227 = vld [vmem:[%s225 + $0x8] sm:$0xff]
  %s228 = scalar_lea.vmem %s4, 1
  %v229 = vld [vmem:[%s228] sm:$0x1]
  %v231 = vlaneseq
  %v232 = vshrl.u32 %v231, 7
  %v233 = vsub.s32 0, %v232
  %v234 = vrot.slane %v229, %v233
  %236 = vmatprep.subr.mxu0 0.0
  %237 = vmatpush1.msra.mxu0 0.0
  %238 = vmatprep.subr.mxu0 0.0
  %239 = vmatpush1.msra.mxu0 0.0
  %240 = vmatprep.subr.mxu0 0.0
  %241 = vmatpush1.msra.mxu0 0.0
  %242 = vmatprep.subr.mxu0 0.0
  %243 = vmatpush1.msra.mxu0 0.0
  %244 = vmatprep.subr.mxu0 0.0
  %245 = vmatpush1.msra.mxu0 0.0
  %246 = vmatprep.subr.mxu0 0.0
  %247 = vmatpush1.msra.mxu0 0.0
  %248 = vmatprep.subr.mxu0 0.0
  %249 = vmatpush1.msra.mxu0 0.0
  %250 = vmatprep.subr.mxu0 0.0
  %251 = vmatpush1.msra.mxu0 0.0
  %252 = vmatprep.subr.mxu0 0.0
  %253 = vmatpush1.msra.mxu0 0.0
  %254 = vmatprep.subr.mxu0 0.0
  %255 = vmatpush1.msra.mxu0 0.0
  %256 = vmatprep.subr.mxu0 0.0
  %257 = vmatpush1.msra.mxu0 0.0
  %258 = vmatprep.subr.mxu0 0.0
  %259 = vmatpush1.msra.mxu0 0.0
  %260 = vmatprep.subr.mxu0 0.0
  %261 = vmatpush1.msra.mxu0 0.0
  %262 = vmatprep.subr.mxu0 0.0
  %263 = vmatpush1.msra.mxu0 0.0
  %264 = vmatprep.subr.mxu0 0.0
  %265 = vmatpush1.msra.mxu0 %v227
  %266 = vmatprep.subr.mxu0 0.0
  %267 = vmatpush1.msra.mxu0 %v226
  %268 = vmatprep.subr.mxu0 0.0
  %269 = vmatpush2.msra.mxu0 0.0
  %270 = vmatprep.subr.mxu0 0.0
  %271 = vmatpush2.msra.mxu0 0.0
  %272 = vmatprep.subr.mxu0 0.0
  %273 = vmatpush2.msra.mxu0 0.0
  %274 = vmatprep.subr.mxu0 0.0
  %275 = vmatpush2.msra.mxu0 0.0
  %276 = vmatprep.subr.mxu0 0.0
  %277 = vmatpush2.msra.mxu0 0.0
  %278 = vmatprep.subr.mxu0 0.0
  %279 = vmatpush2.msra.mxu0 0.0
  %280 = vmatprep.subr.mxu0 0.0
  %281 = vmatpush2.msra.mxu0 0.0
  %282 = vmatprep.subr.mxu0 0.0
  %283 = vmatpush2.msra.mxu0 0.0
  %284 = vmatprep.subr.mxu0 0.0
  %285 = vmatpush2.msra.mxu0 0.0
  %286 = vmatprep.subr.mxu0 0.0
  %287 = vmatpush2.msra.mxu0 0.0
  %288 = vmatprep.subr.mxu0 0.0
  %289 = vmatpush2.msra.mxu0 0.0
  %290 = vmatprep.subr.mxu0 0.0
  %291 = vmatpush2.msra.mxu0 0.0
  %292 = vmatprep.subr.mxu0 0.0
  %293 = vmatpush2.msra.mxu0 0.0
  %294 = vmatprep.subr.mxu0 0.0
  %295 = vmatpush2.msra.mxu0 0.0
  %296 = vmatprep.subr.mxu0 0.0
  %297 = vmatpush2.msra.mxu0 0.0
  %298 = vmatprep.subr.mxu0 0.0
  %299 = vmatpush2.msra.mxu0 0.0
  %300 = vmatprep.mubr.f32.mxu0 0.0
  %301 = vmatmul.mubr.f32.gmra.mxu0 %v52
  %v302 = vpop.f32.mrf.mxu0
  %v303 = vadd.f32 %v234, %v302
  %v304 = vpop.f32.mrf.mxu0
  %305 = vmatprep.mubr.f32.mxu0 0.0
  %306 = vmatmul.mubr.f32.gmra.mxu0 %v55
  %v307 = vpop.f32.mrf.mxu0
  %v308 = vadd.f32 %v234, %v307
  %v309 = vpop.f32.mrf.mxu0
  %310 = vmatprep.mubr.f32.mxu0 0.0
  %311 = vmatmul.mubr.f32.gmra.mxu0 %v58
  %v312 = vpop.f32.mrf.mxu0
  %v313 = vadd.f32 %v234, %v312
  %v314 = vpop.f32.mrf.mxu0
  %315 = vmatprep.mubr.f32.mxu0 0.0
  %316 = vmatmul.mubr.f32.gmra.mxu0 %v61
  %v317 = vpop.f32.mrf.mxu0
  %v318 = vadd.f32 %v234, %v317
  %v319 = vpop.f32.mrf.mxu0
  %320 = vmatprep.mubr.f32.mxu0 0.0
  %321 = vmatmul.mubr.f32.gmra.mxu0 %v64
  %v322 = vpop.f32.mrf.mxu0
  %v323 = vadd.f32 %v234, %v322
  %v324 = vpop.f32.mrf.mxu0
  %325 = vmatprep.mubr.f32.mxu0 0.0
  %326 = vmatmul.mubr.f32.gmra.mxu0 %v67
  %v327 = vpop.f32.mrf.mxu0
  %v328 = vadd.f32 %v234, %v327
  %v329 = vpop.f32.mrf.mxu0
  %330 = vmatprep.mubr.f32.mxu0 0.0
  %331 = vmatmul.mubr.f32.gmra.mxu0 %v70
  %v332 = vpop.f32.mrf.mxu0
  %v333 = vadd.f32 %v234, %v332
  %v334 = vpop.f32.mrf.mxu0
  %335 = vmatprep.mubr.f32.mxu0 0.0
  %336 = vmatmul.mubr.f32.gmra.mxu0 %v73
  %v337 = vpop.f32.mrf.mxu0
  %v338 = vadd.f32 %v234, %v337
  %v339 = vpop.f32.mrf.mxu0
  %340 = vmatprep.mubr.f32.mxu0 0.0
  %341 = vmatmul.mubr.f32.gmra.mxu0 %v76
  %v342 = vpop.f32.mrf.mxu0
  %v343 = vadd.f32 %v234, %v342
  %v344 = vpop.f32.mrf.mxu0
  %345 = vmatprep.mubr.f32.mxu0 0.0
  %346 = vmatmul.mubr.f32.gmra.mxu0 %v79
  %v347 = vpop.f32.mrf.mxu0
  %v348 = vadd.f32 %v234, %v347
  %v349 = vpop.f32.mrf.mxu0
  %350 = vmatprep.mubr.f32.mxu0 0.0
  %351 = vmatmul.mubr.f32.gmra.mxu0 %v82
  %v352 = vpop.f32.mrf.mxu0
  %v353 = vadd.f32 %v234, %v352
  %v354 = vpop.f32.mrf.mxu0
  %355 = vmatprep.mubr.f32.mxu0 0.0
  %356 = vmatmul.mubr.f32.gmra.mxu0 %v85
  %v357 = vpop.f32.mrf.mxu0
  %v358 = vadd.f32 %v234, %v357
  %v359 = vpop.f32.mrf.mxu0
  %360 = vdwg.mxu0
  %s361 = scalar_lea.vmem [#allocation2], 96
  %362 = vst.msk [vmem:[%s361] sm:$0xff] %vm212, %v303
  %363 = vst.msk [vmem:[%s361 + $0x8] sm:$0xff] %vm212, %v308
  %364 = vst.msk [vmem:[%s361 + $0x10] sm:$0xff] %vm212, %v313
  %365 = vst.msk [vmem:[%s361 + $0x18] sm:$0xff] %vm212, %v318
  %366 = vst.msk [vmem:[%s361 + $0x20] sm:$0xff] %vm212, %v323
  %367 = vst.msk [vmem:[%s361 + $0x28] sm:$0xff] %vm212, %v328
  %368 = vst.msk [vmem:[%s361 + $0x30] sm:$0xff] %vm212, %v333
  %369 = vst.msk [vmem:[%s361 + $0x38] sm:$0xff] %vm212, %v338
  %370 = vst.msk [vmem:[%s361 + $0x40] sm:$0xff] %vm212, %v343
  %371 = vst.msk [vmem:[%s361 + $0x48] sm:$0xff] %vm212, %v348
  %372 = vst.msk [vmem:[%s361 + $0x50] sm:$0xff] %vm212, %v353
  %373 = vst.msk [vmem:[%s361 + $0x58] sm:$0xff] %vm212, %v358
  %s374 = scalar_lea.vmem %s2, 32
  %v375 = vld [vmem:[%s374] sm:$0xff]
  %v376 = vld [vmem:[%s374 + $0x8] sm:$0xff]
  %s377 = scalar_lea.vmem %s4, 2
  %v378 = vld [vmem:[%s377] sm:$0x1]
  %v380 = vlaneseq
  %v381 = vshrl.u32 %v380, 7
  %v382 = vsub.s32 0, %v381
  %v383 = vrot.slane %v378, %v382
  %385 = vmatprep.subr.mxu0 0.0
  %386 = vmatpush1.msra.mxu0 0.0
  %387 = vmatprep.subr.mxu0 0.0
  %388 = vmatpush1.msra.mxu0 0.0
  %389 = vmatprep.subr.mxu0 0.0
  %390 = vmatpush1.msra.mxu0 0.0
  %391 = vmatprep.subr.mxu0 0.0
  %392 = vmatpush1.msra.mxu0 0.0
  %393 = vmatprep.subr.mxu0 0.0
  %394 = vmatpush1.msra.mxu0 0.0
  %395 = vmatprep.subr.mxu0 0.0
  %396 = vmatpush1.msra.mxu0 0.0
  %397 = vmatprep.subr.mxu0 0.0
  %398 = vmatpush1.msra.mxu0 0.0
  %399 = vmatprep.subr.mxu0 0.0
  %400 = vmatpush1.msra.mxu0 0.0
  %401 = vmatprep.subr.mxu0 0.0
  %402 = vmatpush1.msra.mxu0 0.0
  %403 = vmatprep.subr.mxu0 0.0
  %404 = vmatpush1.msra.mxu0 0.0
  %405 = vmatprep.subr.mxu0 0.0
  %406 = vmatpush1.msra.mxu0 0.0
  %407 = vmatprep.subr.mxu0 0.0
  %408 = vmatpush1.msra.mxu0 0.0
  %409 = vmatprep.subr.mxu0 0.0
  %410 = vmatpush1.msra.mxu0 0.0
  %411 = vmatprep.subr.mxu0 0.0
  %412 = vmatpush1.msra.mxu0 0.0
  %413 = vmatprep.subr.mxu0 0.0
  %414 = vmatpush1.msra.mxu0 %v376
  %415 = vmatprep.subr.mxu0 0.0
  %416 = vmatpush1.msra.mxu0 %v375
  %417 = vmatprep.subr.mxu0 0.0
  %418 = vmatpush2.msra.mxu0 0.0
  %419 = vmatprep.subr.mxu0 0.0
  %420 = vmatpush2.msra.mxu0 0.0
  %421 = vmatprep.subr.mxu0 0.0
  %422 = vmatpush2.msra.mxu0 0.0
  %423 = vmatprep.subr.mxu0 0.0
  %424 = vmatpush2.msra.mxu0 0.0
  %425 = vmatprep.subr.mxu0 0.0
  %426 = vmatpush2.msra.mxu0 0.0
  %427 = vmatprep.subr.mxu0 0.0
  %428 = vmatpush2.msra.mxu0 0.0
  %429 = vmatprep.subr.mxu0 0.0
  %430 = vmatpush2.msra.mxu0 0.0
  %431 = vmatprep.subr.mxu0 0.0
  %432 = vmatpush2.msra.mxu0 0.0
  %433 = vmatprep.subr.mxu0 0.0
  %434 = vmatpush2.msra.mxu0 0.0
  %435 = vmatprep.subr.mxu0 0.0
  %436 = vmatpush2.msra.mxu0 0.0
  %437 = vmatprep.subr.mxu0 0.0
  %438 = vmatpush2.msra.mxu0 0.0
  %439 = vmatprep.subr.mxu0 0.0
  %440 = vmatpush2.msra.mxu0 0.0
  %441 = vmatprep.subr.mxu0 0.0
  %442 = vmatpush2.msra.mxu0 0.0
  %443 = vmatprep.subr.mxu0 0.0
  %444 = vmatpush2.msra.mxu0 0.0
  %445 = vmatprep.subr.mxu0 0.0
  %446 = vmatpush2.msra.mxu0 0.0
  %447 = vmatprep.subr.mxu0 0.0
  %448 = vmatpush2.msra.mxu0 0.0
  %449 = vmatprep.mubr.f32.mxu0 0.0
  %450 = vmatmul.mubr.f32.gmra.mxu0 %v52
  %v451 = vpop.f32.mrf.mxu0
  %v452 = vadd.f32 %v383, %v451
  %v453 = vpop.f32.mrf.mxu0
  %454 = vmatprep.mubr.f32.mxu0 0.0
  %455 = vmatmul.mubr.f32.gmra.mxu0 %v55
  %v456 = vpop.f32.mrf.mxu0
  %v457 = vadd.f32 %v383, %v456
  %v458 = vpop.f32.mrf.mxu0
  %459 = vmatprep.mubr.f32.mxu0 0.0
  %460 = vmatmul.mubr.f32.gmra.mxu0 %v58
  %v461 = vpop.f32.mrf.mxu0
  %v462 = vadd.f32 %v383, %v461
  %v463 = vpop.f32.mrf.mxu0
  %464 = vmatprep.mubr.f32.mxu0 0.0
  %465 = vmatmul.mubr.f32.gmra.mxu0 %v61
  %v466 = vpop.f32.mrf.mxu0
  %v467 = vadd.f32 %v383, %v466
  %v468 = vpop.f32.mrf.mxu0
  %469 = vmatprep.mubr.f32.mxu0 0.0
  %470 = vmatmul.mubr.f32.gmra.mxu0 %v64
  %v471 = vpop.f32.mrf.mxu0
  %v472 = vadd.f32 %v383, %v471
  %v473 = vpop.f32.mrf.mxu0
  %474 = vmatprep.mubr.f32.mxu0 0.0
  %475 = vmatmul.mubr.f32.gmra.mxu0 %v67
  %v476 = vpop.f32.mrf.mxu0
  %v477 = vadd.f32 %v383, %v476
  %v478 = vpop.f32.mrf.mxu0
  %479 = vmatprep.mubr.f32.mxu0 0.0
  %480 = vmatmul.mubr.f32.gmra.mxu0 %v70
  %v481 = vpop.f32.mrf.mxu0
  %v482 = vadd.f32 %v383, %v481
  %v483 = vpop.f32.mrf.mxu0
  %484 = vmatprep.mubr.f32.mxu0 0.0
  %485 = vmatmul.mubr.f32.gmra.mxu0 %v73
  %v486 = vpop.f32.mrf.mxu0
  %v487 = vadd.f32 %v383, %v486
  %v488 = vpop.f32.mrf.mxu0
  %489 = vmatprep.mubr.f32.mxu0 0.0
  %490 = vmatmul.mubr.f32.gmra.mxu0 %v76
  %v491 = vpop.f32.mrf.mxu0
  %v492 = vadd.f32 %v383, %v491
  %v493 = vpop.f32.mrf.mxu0
  %494 = vmatprep.mubr.f32.mxu0 0.0
  %495 = vmatmul.mubr.f32.gmra.mxu0 %v79
  %v496 = vpop.f32.mrf.mxu0
  %v497 = vadd.f32 %v383, %v496
  %v498 = vpop.f32.mrf.mxu0
  %499 = vmatprep.mubr.f32.mxu0 0.0
  %500 = vmatmul.mubr.f32.gmra.mxu0 %v82
  %v501 = vpop.f32.mrf.mxu0
  %v502 = vadd.f32 %v383, %v501
  %v503 = vpop.f32.mrf.mxu0
  %504 = vmatprep.mubr.f32.mxu0 0.0
  %505 = vmatmul.mubr.f32.gmra.mxu0 %v85
  %v506 = vpop.f32.mrf.mxu0
  %v507 = vadd.f32 %v383, %v506
  %v508 = vpop.f32.mrf.mxu0
  %509 = vdwg.mxu0
  %s510 = scalar_lea.vmem [#allocation2], 192
  %511 = vst.msk [vmem:[%s510] sm:$0xff] %vm212, %v452
  %512 = vst.msk [vmem:[%s510 + $0x8] sm:$0xff] %vm212, %v457
  %513 = vst.msk [vmem:[%s510 + $0x10] sm:$0xff] %vm212, %v462
  %514 = vst.msk [vmem:[%s510 + $0x18] sm:$0xff] %vm212, %v467
  %515 = vst.msk [vmem:[%s510 + $0x20] sm:$0xff] %vm212, %v472
  %516 = vst.msk [vmem:[%s510 + $0x28] sm:$0xff] %vm212, %v477
  %517 = vst.msk [vmem:[%s510 + $0x30] sm:$0xff] %vm212, %v482
  %518 = vst.msk [vmem:[%s510 + $0x38] sm:$0xff] %vm212, %v487
  %519 = vst.msk [vmem:[%s510 + $0x40] sm:$0xff] %vm212, %v492
  %520 = vst.msk [vmem:[%s510 + $0x48] sm:$0xff] %vm212, %v497
  %521 = vst.msk [vmem:[%s510 + $0x50] sm:$0xff] %vm212, %v502
  %522 = vst.msk [vmem:[%s510 + $0x58] sm:$0xff] %vm212, %v507
  %v523 = vld [vmem:[%s3] sm:$0xff]
  %v524 = vld [vmem:[%s3 + $0x8] sm:$0xff]
  %v525 = vld [vmem:[%s3 + $0x10] sm:$0xff]
  %v526 = vld [vmem:[%s3 + $0x18] sm:$0xff]
  %s527 = scalar_lea.vmem %s3, 32
  %v528 = vld [vmem:[%s527] sm:$0xff]
  %v529 = vld [vmem:[%s527 + $0x8] sm:$0xff]
  %v530 = vld [vmem:[%s527 + $0x10] sm:$0xff]
  %v531 = vld [vmem:[%s527 + $0x18] sm:$0xff]
  %s532 = scalar_lea.vmem %s3, 64
  %v533 = vld [vmem:[%s532] sm:$0xff]
  %v534 = vld [vmem:[%s532 + $0x8] sm:$0xff]
  %v535 = vld [vmem:[%s532 + $0x10] sm:$0xff]
  %v536 = vld [vmem:[%s532 + $0x18] sm:$0xff]
  %v537 = vld [vmem:[%s5] sm:$0x1]
  %v538 = vld [vmem:[#allocation2] sm:$0xff]
  %v539 = vld [vmem:[%s361] sm:$0xff]
  %v540 = vld [vmem:[%s510] sm:$0xff]
  %v542 = vsel %vm212, 0.0, 0
  %544 = vmatprep.subr.mxu0 0.0
  %545 = vmatpush1.msra.mxu0 0.0
  %546 = vmatprep.subr.mxu0 0.0
  %547 = vmatpush1.msra.mxu0 0.0
  %548 = vmatprep.subr.mxu0 0.0
  %549 = vmatpush1.msra.mxu0 0.0
  %550 = vmatprep.subr.mxu0 0.0
  %551 = vmatpush1.msra.mxu0 0.0
  %552 = vmatprep.subr.mxu0 0.0
  %553 = vmatpush1.msra.mxu0 0.0
  %554 = vmatprep.subr.mxu0 0.0
  %555 = vmatpush1.msra.mxu0 0.0
  %556 = vmatprep.subr.mxu0 0.0
  %557 = vmatpush1.msra.mxu0 0.0
  %558 = vmatprep.subr.mxu0 0.0
  %559 = vmatpush1.msra.mxu0 0.0
  %560 = vmatprep.subr.mxu0 0.0
  %561 = vmatpush1.msra.mxu0 0.0
  %562 = vmatprep.subr.mxu0 0.0
  %563 = vmatpush1.msra.mxu0 0.0
  %564 = vmatprep.subr.mxu0 0.0
  %565 = vmatpush1.msra.mxu0 0.0
  %566 = vmatprep.subr.mxu0 0.0
  %567 = vmatpush1.msra.mxu0 0.0
  %568 = vmatprep.subr.mxu0 0.0
  %569 = vmatpush1.msra.mxu0 %v526
  %570 = vmatprep.subr.mxu0 0.0
  %571 = vmatpush1.msra.mxu0 %v525
  %572 = vmatprep.subr.mxu0 0.0
  %573 = vmatpush1.msra.mxu0 %v524
  %574 = vmatprep.subr.mxu0 0.0
  %575 = vmatpush1.msra.mxu0 %v523
  %576 = vmatprep.subr.mxu0 0.0
  %577 = vmatpush2.msra.mxu0 0.0
  %578 = vmatprep.subr.mxu0 0.0
  %579 = vmatpush2.msra.mxu0 0.0
  %580 = vmatprep.subr.mxu0 0.0
  %581 = vmatpush2.msra.mxu0 0.0
  %582 = vmatprep.subr.mxu0 0.0
  %583 = vmatpush2.msra.mxu0 0.0
  %584 = vmatprep.subr.mxu0 0.0
  %585 = vmatpush2.msra.mxu0 0.0
  %586 = vmatprep.subr.mxu0 0.0
  %587 = vmatpush2.msra.mxu0 0.0
  %588 = vmatprep.subr.mxu0 0.0
  %589 = vmatpush2.msra.mxu0 0.0
  %590 = vmatprep.subr.mxu0 0.0
  %591 = vmatpush2.msra.mxu0 0.0
  %592 = vmatprep.subr.mxu0 0.0
  %593 = vmatpush2.msra.mxu0 0.0
  %594 = vmatprep.subr.mxu0 0.0
  %595 = vmatpush2.msra.mxu0 0.0
  %596 = vmatprep.subr.mxu0 0.0
  %597 = vmatpush2.msra.mxu0 0.0
  %598 = vmatprep.subr.mxu0 0.0
  %599 = vmatpush2.msra.mxu0 0.0
  %600 = vmatprep.subr.mxu0 0.0
  %601 = vmatpush2.msra.mxu0 0.0
  %602 = vmatprep.subr.mxu0 0.0
  %603 = vmatpush2.msra.mxu0 0.0
  %604 = vmatprep.subr.mxu0 0.0
  %605 = vmatpush2.msra.mxu0 0.0
  %606 = vmatprep.subr.mxu0 0.0
  %607 = vmatpush2.msra.mxu0 0.0
  %608 = vmatprep.mubr.f32.mxu0 0.0
  %609 = vmatmul.mubr.f32.gmra.mxu0 %v542
  %v610 = vpop.f32.mrf.mxu0
  %v611 = vadd.f32 0.0, %v610
  %v612 = vpop.f32.mrf.mxu0
  %613 = vdwg.mxu0
  %614 = vmatprep.subr.mxu0 0.0
  %615 = vmatpush1.msra.mxu0 0.0
  %616 = vmatprep.subr.mxu0 0.0
  %617 = vmatpush1.msra.mxu0 0.0
  %618 = vmatprep.subr.mxu0 0.0
  %619 = vmatpush1.msra.mxu0 0.0
  %620 = vmatprep.subr.mxu0 0.0
  %621 = vmatpush1.msra.mxu0 0.0
  %622 = vmatprep.subr.mxu0 0.0
  %623 = vmatpush1.msra.mxu0 0.0
  %624 = vmatprep.subr.mxu0 0.0
  %625 = vmatpush1.msra.mxu0 0.0
  %626 = vmatprep.subr.mxu0 0.0
  %627 = vmatpush1.msra.mxu0 0.0
  %628 = vmatprep.subr.mxu0 0.0
  %629 = vmatpush1.msra.mxu0 0.0
  %630 = vmatprep.subr.mxu0 0.0
  %631 = vmatpush1.msra.mxu0 0.0
  %632 = vmatprep.subr.mxu0 0.0
  %633 = vmatpush1.msra.mxu0 0.0
  %634 = vmatprep.subr.mxu0 0.0
  %635 = vmatpush1.msra.mxu0 0.0
  %636 = vmatprep.subr.mxu0 0.0
  %637 = vmatpush1.msra.mxu0 0.0
  %638 = vmatprep.subr.mxu0 0.0
  %639 = vmatpush1.msra.mxu0 %v531
  %640 = vmatprep.subr.mxu0 0.0
  %641 = vmatpush1.msra.mxu0 %v530
  %642 = vmatprep.subr.mxu0 0.0
  %643 = vmatpush1.msra.mxu0 %v529
  %644 = vmatprep.subr.mxu0 0.0
  %645 = vmatpush1.msra.mxu0 %v528
  %646 = vmatprep.subr.mxu0 0.0
  %647 = vmatpush2.msra.mxu0 0.0
  %648 = vmatprep.subr.mxu0 0.0
  %649 = vmatpush2.msra.mxu0 0.0
  %650 = vmatprep.subr.mxu0 0.0
  %651 = vmatpush2.msra.mxu0 0.0
  %652 = vmatprep.subr.mxu0 0.0
  %653 = vmatpush2.msra.mxu0 0.0
  %654 = vmatprep.subr.mxu0 0.0
  %655 = vmatpush2.msra.mxu0 0.0
  %656 = vmatprep.subr.mxu0 0.0
  %657 = vmatpush2.msra.mxu0 0.0
  %658 = vmatprep.subr.mxu0 0.0
  %659 = vmatpush2.msra.mxu0 0.0
  %660 = vmatprep.subr.mxu0 0.0
  %661 = vmatpush2.msra.mxu0 0.0
  %662 = vmatprep.subr.mxu0 0.0
  %663 = vmatpush2.msra.mxu0 0.0
  %664 = vmatprep.subr.mxu0 0.0
  %665 = vmatpush2.msra.mxu0 0.0
  %666 = vmatprep.subr.mxu0 0.0
  %667 = vmatpush2.msra.mxu0 0.0
  %668 = vmatprep.subr.mxu0 0.0
  %669 = vmatpush2.msra.mxu0 0.0
  %670 = vmatprep.subr.mxu0 0.0
  %671 = vmatpush2.msra.mxu0 0.0
  %672 = vmatprep.subr.mxu0 0.0
  %673 = vmatpush2.msra.mxu0 0.0
  %674 = vmatprep.subr.mxu0 0.0
  %675 = vmatpush2.msra.mxu0 0.0
  %676 = vmatprep.subr.mxu0 0.0
  %677 = vmatpush2.msra.mxu0 0.0
  %678 = vmatprep.mubr.f32.mxu0 0.0
  %679 = vmatmul.mubr.f32.gmra.mxu0 %v542
  %v680 = vpop.f32.mrf.mxu0
  %v681 = vadd.f32 0.0, %v680
  %v682 = vpop.f32.mrf.mxu0
  %683 = vdwg.mxu0
  %v685 = vlaneseq
  %v686 = vshrl.u32 %v685, 7
  %v687 = vsub.s32 0, %v686
  %v688 = vrot.slane %v537, %v687
  %690 = vmatprep.subr.mxu0 0.0
  %691 = vmatpush1.msra.mxu0 0.0
  %692 = vmatprep.subr.mxu0 0.0
  %693 = vmatpush1.msra.mxu0 0.0
  %694 = vmatprep.subr.mxu0 0.0
  %695 = vmatpush1.msra.mxu0 0.0
  %696 = vmatprep.subr.mxu0 0.0
  %697 = vmatpush1.msra.mxu0 0.0
  %698 = vmatprep.subr.mxu0 0.0
  %699 = vmatpush1.msra.mxu0 0.0
  %700 = vmatprep.subr.mxu0 0.0
  %701 = vmatpush1.msra.mxu0 0.0
  %702 = vmatprep.subr.mxu0 0.0
  %703 = vmatpush1.msra.mxu0 0.0
  %704 = vmatprep.subr.mxu0 0.0
  %705 = vmatpush1.msra.mxu0 0.0
  %706 = vmatprep.subr.mxu0 0.0
  %707 = vmatpush1.msra.mxu0 0.0
  %708 = vmatprep.subr.mxu0 0.0
  %709 = vmatpush1.msra.mxu0 0.0
  %710 = vmatprep.subr.mxu0 0.0
  %711 = vmatpush1.msra.mxu0 0.0
  %712 = vmatprep.subr.mxu0 0.0
  %713 = vmatpush1.msra.mxu0 0.0
  %714 = vmatprep.subr.mxu0 0.0
  %715 = vmatpush1.msra.mxu0 %v536
  %716 = vmatprep.subr.mxu0 0.0
  %717 = vmatpush1.msra.mxu0 %v535
  %718 = vmatprep.subr.mxu0 0.0
  %719 = vmatpush1.msra.mxu0 %v534
  %720 = vmatprep.subr.mxu0 0.0
  %721 = vmatpush1.msra.mxu0 %v533
  %722 = vmatprep.subr.mxu0 0.0
  %723 = vmatpush2.msra.mxu0 0.0
  %724 = vmatprep.subr.mxu0 0.0
  %725 = vmatpush2.msra.mxu0 0.0
  %726 = vmatprep.subr.mxu0 0.0
  %727 = vmatpush2.msra.mxu0 0.0
  %728 = vmatprep.subr.mxu0 0.0
  %729 = vmatpush2.msra.mxu0 0.0
  %730 = vmatprep.subr.mxu0 0.0
  %731 = vmatpush2.msra.mxu0 0.0
  %732 = vmatprep.subr.mxu0 0.0
  %733 = vmatpush2.msra.mxu0 0.0
  %734 = vmatprep.subr.mxu0 0.0
  %735 = vmatpush2.msra.mxu0 0.0
  %736 = vmatprep.subr.mxu0 0.0
  %737 = vmatpush2.msra.mxu0 0.0
  %738 = vmatprep.subr.mxu0 0.0
  %739 = vmatpush2.msra.mxu0 0.0
  %740 = vmatprep.subr.mxu0 0.0
  %741 = vmatpush2.msra.mxu0 0.0
  %742 = vmatprep.subr.mxu0 0.0
  %743 = vmatpush2.msra.mxu0 0.0
  %744 = vmatprep.subr.mxu0 0.0
  %745 = vmatpush2.msra.mxu0 0.0
  %746 = vmatprep.subr.mxu0 0.0
  %747 = vmatpush2.msra.mxu0 0.0
  %748 = vmatprep.subr.mxu0 0.0
  %749 = vmatpush2.msra.mxu0 0.0
  %750 = vmatprep.subr.mxu0 0.0
  %751 = vmatpush2.msra.mxu0 0.0
  %752 = vmatprep.subr.mxu0 0.0
  %753 = vmatpush2.msra.mxu0 0.0
  %754 = vmatprep.mubr.f32.mxu0 0.0
  %755 = vmatmul.mubr.f32.gmra.mxu0 %v542
  %v756 = vpop.f32.mrf.mxu0
  %v757 = vadd.f32 %v688, %v756
  %v758 = vpop.f32.mrf.mxu0
  %759 = vdwg.mxu0
  %v760 = vadd.f32 %v538, %v611
  %v761 = vxor.u32 %v760, 2147483648
  %v762 = vmul.f32 %v761, 1.442695
  %v763 = vpow.pop %v762
  %v764 = vadd.f32 %v763, 1.0
  %v765 = vrcp.pop %v764
  %v766 = vmul.f32 1.0, %v765
  %v767 = vadd.f32 %v539, %v681
  %v768 = vxor.u32 %v767, 2147483648
  %v769 = vmul.f32 %v768, 1.442695
  %v770 = vpow.pop %v769
  %v771 = vadd.f32 %v770, 1.0
  %v772 = vrcp.pop %v771
  %v773 = vmul.f32 1.0, %v772
  %v774 = vmul.f32 %v766, %v757
  %v775 = vadd.f32 %v540, %v774
  %v776 = vtanh.pop %v775
  %v777 = vsub.f32 0.0, %v776
  %v778 = vmul.f32 %v773, %v777
  %v779 = vadd.f32 %v776, %v778
  %v780 = vld [vmem:[%s1] sm:$0xff]
  %vm781 = vcmp.eq.f32.partialorder %v780, 1.0
  %v782 = vsel %vm781, %v779, 0.0
  %v783 = vld [vmem:[#allocation2 + $0x8] sm:$0xff]
  %v784 = vld [vmem:[%s361 + $0x8] sm:$0xff]
  %v785 = vld [vmem:[%s510 + $0x8] sm:$0xff]
  %v787 = vsel %vm212, %v782, 0
  %789 = vmatprep.subr.mxu0 0.0
  %790 = vmatpush1.msra.mxu0 0.0
  %791 = vmatprep.subr.mxu0 0.0
  %792 = vmatpush1.msra.mxu0 0.0
  %793 = vmatprep.subr.mxu0 0.0
  %794 = vmatpush1.msra.mxu0 0.0
  %795 = vmatprep.subr.mxu0 0.0
  %796 = vmatpush1.msra.mxu0 0.0
  %797 = vmatprep.subr.mxu0 0.0
  %798 = vmatpush1.msra.mxu0 0.0
  %799 = vmatprep.subr.mxu0 0.0
  %800 = vmatpush1.msra.mxu0 0.0
  %801 = vmatprep.subr.mxu0 0.0
  %802 = vmatpush1.msra.mxu0 0.0
  %803 = vmatprep.subr.mxu0 0.0
  %804 = vmatpush1.msra.mxu0 0.0
  %805 = vmatprep.subr.mxu0 0.0
  %806 = vmatpush1.msra.mxu0 0.0
  %807 = vmatprep.subr.mxu0 0.0
  %808 = vmatpush1.msra.mxu0 0.0
  %809 = vmatprep.subr.mxu0 0.0
  %810 = vmatpush1.msra.mxu0 0.0
  %811 = vmatprep.subr.mxu0 0.0
  %812 = vmatpush1.msra.mxu0 0.0
  %813 = vmatprep.subr.mxu0 0.0
  %814 = vmatpush1.msra.mxu0 %v526
  %815 = vmatprep.subr.mxu0 0.0
  %816 = vmatpush1.msra.mxu0 %v525
  %817 = vmatprep.subr.mxu0 0.0
  %818 = vmatpush1.msra.mxu0 %v524
  %819 = vmatprep.subr.mxu0 0.0
  %820 = vmatpush1.msra.mxu0 %v523
  %821 = vmatprep.subr.mxu0 0.0
  %822 = vmatpush2.msra.mxu0 0.0
  %823 = vmatprep.subr.mxu0 0.0
  %824 = vmatpush2.msra.mxu0 0.0
  %825 = vmatprep.subr.mxu0 0.0
  %826 = vmatpush2.msra.mxu0 0.0
  %827 = vmatprep.subr.mxu0 0.0
  %828 = vmatpush2.msra.mxu0 0.0
  %829 = vmatprep.subr.mxu0 0.0
  %830 = vmatpush2.msra.mxu0 0.0
  %831 = vmatprep.subr.mxu0 0.0
  %832 = vmatpush2.msra.mxu0 0.0
  %833 = vmatprep.subr.mxu0 0.0
  %834 = vmatpush2.msra.mxu0 0.0
  %835 = vmatprep.subr.mxu0 0.0
  %836 = vmatpush2.msra.mxu0 0.0
  %837 = vmatprep.subr.mxu0 0.0
  %838 = vmatpush2.msra.mxu0 0.0
  %839 = vmatprep.subr.mxu0 0.0
  %840 = vmatpush2.msra.mxu0 0.0
  %841 = vmatprep.subr.mxu0 0.0
  %842 = vmatpush2.msra.mxu0 0.0
  %843 = vmatprep.subr.mxu0 0.0
  %844 = vmatpush2.msra.mxu0 0.0
  %845 = vmatprep.subr.mxu0 0.0
  %846 = vmatpush2.msra.mxu0 0.0
  %847 = vmatprep.subr.mxu0 0.0
  %848 = vmatpush2.msra.mxu0 0.0
  %849 = vmatprep.subr.mxu0 0.0
  %850 = vmatpush2.msra.mxu0 0.0
  %851 = vmatprep.subr.mxu0 0.0
  %852 = vmatpush2.msra.mxu0 0.0
  %853 = vmatprep.mubr.f32.mxu0 0.0
  %854 = vmatmul.mubr.f32.gmra.mxu0 %v787
  %v855 = vpop.f32.mrf.mxu0
  %v856 = vadd.f32 0.0, %v855
  %v857 = vpop.f32.mrf.mxu0
  %858 = vdwg.mxu0
  %859 = vmatprep.subr.mxu0 0.0
  %860 = vmatpush1.msra.mxu0 0.0
  %861 = vmatprep.subr.mxu0 0.0
  %862 = vmatpush1.msra.mxu0 0.0
  %863 = vmatprep.subr.mxu0 0.0
  %864 = vmatpush1.msra.mxu0 0.0
  %865 = vmatprep.subr.mxu0 0.0
  %866 = vmatpush1.msra.mxu0 0.0
  %867 = vmatprep.subr.mxu0 0.0
  %868 = vmatpush1.msra.mxu0 0.0
  %869 = vmatprep.subr.mxu0 0.0
  %870 = vmatpush1.msra.mxu0 0.0
  %871 = vmatprep.subr.mxu0 0.0
  %872 = vmatpush1.msra.mxu0 0.0
  %873 = vmatprep.subr.mxu0 0.0
  %874 = vmatpush1.msra.mxu0 0.0
  %875 = vmatprep.subr.mxu0 0.0
  %876 = vmatpush1.msra.mxu0 0.0
  %877 = vmatprep.subr.mxu0 0.0
  %878 = vmatpush1.msra.mxu0 0.0
  %879 = vmatprep.subr.mxu0 0.0
  %880 = vmatpush1.msra.mxu0 0.0
  %881 = vmatprep.subr.mxu0 0.0
  %882 = vmatpush1.msra.mxu0 0.0
  %883 = vmatprep.subr.mxu0 0.0
  %884 = vmatpush1.msra.mxu0 %v531
  %885 = vmatprep.subr.mxu0 0.0
  %886 = vmatpush1.msra.mxu0 %v530
  %887 = vmatprep.subr.mxu0 0.0
  %888 = vmatpush1.msra.mxu0 %v529
  %889 = vmatprep.subr.mxu0 0.0
  %890 = vmatpush1.msra.mxu0 %v528
  %891 = vmatprep.subr.mxu0 0.0
  %892 = vmatpush2.msra.mxu0 0.0
  %893 = vmatprep.subr.mxu0 0.0
  %894 = vmatpush2.msra.mxu0 0.0
  %895 = vmatprep.subr.mxu0 0.0
  %896 = vmatpush2.msra.mxu0 0.0
  %897 = vmatprep.subr.mxu0 0.0
  %898 = vmatpush2.msra.mxu0 0.0
  %899 = vmatprep.subr.mxu0 0.0
  %900 = vmatpush2.msra.mxu0 0.0
  %901 = vmatprep.subr.mxu0 0.0
  %902 = vmatpush2.msra.mxu0 0.0
  %903 = vmatprep.subr.mxu0 0.0
  %904 = vmatpush2.msra.mxu0 0.0
  %905 = vmatprep.subr.mxu0 0.0
  %906 = vmatpush2.msra.mxu0 0.0
  %907 = vmatprep.subr.mxu0 0.0
  %908 = vmatpush2.msra.mxu0 0.0
  %909 = vmatprep.subr.mxu0 0.0
  %910 = vmatpush2.msra.mxu0 0.0
  %911 = vmatprep.subr.mxu0 0.0
  %912 = vmatpush2.msra.mxu0 0.0
  %913 = vmatprep.subr.mxu0 0.0
  %914 = vmatpush2.msra.mxu0 0.0
  %915 = vmatprep.subr.mxu0 0.0
  %916 = vmatpush2.msra.mxu0 0.0
  %917 = vmatprep.subr.mxu0 0.0
  %918 = vmatpush2.msra.mxu0 0.0
  %919 = vmatprep.subr.mxu0 0.0
  %920 = vmatpush2.msra.mxu0 0.0
  %921 = vmatprep.subr.mxu0 0.0
  %922 = vmatpush2.msra.mxu0 0.0
  %923 = vmatprep.mubr.f32.mxu0 0.0
  %924 = vmatmul.mubr.f32.gmra.mxu0 %v787
  %v925 = vpop.f32.mrf.mxu0
  %v926 = vadd.f32 0.0, %v925
  %v927 = vpop.f32.mrf.mxu0
  %928 = vdwg.mxu0
  %929 = vmatprep.subr.mxu0 0.0
  %930 = vmatpush1.msra.mxu0 0.0
  %931 = vmatprep.subr.mxu0 0.0
  %932 = vmatpush1.msra.mxu0 0.0
  %933 = vmatprep.subr.mxu0 0.0
  %934 = vmatpush1.msra.mxu0 0.0
  %935 = vmatprep.subr.mxu0 0.0
  %936 = vmatpush1.msra.mxu0 0.0
  %937 = vmatprep.subr.mxu0 0.0
  %938 = vmatpush1.msra.mxu0 0.0
  %939 = vmatprep.subr.mxu0 0.0
  %940 = vmatpush1.msra.mxu0 0.0
  %941 = vmatprep.subr.mxu0 0.0
  %942 = vmatpush1.msra.mxu0 0.0
  %943 = vmatprep.subr.mxu0 0.0
  %944 = vmatpush1.msra.mxu0 0.0
  %945 = vmatprep.subr.mxu0 0.0
  %946 = vmatpush1.msra.mxu0 0.0
  %947 = vmatprep.subr.mxu0 0.0
  %948 = vmatpush1.msra.mxu0 0.0
  %949 = vmatprep.subr.mxu0 0.0
  %950 = vmatpush1.msra.mxu0 0.0
  %951 = vmatprep.subr.mxu0 0.0
  %952 = vmatpush1.msra.mxu0 0.0
  %953 = vmatprep.subr.mxu0 0.0
  %954 = vmatpush1.msra.mxu0 %v536
  %955 = vmatprep.subr.mxu0 0.0
  %956 = vmatpush1.msra.mxu0 %v535
  %957 = vmatprep.subr.mxu0 0.0
  %958 = vmatpush1.msra.mxu0 %v534
  %959 = vmatprep.subr.mxu0 0.0
  %960 = vmatpush1.msra.mxu0 %v533
  %961 = vmatprep.subr.mxu0 0.0
  %962 = vmatpush2.msra.mxu0 0.0
  %963 = vmatprep.subr.mxu0 0.0
  %964 = vmatpush2.msra.mxu0 0.0
  %965 = vmatprep.subr.mxu0 0.0
  %966 = vmatpush2.msra.mxu0 0.0
  %967 = vmatprep.subr.mxu0 0.0
  %968 = vmatpush2.msra.mxu0 0.0
  %969 = vmatprep.subr.mxu0 0.0
  %970 = vmatpush2.msra.mxu0 0.0
  %971 = vmatprep.subr.mxu0 0.0
  %972 = vmatpush2.msra.mxu0 0.0
  %973 = vmatprep.subr.mxu0 0.0
  %974 = vmatpush2.msra.mxu0 0.0
  %975 = vmatprep.subr.mxu0 0.0
  %976 = vmatpush2.msra.mxu0 0.0
  %977 = vmatprep.subr.mxu0 0.0
  %978 = vmatpush2.msra.mxu0 0.0
  %979 = vmatprep.subr.mxu0 0.0
  %980 = vmatpush2.msra.mxu0 0.0
  %981 = vmatprep.subr.mxu0 0.0
  %982 = vmatpush2.msra.mxu0 0.0
  %983 = vmatprep.subr.mxu0 0.0
  %984 = vmatpush2.msra.mxu0 0.0
  %985 = vmatprep.subr.mxu0 0.0
  %986 = vmatpush2.msra.mxu0 0.0
  %987 = vmatprep.subr.mxu0 0.0
  %988 = vmatpush2.msra.mxu0 0.0
  %989 = vmatprep.subr.mxu0 0.0
  %990 = vmatpush2.msra.mxu0 0.0
  %991 = vmatprep.subr.mxu0 0.0
  %992 = vmatpush2.msra.mxu0 0.0
  %993 = vmatprep.mubr.f32.mxu0 0.0
  %994 = vmatmul.mubr.f32.gmra.mxu0 %v787
  %v995 = vpop.f32.mrf.mxu0
  %v996 = vadd.f32 %v688, %v995
  %v997 = vpop.f32.mrf.mxu0
  %998 = vdwg.mxu0
  %v999 = vadd.f32 %v783, %v856
  %v1000 = vxor.u32 %v999, 2147483648
  %v1001 = vmul.f32 %v1000, 1.442695
  %v1002 = vpow.pop %v1001
  %v1003 = vadd.f32 %v1002, 1.0
  %v1004 = vrcp.pop %v1003
  %v1005 = vmul.f32 1.0, %v1004
  %v1006 = vadd.f32 %v784, %v926
  %v1007 = vxor.u32 %v1006, 2147483648
  %v1008 = vmul.f32 %v1007, 1.442695
  %v1009 = vpow.pop %v1008
  %v1010 = vadd.f32 %v1009, 1.0
  %v1011 = vrcp.pop %v1010
  %v1012 = vmul.f32 1.0, %v1011
  %v1013 = vmul.f32 %v1005, %v996
  %v1014 = vadd.f32 %v785, %v1013
  %v1015 = vtanh.pop %v1014
  %v1016 = vsub.f32 %v782, %v1015
  %v1017 = vmul.f32 %v1012, %v1016
  %v1018 = vadd.f32 %v1015, %v1017
  %s1019 = scalar_lea.vmem %s1, 8
  %v1020 = vld [vmem:[%s1019] sm:$0xff]
  %vm1021 = vcmp.eq.f32.partialorder %v1020, 1.0
  %v1022 = vsel %vm1021, %v1018, %v782
  %v1023 = vld [vmem:[#allocation2 + $0x10] sm:$0xff]
  %v1024 = vld [vmem:[%s361 + $0x10] sm:$0xff]
  %v1025 = vld [vmem:[%s510 + $0x10] sm:$0xff]
  %v1027 = vsel %vm212, %v1022, 0
  %1029 = vmatprep.subr.mxu0 0.0
  %1030 = vmatpush1.msra.mxu0 0.0
  %1031 = vmatprep.subr.mxu0 0.0
  %1032 = vmatpush1.msra.mxu0 0.0
  %1033 = vmatprep.subr.mxu0 0.0
  %1034 = vmatpush1.msra.mxu0 0.0
  %1035 = vmatprep.subr.mxu0 0.0
  %1036 = vmatpush1.msra.mxu0 0.0
  %1037 = vmatprep.subr.mxu0 0.0
  %1038 = vmatpush1.msra.mxu0 0.0
  %1039 = vmatprep.subr.mxu0 0.0
  %1040 = vmatpush1.msra.mxu0 0.0
  %1041 = vmatprep.subr.mxu0 0.0
  %1042 = vmatpush1.msra.mxu0 0.0
  %1043 = vmatprep.subr.mxu0 0.0
  %1044 = vmatpush1.msra.mxu0 0.0
  %1045 = vmatprep.subr.mxu0 0.0
  %1046 = vmatpush1.msra.mxu0 0.0
  %1047 = vmatprep.subr.mxu0 0.0
  %1048 = vmatpush1.msra.mxu0 0.0
  %1049 = vmatprep.subr.mxu0 0.0
  %1050 = vmatpush1.msra.mxu0 0.0
  %1051 = vmatprep.subr.mxu0 0.0
  %1052 = vmatpush1.msra.mxu0 0.0
  %1053 = vmatprep.subr.mxu0 0.0
  %1054 = vmatpush1.msra.mxu0 %v526
  %1055 = vmatprep.subr.mxu0 0.0
  %1056 = vmatpush1.msra.mxu0 %v525
  %1057 = vmatprep.subr.mxu0 0.0
  %1058 = vmatpush1.msra.mxu0 %v524
  %1059 = vmatprep.subr.mxu0 0.0
  %1060 = vmatpush1.msra.mxu0 %v523
  %1061 = vmatprep.subr.mxu0 0.0
  %1062 = vmatpush2.msra.mxu0 0.0
  %1063 = vmatprep.subr.mxu0 0.0
  %1064 = vmatpush2.msra.mxu0 0.0
  %1065 = vmatprep.subr.mxu0 0.0
  %1066 = vmatpush2.msra.mxu0 0.0
  %1067 = vmatprep.subr.mxu0 0.0
  %1068 = vmatpush2.msra.mxu0 0.0
  %1069 = vmatprep.subr.mxu0 0.0
  %1070 = vmatpush2.msra.mxu0 0.0
  %1071 = vmatprep.subr.mxu0 0.0
  %1072 = vmatpush2.msra.mxu0 0.0
  %1073 = vmatprep.subr.mxu0 0.0
  %1074 = vmatpush2.msra.mxu0 0.0
  %1075 = vmatprep.subr.mxu0 0.0
  %1076 = vmatpush2.msra.mxu0 0.0
  %1077 = vmatprep.subr.mxu0 0.0
  %1078 = vmatpush2.msra.mxu0 0.0
  %1079 = vmatprep.subr.mxu0 0.0
  %1080 = vmatpush2.msra.mxu0 0.0
  %1081 = vmatprep.subr.mxu0 0.0
  %1082 = vmatpush2.msra.mxu0 0.0
  %1083 = vmatprep.subr.mxu0 0.0
  %1084 = vmatpush2.msra.mxu0 0.0
  %1085 = vmatprep.subr.mxu0 0.0
  %1086 = vmatpush2.msra.mxu0 0.0
  %1087 = vmatprep.subr.mxu0 0.0
  %1088 = vmatpush2.msra.mxu0 0.0
  %1089 = vmatprep.subr.mxu0 0.0
  %1090 = vmatpush2.msra.mxu0 0.0
  %1091 = vmatprep.subr.mxu0 0.0
  %1092 = vmatpush2.msra.mxu0 0.0
  %1093 = vmatprep.mubr.f32.mxu0 0.0
  %1094 = vmatmul.mubr.f32.gmra.mxu0 %v1027
  %v1095 = vpop.f32.mrf.mxu0
  %v1096 = vadd.f32 0.0, %v1095
  %v1097 = vpop.f32.mrf.mxu0
  %1098 = vdwg.mxu0
  %1099 = vmatprep.subr.mxu0 0.0
  %1100 = vmatpush1.msra.mxu0 0.0
  %1101 = vmatprep.subr.mxu0 0.0
  %1102 = vmatpush1.msra.mxu0 0.0
  %1103 = vmatprep.subr.mxu0 0.0
  %1104 = vmatpush1.msra.mxu0 0.0
  %1105 = vmatprep.subr.mxu0 0.0
  %1106 = vmatpush1.msra.mxu0 0.0
  %1107 = vmatprep.subr.mxu0 0.0
  %1108 = vmatpush1.msra.mxu0 0.0
  %1109 = vmatprep.subr.mxu0 0.0
  %1110 = vmatpush1.msra.mxu0 0.0
  %1111 = vmatprep.subr.mxu0 0.0
  %1112 = vmatpush1.msra.mxu0 0.0
  %1113 = vmatprep.subr.mxu0 0.0
  %1114 = vmatpush1.msra.mxu0 0.0
  %1115 = vmatprep.subr.mxu0 0.0
  %1116 = vmatpush1.msra.mxu0 0.0
  %1117 = vmatprep.subr.mxu0 0.0
  %1118 = vmatpush1.msra.mxu0 0.0
  %1119 = vmatprep.subr.mxu0 0.0
  %1120 = vmatpush1.msra.mxu0 0.0
  %1121 = vmatprep.subr.mxu0 0.0
  %1122 = vmatpush1.msra.mxu0 0.0
  %1123 = vmatprep.subr.mxu0 0.0
  %1124 = vmatpush1.msra.mxu0 %v531
  %1125 = vmatprep.subr.mxu0 0.0
  %1126 = vmatpush1.msra.mxu0 %v530
  %1127 = vmatprep.subr.mxu0 0.0
  %1128 = vmatpush1.msra.mxu0 %v529
  %1129 = vmatprep.subr.mxu0 0.0
  %1130 = vmatpush1.msra.mxu0 %v528
  %1131 = vmatprep.subr.mxu0 0.0
  %1132 = vmatpush2.msra.mxu0 0.0
  %1133 = vmatprep.subr.mxu0 0.0
  %1134 = vmatpush2.msra.mxu0 0.0
  %1135 = vmatprep.subr.mxu0 0.0
  %1136 = vmatpush2.msra.mxu0 0.0
  %1137 = vmatprep.subr.mxu0 0.0
  %1138 = vmatpush2.msra.mxu0 0.0
  %1139 = vmatprep.subr.mxu0 0.0
  %1140 = vmatpush2.msra.mxu0 0.0
  %1141 = vmatprep.subr.mxu0 0.0
  %1142 = vmatpush2.msra.mxu0 0.0
  %1143 = vmatprep.subr.mxu0 0.0
  %1144 = vmatpush2.msra.mxu0 0.0
  %1145 = vmatprep.subr.mxu0 0.0
  %1146 = vmatpush2.msra.mxu0 0.0
  %1147 = vmatprep.subr.mxu0 0.0
  %1148 = vmatpush2.msra.mxu0 0.0
  %1149 = vmatprep.subr.mxu0 0.0
  %1150 = vmatpush2.msra.mxu0 0.0
  %1151 = vmatprep.subr.mxu0 0.0
  %1152 = vmatpush2.msra.mxu0 0.0
  %1153 = vmatprep.subr.mxu0 0.0
  %1154 = vmatpush2.msra.mxu0 0.0
  %1155 = vmatprep.subr.mxu0 0.0
  %1156 = vmatpush2.msra.mxu0 0.0
  %1157 = vmatprep.subr.mxu0 0.0
  %1158 = vmatpush2.msra.mxu0 0.0
  %1159 = vmatprep.subr.mxu0 0.0
  %1160 = vmatpush2.msra.mxu0 0.0
  %1161 = vmatprep.subr.mxu0 0.0
  %1162 = vmatpush2.msra.mxu0 0.0
  %1163 = vmatprep.mubr.f32.mxu0 0.0
  %1164 = vmatmul.mubr.f32.gmra.mxu0 %v1027
  %v1165 = vpop.f32.mrf.mxu0
  %v1166 = vadd.f32 0.0, %v1165
  %v1167 = vpop.f32.mrf.mxu0
  %1168 = vdwg.mxu0
  %1169 = vmatprep.subr.mxu0 0.0
  %1170 = vmatpush1.msra.mxu0 0.0
  %1171 = vmatprep.subr.mxu0 0.0
  %1172 = vmatpush1.msra.mxu0 0.0
  %1173 = vmatprep.subr.mxu0 0.0
  %1174 = vmatpush1.msra.mxu0 0.0
  %1175 = vmatprep.subr.mxu0 0.0
  %1176 = vmatpush1.msra.mxu0 0.0
  %1177 = vmatprep.subr.mxu0 0.0
  %1178 = vmatpush1.msra.mxu0 0.0
  %1179 = vmatprep.subr.mxu0 0.0
  %1180 = vmatpush1.msra.mxu0 0.0
  %1181 = vmatprep.subr.mxu0 0.0
  %1182 = vmatpush1.msra.mxu0 0.0
  %1183 = vmatprep.subr.mxu0 0.0
  %1184 = vmatpush1.msra.mxu0 0.0
  %1185 = vmatprep.subr.mxu0 0.0
  %1186 = vmatpush1.msra.mxu0 0.0
  %1187 = vmatprep.subr.mxu0 0.0
  %1188 = vmatpush1.msra.mxu0 0.0
  %1189 = vmatprep.subr.mxu0 0.0
  %1190 = vmatpush1.msra.mxu0 0.0
  %1191 = vmatprep.subr.mxu0 0.0
  %1192 = vmatpush1.msra.mxu0 0.0
  %1193 = vmatprep.subr.mxu0 0.0
  %1194 = vmatpush1.msra.mxu0 %v536
  %1195 = vmatprep.subr.mxu0 0.0
  %1196 = vmatpush1.msra.mxu0 %v535
  %1197 = vmatprep.subr.mxu0 0.0
  %1198 = vmatpush1.msra.mxu0 %v534
  %1199 = vmatprep.subr.mxu0 0.0
  %1200 = vmatpush1.msra.mxu0 %v533
  %1201 = vmatprep.subr.mxu0 0.0
  %1202 = vmatpush2.msra.mxu0 0.0
  %1203 = vmatprep.subr.mxu0 0.0
  %1204 = vmatpush2.msra.mxu0 0.0
  %1205 = vmatprep.subr.mxu0 0.0
  %1206 = vmatpush2.msra.mxu0 0.0
  %1207 = vmatprep.subr.mxu0 0.0
  %1208 = vmatpush2.msra.mxu0 0.0
  %1209 = vmatprep.subr.mxu0 0.0
  %1210 = vmatpush2.msra.mxu0 0.0
  %1211 = vmatprep.subr.mxu0 0.0
  %1212 = vmatpush2.msra.mxu0 0.0
  %1213 = vmatprep.subr.mxu0 0.0
  %1214 = vmatpush2.msra.mxu0 0.0
  %1215 = vmatprep.subr.mxu0 0.0
  %1216 = vmatpush2.msra.mxu0 0.0
  %1217 = vmatprep.subr.mxu0 0.0
  %1218 = vmatpush2.msra.mxu0 0.0
  %1219 = vmatprep.subr.mxu0 0.0
  %1220 = vmatpush2.msra.mxu0 0.0
  %1221 = vmatprep.subr.mxu0 0.0
  %1222 = vmatpush2.msra.mxu0 0.0
  %1223 = vmatprep.subr.mxu0 0.0
  %1224 = vmatpush2.msra.mxu0 0.0
  %1225 = vmatprep.subr.mxu0 0.0
  %1226 = vmatpush2.msra.mxu0 0.0
  %1227 = vmatprep.subr.mxu0 0.0
  %1228 = vmatpush2.msra.mxu0 0.0
  %1229 = vmatprep.subr.mxu0 0.0
  %1230 = vmatpush2.msra.mxu0 0.0
  %1231 = vmatprep.subr.mxu0 0.0
  %1232 = vmatpush2.msra.mxu0 0.0
  %1233 = vmatprep.mubr.f32.mxu0 0.0
  %1234 = vmatmul.mubr.f32.gmra.mxu0 %v1027
  %v1235 = vpop.f32.mrf.mxu0
  %v1236 = vadd.f32 %v688, %v1235
  %v1237 = vpop.f32.mrf.mxu0
  %1238 = vdwg.mxu0
  %v1239 = vadd.f32 %v1023, %v1096
  %v1240 = vxor.u32 %v1239, 2147483648
  %v1241 = vmul.f32 %v1240, 1.442695
  %v1242 = vpow.pop %v1241
  %v1243 = vadd.f32 %v1242, 1.0
  %v1244 = vrcp.pop %v1243
  %v1245 = vmul.f32 1.0, %v1244
  %v1246 = vadd.f32 %v1024, %v1166
  %v1247 = vxor.u32 %v1246, 2147483648
  %v1248 = vmul.f32 %v1247, 1.442695
  %v1249 = vpow.pop %v1248
  %v1250 = vadd.f32 %v1249, 1.0
  %v1251 = vrcp.pop %v1250
  %v1252 = vmul.f32 1.0, %v1251
  %v1253 = vmul.f32 %v1245, %v1236
  %v1254 = vadd.f32 %v1025, %v1253
  %v1255 = vtanh.pop %v1254
  %v1256 = vsub.f32 %v1022, %v1255
  %v1257 = vmul.f32 %v1252, %v1256
  %v1258 = vadd.f32 %v1255, %v1257
  %s1259 = scalar_lea.vmem %s1, 16
  %v1260 = vld [vmem:[%s1259] sm:$0xff]
  %vm1261 = vcmp.eq.f32.partialorder %v1260, 1.0
  %v1262 = vsel %vm1261, %v1258, %v1022
  %v1263 = vld [vmem:[#allocation2 + $0x18] sm:$0xff]
  %v1264 = vld [vmem:[%s361 + $0x18] sm:$0xff]
  %v1265 = vld [vmem:[%s510 + $0x18] sm:$0xff]
  %v1267 = vsel %vm212, %v1262, 0
  %1269 = vmatprep.subr.mxu0 0.0
  %1270 = vmatpush1.msra.mxu0 0.0
  %1271 = vmatprep.subr.mxu0 0.0
  %1272 = vmatpush1.msra.mxu0 0.0
  %1273 = vmatprep.subr.mxu0 0.0
  %1274 = vmatpush1.msra.mxu0 0.0
  %1275 = vmatprep.subr.mxu0 0.0
  %1276 = vmatpush1.msra.mxu0 0.0
  %1277 = vmatprep.subr.mxu0 0.0
  %1278 = vmatpush1.msra.mxu0 0.0
  %1279 = vmatprep.subr.mxu0 0.0
  %1280 = vmatpush1.msra.mxu0 0.0
  %1281 = vmatprep.subr.mxu0 0.0
  %1282 = vmatpush1.msra.mxu0 0.0
  %1283 = vmatprep.subr.mxu0 0.0
  %1284 = vmatpush1.msra.mxu0 0.0
  %1285 = vmatprep.subr.mxu0 0.0
  %1286 = vmatpush1.msra.mxu0 0.0
  %1287 = vmatprep.subr.mxu0 0.0
  %1288 = vmatpush1.msra.mxu0 0.0
  %1289 = vmatprep.subr.mxu0 0.0
  %1290 = vmatpush1.msra.mxu0 0.0
  %1291 = vmatprep.subr.mxu0 0.0
  %1292 = vmatpush1.msra.mxu0 0.0
  %1293 = vmatprep.subr.mxu0 0.0
  %1294 = vmatpush1.msra.mxu0 %v526
  %1295 = vmatprep.subr.mxu0 0.0
  %1296 = vmatpush1.msra.mxu0 %v525
  %1297 = vmatprep.subr.mxu0 0.0
  %1298 = vmatpush1.msra.mxu0 %v524
  %1299 = vmatprep.subr.mxu0 0.0
  %1300 = vmatpush1.msra.mxu0 %v523
  %1301 = vmatprep.subr.mxu0 0.0
  %1302 = vmatpush2.msra.mxu0 0.0
  %1303 = vmatprep.subr.mxu0 0.0
  %1304 = vmatpush2.msra.mxu0 0.0
  %1305 = vmatprep.subr.mxu0 0.0
  %1306 = vmatpush2.msra.mxu0 0.0
  %1307 = vmatprep.subr.mxu0 0.0
  %1308 = vmatpush2.msra.mxu0 0.0
  %1309 = vmatprep.subr.mxu0 0.0
  %1310 = vmatpush2.msra.mxu0 0.0
  %1311 = vmatprep.subr.mxu0 0.0
  %1312 = vmatpush2.msra.mxu0 0.0
  %1313 = vmatprep.subr.mxu0 0.0
  %1314 = vmatpush2.msra.mxu0 0.0
  %1315 = vmatprep.subr.mxu0 0.0
  %1316 = vmatpush2.msra.mxu0 0.0
  %1317 = vmatprep.subr.mxu0 0.0
  %1318 = vmatpush2.msra.mxu0 0.0
  %1319 = vmatprep.subr.mxu0 0.0
  %1320 = vmatpush2.msra.mxu0 0.0
  %1321 = vmatprep.subr.mxu0 0.0
  %1322 = vmatpush2.msra.mxu0 0.0
  %1323 = vmatprep.subr.mxu0 0.0
  %1324 = vmatpush2.msra.mxu0 0.0
  %1325 = vmatprep.subr.mxu0 0.0
  %1326 = vmatpush2.msra.mxu0 0.0
  %1327 = vmatprep.subr.mxu0 0.0
  %1328 = vmatpush2.msra.mxu0 0.0
  %1329 = vmatprep.subr.mxu0 0.0
  %1330 = vmatpush2.msra.mxu0 0.0
  %1331 = vmatprep.subr.mxu0 0.0
  %1332 = vmatpush2.msra.mxu0 0.0
  %1333 = vmatprep.mubr.f32.mxu0 0.0
  %1334 = vmatmul.mubr.f32.gmra.mxu0 %v1267
  %v1335 = vpop.f32.mrf.mxu0
  %v1336 = vadd.f32 0.0, %v1335
  %v1337 = vpop.f32.mrf.mxu0
  %1338 = vdwg.mxu0
  %1339 = vmatprep.subr.mxu0 0.0
  %1340 = vmatpush1.msra.mxu0 0.0
  %1341 = vmatprep.subr.mxu0 0.0
  %1342 = vmatpush1.msra.mxu0 0.0
  %1343 = vmatprep.subr.mxu0 0.0
  %1344 = vmatpush1.msra.mxu0 0.0
  %1345 = vmatprep.subr.mxu0 0.0
  %1346 = vmatpush1.msra.mxu0 0.0
  %1347 = vmatprep.subr.mxu0 0.0
  %1348 = vmatpush1.msra.mxu0 0.0
  %1349 = vmatprep.subr.mxu0 0.0
  %1350 = vmatpush1.msra.mxu0 0.0
  %1351 = vmatprep.subr.mxu0 0.0
  %1352 = vmatpush1.msra.mxu0 0.0
  %1353 = vmatprep.subr.mxu0 0.0
  %1354 = vmatpush1.msra.mxu0 0.0
  %1355 = vmatprep.subr.mxu0 0.0
  %1356 = vmatpush1.msra.mxu0 0.0
  %1357 = vmatprep.subr.mxu0 0.0
  %1358 = vmatpush1.msra.mxu0 0.0
  %1359 = vmatprep.subr.mxu0 0.0
  %1360 = vmatpush1.msra.mxu0 0.0
  %1361 = vmatprep.subr.mxu0 0.0
  %1362 = vmatpush1.msra.mxu0 0.0
  %1363 = vmatprep.subr.mxu0 0.0
  %1364 = vmatpush1.msra.mxu0 %v531
  %1365 = vmatprep.subr.mxu0 0.0
  %1366 = vmatpush1.msra.mxu0 %v530
  %1367 = vmatprep.subr.mxu0 0.0
  %1368 = vmatpush1.msra.mxu0 %v529
  %1369 = vmatprep.subr.mxu0 0.0
  %1370 = vmatpush1.msra.mxu0 %v528
  %1371 = vmatprep.subr.mxu0 0.0
  %1372 = vmatpush2.msra.mxu0 0.0
  %1373 = vmatprep.subr.mxu0 0.0
  %1374 = vmatpush2.msra.mxu0 0.0
  %1375 = vmatprep.subr.mxu0 0.0
  %1376 = vmatpush2.msra.mxu0 0.0
  %1377 = vmatprep.subr.mxu0 0.0
  %1378 = vmatpush2.msra.mxu0 0.0
  %1379 = vmatprep.subr.mxu0 0.0
  %1380 = vmatpush2.msra.mxu0 0.0
  %1381 = vmatprep.subr.mxu0 0.0
  %1382 = vmatpush2.msra.mxu0 0.0
  %1383 = vmatprep.subr.mxu0 0.0
  %1384 = vmatpush2.msra.mxu0 0.0
  %1385 = vmatprep.subr.mxu0 0.0
  %1386 = vmatpush2.msra.mxu0 0.0
  %1387 = vmatprep.subr.mxu0 0.0
  %1388 = vmatpush2.msra.mxu0 0.0
  %1389 = vmatprep.subr.mxu0 0.0
  %1390 = vmatpush2.msra.mxu0 0.0
  %1391 = vmatprep.subr.mxu0 0.0
  %1392 = vmatpush2.msra.mxu0 0.0
  %1393 = vmatprep.subr.mxu0 0.0
  %1394 = vmatpush2.msra.mxu0 0.0
  %1395 = vmatprep.subr.mxu0 0.0
  %1396 = vmatpush2.msra.mxu0 0.0
  %1397 = vmatprep.subr.mxu0 0.0
  %1398 = vmatpush2.msra.mxu0 0.0
  %1399 = vmatprep.subr.mxu0 0.0
  %1400 = vmatpush2.msra.mxu0 0.0
  %1401 = vmatprep.subr.mxu0 0.0
  %1402 = vmatpush2.msra.mxu0 0.0
  %1403 = vmatprep.mubr.f32.mxu0 0.0
  %1404 = vmatmul.mubr.f32.gmra.mxu0 %v1267
  %v1405 = vpop.f32.mrf.mxu0
  %v1406 = vadd.f32 0.0, %v1405
  %v1407 = vpop.f32.mrf.mxu0
  %1408 = vdwg.mxu0
  %1409 = vmatprep.subr.mxu0 0.0
  %1410 = vmatpush1.msra.mxu0 0.0
  %1411 = vmatprep.subr.mxu0 0.0
  %1412 = vmatpush1.msra.mxu0 0.0
  %1413 = vmatprep.subr.mxu0 0.0
  %1414 = vmatpush1.msra.mxu0 0.0
  %1415 = vmatprep.subr.mxu0 0.0
  %1416 = vmatpush1.msra.mxu0 0.0
  %1417 = vmatprep.subr.mxu0 0.0
  %1418 = vmatpush1.msra.mxu0 0.0
  %1419 = vmatprep.subr.mxu0 0.0
  %1420 = vmatpush1.msra.mxu0 0.0
  %1421 = vmatprep.subr.mxu0 0.0
  %1422 = vmatpush1.msra.mxu0 0.0
  %1423 = vmatprep.subr.mxu0 0.0
  %1424 = vmatpush1.msra.mxu0 0.0
  %1425 = vmatprep.subr.mxu0 0.0
  %1426 = vmatpush1.msra.mxu0 0.0
  %1427 = vmatprep.subr.mxu0 0.0
  %1428 = vmatpush1.msra.mxu0 0.0
  %1429 = vmatprep.subr.mxu0 0.0
  %1430 = vmatpush1.msra.mxu0 0.0
  %1431 = vmatprep.subr.mxu0 0.0
  %1432 = vmatpush1.msra.mxu0 0.0
  %1433 = vmatprep.subr.mxu0 0.0
  %1434 = vmatpush1.msra.mxu0 %v536
  %1435 = vmatprep.subr.mxu0 0.0
  %1436 = vmatpush1.msra.mxu0 %v535
  %1437 = vmatprep.subr.mxu0 0.0
  %1438 = vmatpush1.msra.mxu0 %v534
  %1439 = vmatprep.subr.mxu0 0.0
  %1440 = vmatpush1.msra.mxu0 %v533
  %1441 = vmatprep.subr.mxu0 0.0
  %1442 = vmatpush2.msra.mxu0 0.0
  %1443 = vmatprep.subr.mxu0 0.0
  %1444 = vmatpush2.msra.mxu0 0.0
  %1445 = vmatprep.subr.mxu0 0.0
  %1446 = vmatpush2.msra.mxu0 0.0
  %1447 = vmatprep.subr.mxu0 0.0
  %1448 = vmatpush2.msra.mxu0 0.0
  %1449 = vmatprep.subr.mxu0 0.0
  %1450 = vmatpush2.msra.mxu0 0.0
  %1451 = vmatprep.subr.mxu0 0.0
  %1452 = vmatpush2.msra.mxu0 0.0
  %1453 = vmatprep.subr.mxu0 0.0
  %1454 = vmatpush2.msra.mxu0 0.0
  %1455 = vmatprep.subr.mxu0 0.0
  %1456 = vmatpush2.msra.mxu0 0.0
  %1457 = vmatprep.subr.mxu0 0.0
  %1458 = vmatpush2.msra.mxu0 0.0
  %1459 = vmatprep.subr.mxu0 0.0
  %1460 = vmatpush2.msra.mxu0 0.0
  %1461 = vmatprep.subr.mxu0 0.0
  %1462 = vmatpush2.msra.mxu0 0.0
  %1463 = vmatprep.subr.mxu0 0.0
  %1464 = vmatpush2.msra.mxu0 0.0
  %1465 = vmatprep.subr.mxu0 0.0
  %1466 = vmatpush2.msra.mxu0 0.0
  %1467 = vmatprep.subr.mxu0 0.0
  %1468 = vmatpush2.msra.mxu0 0.0
  %1469 = vmatprep.subr.mxu0 0.0
  %1470 = vmatpush2.msra.mxu0 0.0
  %1471 = vmatprep.subr.mxu0 0.0
  %1472 = vmatpush2.msra.mxu0 0.0
  %1473 = vmatprep.mubr.f32.mxu0 0.0
  %1474 = vmatmul.mubr.f32.gmra.mxu0 %v1267
  %v1475 = vpop.f32.mrf.mxu0
  %v1476 = vadd.f32 %v688, %v1475
  %v1477 = vpop.f32.mrf.mxu0
  %1478 = vdwg.mxu0
  %v1479 = vadd.f32 %v1263, %v1336
  %v1480 = vxor.u32 %v1479, 2147483648
  %v1481 = vmul.f32 %v1480, 1.442695
  %v1482 = vpow.pop %v1481
  %v1483 = vadd.f32 %v1482, 1.0
  %v1484 = vrcp.pop %v1483
  %v1485 = vmul.f32 1.0, %v1484
  %v1486 = vadd.f32 %v1264, %v1406
  %v1487 = vxor.u32 %v1486, 2147483648
  %v1488 = vmul.f32 %v1487, 1.442695
  %v1489 = vpow.pop %v1488
  %v1490 = vadd.f32 %v1489, 1.0
  %v1491 = vrcp.pop %v1490
  %v1492 = vmul.f32 1.0, %v1491
  %v1493 = vmul.f32 %v1485, %v1476
  %v1494 = vadd.f32 %v1265, %v1493
  %v1495 = vtanh.pop %v1494
  %v1496 = vsub.f32 %v1262, %v1495
  %v1497 = vmul.f32 %v1492, %v1496
  %v1498 = vadd.f32 %v1495, %v1497
  %s1499 = scalar_lea.vmem %s1, 24
  %v1500 = vld [vmem:[%s1499] sm:$0xff]
  %vm1501 = vcmp.eq.f32.partialorder %v1500, 1.0
  %v1502 = vsel %vm1501, %v1498, %v1262
  %v1503 = vld [vmem:[#allocation2 + $0x20] sm:$0xff]
  %v1504 = vld [vmem:[%s361 + $0x20] sm:$0xff]
  %v1505 = vld [vmem:[%s510 + $0x20] sm:$0xff]
  %v1507 = vsel %vm212, %v1502, 0
  %1509 = vmatprep.subr.mxu0 0.0
  %1510 = vmatpush1.msra.mxu0 0.0
  %1511 = vmatprep.subr.mxu0 0.0
  %1512 = vmatpush1.msra.mxu0 0.0
  %1513 = vmatprep.subr.mxu0 0.0
  %1514 = vmatpush1.msra.mxu0 0.0
  %1515 = vmatprep.subr.mxu0 0.0
  %1516 = vmatpush1.msra.mxu0 0.0
  %1517 = vmatprep.subr.mxu0 0.0
  %1518 = vmatpush1.msra.mxu0 0.0
  %1519 = vmatprep.subr.mxu0 0.0
  %1520 = vmatpush1.msra.mxu0 0.0
  %1521 = vmatprep.subr.mxu0 0.0
  %1522 = vmatpush1.msra.mxu0 0.0
  %1523 = vmatprep.subr.mxu0 0.0
  %1524 = vmatpush1.msra.mxu0 0.0
  %1525 = vmatprep.subr.mxu0 0.0
  %1526 = vmatpush1.msra.mxu0 0.0
  %1527 = vmatprep.subr.mxu0 0.0
  %1528 = vmatpush1.msra.mxu0 0.0
  %1529 = vmatprep.subr.mxu0 0.0
  %1530 = vmatpush1.msra.mxu0 0.0
  %1531 = vmatprep.subr.mxu0 0.0
  %1532 = vmatpush1.msra.mxu0 0.0
  %1533 = vmatprep.subr.mxu0 0.0
  %1534 = vmatpush1.msra.mxu0 %v526
  %1535 = vmatprep.subr.mxu0 0.0
  %1536 = vmatpush1.msra.mxu0 %v525
  %1537 = vmatprep.subr.mxu0 0.0
  %1538 = vmatpush1.msra.mxu0 %v524
  %1539 = vmatprep.subr.mxu0 0.0
  %1540 = vmatpush1.msra.mxu0 %v523
  %1541 = vmatprep.subr.mxu0 0.0
  %1542 = vmatpush2.msra.mxu0 0.0
  %1543 = vmatprep.subr.mxu0 0.0
  %1544 = vmatpush2.msra.mxu0 0.0
  %1545 = vmatprep.subr.mxu0 0.0
  %1546 = vmatpush2.msra.mxu0 0.0
  %1547 = vmatprep.subr.mxu0 0.0
  %1548 = vmatpush2.msra.mxu0 0.0
  %1549 = vmatprep.subr.mxu0 0.0
  %1550 = vmatpush2.msra.mxu0 0.0
  %1551 = vmatprep.subr.mxu0 0.0
  %1552 = vmatpush2.msra.mxu0 0.0
  %1553 = vmatprep.subr.mxu0 0.0
  %1554 = vmatpush2.msra.mxu0 0.0
  %1555 = vmatprep.subr.mxu0 0.0
  %1556 = vmatpush2.msra.mxu0 0.0
  %1557 = vmatprep.subr.mxu0 0.0
  %1558 = vmatpush2.msra.mxu0 0.0
  %1559 = vmatprep.subr.mxu0 0.0
  %1560 = vmatpush2.msra.mxu0 0.0
  %1561 = vmatprep.subr.mxu0 0.0
  %1562 = vmatpush2.msra.mxu0 0.0
  %1563 = vmatprep.subr.mxu0 0.0
  %1564 = vmatpush2.msra.mxu0 0.0
  %1565 = vmatprep.subr.mxu0 0.0
  %1566 = vmatpush2.msra.mxu0 0.0
  %1567 = vmatprep.subr.mxu0 0.0
  %1568 = vmatpush2.msra.mxu0 0.0
  %1569 = vmatprep.subr.mxu0 0.0
  %1570 = vmatpush2.msra.mxu0 0.0
  %1571 = vmatprep.subr.mxu0 0.0
  %1572 = vmatpush2.msra.mxu0 0.0
  %1573 = vmatprep.mubr.f32.mxu0 0.0
  %1574 = vmatmul.mubr.f32.gmra.mxu0 %v1507
  %v1575 = vpop.f32.mrf.mxu0
  %v1576 = vadd.f32 0.0, %v1575
  %v1577 = vpop.f32.mrf.mxu0
  %1578 = vdwg.mxu0
  %1579 = vmatprep.subr.mxu0 0.0
  %1580 = vmatpush1.msra.mxu0 0.0
  %1581 = vmatprep.subr.mxu0 0.0
  %1582 = vmatpush1.msra.mxu0 0.0
  %1583 = vmatprep.subr.mxu0 0.0
  %1584 = vmatpush1.msra.mxu0 0.0
  %1585 = vmatprep.subr.mxu0 0.0
  %1586 = vmatpush1.msra.mxu0 0.0
  %1587 = vmatprep.subr.mxu0 0.0
  %1588 = vmatpush1.msra.mxu0 0.0
  %1589 = vmatprep.subr.mxu0 0.0
  %1590 = vmatpush1.msra.mxu0 0.0
  %1591 = vmatprep.subr.mxu0 0.0
  %1592 = vmatpush1.msra.mxu0 0.0
  %1593 = vmatprep.subr.mxu0 0.0
  %1594 = vmatpush1.msra.mxu0 0.0
  %1595 = vmatprep.subr.mxu0 0.0
  %1596 = vmatpush1.msra.mxu0 0.0
  %1597 = vmatprep.subr.mxu0 0.0
  %1598 = vmatpush1.msra.mxu0 0.0
  %1599 = vmatprep.subr.mxu0 0.0
  %1600 = vmatpush1.msra.mxu0 0.0
  %1601 = vmatprep.subr.mxu0 0.0
  %1602 = vmatpush1.msra.mxu0 0.0
  %1603 = vmatprep.subr.mxu0 0.0
  %1604 = vmatpush1.msra.mxu0 %v531
  %1605 = vmatprep.subr.mxu0 0.0
  %1606 = vmatpush1.msra.mxu0 %v530
  %1607 = vmatprep.subr.mxu0 0.0
  %1608 = vmatpush1.msra.mxu0 %v529
  %1609 = vmatprep.subr.mxu0 0.0
  %1610 = vmatpush1.msra.mxu0 %v528
  %1611 = vmatprep.subr.mxu0 0.0
  %1612 = vmatpush2.msra.mxu0 0.0
  %1613 = vmatprep.subr.mxu0 0.0
  %1614 = vmatpush2.msra.mxu0 0.0
  %1615 = vmatprep.subr.mxu0 0.0
  %1616 = vmatpush2.msra.mxu0 0.0
  %1617 = vmatprep.subr.mxu0 0.0
  %1618 = vmatpush2.msra.mxu0 0.0
  %1619 = vmatprep.subr.mxu0 0.0
  %1620 = vmatpush2.msra.mxu0 0.0
  %1621 = vmatprep.subr.mxu0 0.0
  %1622 = vmatpush2.msra.mxu0 0.0
  %1623 = vmatprep.subr.mxu0 0.0
  %1624 = vmatpush2.msra.mxu0 0.0
  %1625 = vmatprep.subr.mxu0 0.0
  %1626 = vmatpush2.msra.mxu0 0.0
  %1627 = vmatprep.subr.mxu0 0.0
  %1628 = vmatpush2.msra.mxu0 0.0
  %1629 = vmatprep.subr.mxu0 0.0
  %1630 = vmatpush2.msra.mxu0 0.0
  %1631 = vmatprep.subr.mxu0 0.0
  %1632 = vmatpush2.msra.mxu0 0.0
  %1633 = vmatprep.subr.mxu0 0.0
  %1634 = vmatpush2.msra.mxu0 0.0
  %1635 = vmatprep.subr.mxu0 0.0
  %1636 = vmatpush2.msra.mxu0 0.0
  %1637 = vmatprep.subr.mxu0 0.0
  %1638 = vmatpush2.msra.mxu0 0.0
  %1639 = vmatprep.subr.mxu0 0.0
  %1640 = vmatpush2.msra.mxu0 0.0
  %1641 = vmatprep.subr.mxu0 0.0
  %1642 = vmatpush2.msra.mxu0 0.0
  %1643 = vmatprep.mubr.f32.mxu0 0.0
  %1644 = vmatmul.mubr.f32.gmra.mxu0 %v1507
  %v1645 = vpop.f32.mrf.mxu0
  %v1646 = vadd.f32 0.0, %v1645
  %v1647 = vpop.f32.mrf.mxu0
  %1648 = vdwg.mxu0
  %1649 = vmatprep.subr.mxu0 0.0
  %1650 = vmatpush1.msra.mxu0 0.0
  %1651 = vmatprep.subr.mxu0 0.0
  %1652 = vmatpush1.msra.mxu0 0.0
  %1653 = vmatprep.subr.mxu0 0.0
  %1654 = vmatpush1.msra.mxu0 0.0
  %1655 = vmatprep.subr.mxu0 0.0
  %1656 = vmatpush1.msra.mxu0 0.0
  %1657 = vmatprep.subr.mxu0 0.0
  %1658 = vmatpush1.msra.mxu0 0.0
  %1659 = vmatprep.subr.mxu0 0.0
  %1660 = vmatpush1.msra.mxu0 0.0
  %1661 = vmatprep.subr.mxu0 0.0
  %1662 = vmatpush1.msra.mxu0 0.0
  %1663 = vmatprep.subr.mxu0 0.0
  %1664 = vmatpush1.msra.mxu0 0.0
  %1665 = vmatprep.subr.mxu0 0.0
  %1666 = vmatpush1.msra.mxu0 0.0
  %1667 = vmatprep.subr.mxu0 0.0
  %1668 = vmatpush1.msra.mxu0 0.0
  %1669 = vmatprep.subr.mxu0 0.0
  %1670 = vmatpush1.msra.mxu0 0.0
  %1671 = vmatprep.subr.mxu0 0.0
  %1672 = vmatpush1.msra.mxu0 0.0
  %1673 = vmatprep.subr.mxu0 0.0
  %1674 = vmatpush1.msra.mxu0 %v536
  %1675 = vmatprep.subr.mxu0 0.0
  %1676 = vmatpush1.msra.mxu0 %v535
  %1677 = vmatprep.subr.mxu0 0.0
  %1678 = vmatpush1.msra.mxu0 %v534
  %1679 = vmatprep.subr.mxu0 0.0
  %1680 = vmatpush1.msra.mxu0 %v533
  %1681 = vmatprep.subr.mxu0 0.0
  %1682 = vmatpush2.msra.mxu0 0.0
  %1683 = vmatprep.subr.mxu0 0.0
  %1684 = vmatpush2.msra.mxu0 0.0
  %1685 = vmatprep.subr.mxu0 0.0
  %1686 = vmatpush2.msra.mxu0 0.0
  %1687 = vmatprep.subr.mxu0 0.0
  %1688 = vmatpush2.msra.mxu0 0.0
  %1689 = vmatprep.subr.mxu0 0.0
  %1690 = vmatpush2.msra.mxu0 0.0
  %1691 = vmatprep.subr.mxu0 0.0
  %1692 = vmatpush2.msra.mxu0 0.0
  %1693 = vmatprep.subr.mxu0 0.0
  %1694 = vmatpush2.msra.mxu0 0.0
  %1695 = vmatprep.subr.mxu0 0.0
  %1696 = vmatpush2.msra.mxu0 0.0
  %1697 = vmatprep.subr.mxu0 0.0
  %1698 = vmatpush2.msra.mxu0 0.0
  %1699 = vmatprep.subr.mxu0 0.0
  %1700 = vmatpush2.msra.mxu0 0.0
  %1701 = vmatprep.subr.mxu0 0.0
  %1702 = vmatpush2.msra.mxu0 0.0
  %1703 = vmatprep.subr.mxu0 0.0
  %1704 = vmatpush2.msra.mxu0 0.0
  %1705 = vmatprep.subr.mxu0 0.0
  %1706 = vmatpush2.msra.mxu0 0.0
  %1707 = vmatprep.subr.mxu0 0.0
  %1708 = vmatpush2.msra.mxu0 0.0
  %1709 = vmatprep.subr.mxu0 0.0
  %1710 = vmatpush2.msra.mxu0 0.0
  %1711 = vmatprep.subr.mxu0 0.0
  %1712 = vmatpush2.msra.mxu0 0.0
  %1713 = vmatprep.mubr.f32.mxu0 0.0
  %1714 = vmatmul.mubr.f32.gmra.mxu0 %v1507
  %v1715 = vpop.f32.mrf.mxu0
  %v1716 = vadd.f32 %v688, %v1715
  %v1717 = vpop.f32.mrf.mxu0
  %1718 = vdwg.mxu0
  %v1719 = vadd.f32 %v1503, %v1576
  %v1720 = vxor.u32 %v1719, 2147483648
  %v1721 = vmul.f32 %v1720, 1.442695
  %v1722 = vpow.pop %v1721
  %v1723 = vadd.f32 %v1722, 1.0
  %v1724 = vrcp.pop %v1723
  %v1725 = vmul.f32 1.0, %v1724
  %v1726 = vadd.f32 %v1504, %v1646
  %v1727 = vxor.u32 %v1726, 2147483648
  %v1728 = vmul.f32 %v1727, 1.442695
  %v1729 = vpow.pop %v1728
  %v1730 = vadd.f32 %v1729, 1.0
  %v1731 = vrcp.pop %v1730
  %v1732 = vmul.f32 1.0, %v1731
  %v1733 = vmul.f32 %v1725, %v1716
  %v1734 = vadd.f32 %v1505, %v1733
  %v1735 = vtanh.pop %v1734
  %v1736 = vsub.f32 %v1502, %v1735
  %v1737 = vmul.f32 %v1732, %v1736
  %v1738 = vadd.f32 %v1735, %v1737
  %s1739 = scalar_lea.vmem %s1, 32
  %v1740 = vld [vmem:[%s1739] sm:$0xff]
  %vm1741 = vcmp.eq.f32.partialorder %v1740, 1.0
  %v1742 = vsel %vm1741, %v1738, %v1502
  %v1743 = vld [vmem:[#allocation2 + $0x28] sm:$0xff]
  %v1744 = vld [vmem:[%s361 + $0x28] sm:$0xff]
  %v1745 = vld [vmem:[%s510 + $0x28] sm:$0xff]
  %v1747 = vsel %vm212, %v1742, 0
  %1749 = vmatprep.subr.mxu0 0.0
  %1750 = vmatpush1.msra.mxu0 0.0
  %1751 = vmatprep.subr.mxu0 0.0
  %1752 = vmatpush1.msra.mxu0 0.0
  %1753 = vmatprep.subr.mxu0 0.0
  %1754 = vmatpush1.msra.mxu0 0.0
  %1755 = vmatprep.subr.mxu0 0.0
  %1756 = vmatpush1.msra.mxu0 0.0
  %1757 = vmatprep.subr.mxu0 0.0
  %1758 = vmatpush1.msra.mxu0 0.0
  %1759 = vmatprep.subr.mxu0 0.0
  %1760 = vmatpush1.msra.mxu0 0.0
  %1761 = vmatprep.subr.mxu0 0.0
  %1762 = vmatpush1.msra.mxu0 0.0
  %1763 = vmatprep.subr.mxu0 0.0
  %1764 = vmatpush1.msra.mxu0 0.0
  %1765 = vmatprep.subr.mxu0 0.0
  %1766 = vmatpush1.msra.mxu0 0.0
  %1767 = vmatprep.subr.mxu0 0.0
  %1768 = vmatpush1.msra.mxu0 0.0
  %1769 = vmatprep.subr.mxu0 0.0
  %1770 = vmatpush1.msra.mxu0 0.0
  %1771 = vmatprep.subr.mxu0 0.0
  %1772 = vmatpush1.msra.mxu0 0.0
  %1773 = vmatprep.subr.mxu0 0.0
  %1774 = vmatpush1.msra.mxu0 %v526
  %1775 = vmatprep.subr.mxu0 0.0
  %1776 = vmatpush1.msra.mxu0 %v525
  %1777 = vmatprep.subr.mxu0 0.0
  %1778 = vmatpush1.msra.mxu0 %v524
  %1779 = vmatprep.subr.mxu0 0.0
  %1780 = vmatpush1.msra.mxu0 %v523
  %1781 = vmatprep.subr.mxu0 0.0
  %1782 = vmatpush2.msra.mxu0 0.0
  %1783 = vmatprep.subr.mxu0 0.0
  %1784 = vmatpush2.msra.mxu0 0.0
  %1785 = vmatprep.subr.mxu0 0.0
  %1786 = vmatpush2.msra.mxu0 0.0
  %1787 = vmatprep.subr.mxu0 0.0
  %1788 = vmatpush2.msra.mxu0 0.0
  %1789 = vmatprep.subr.mxu0 0.0
  %1790 = vmatpush2.msra.mxu0 0.0
  %1791 = vmatprep.subr.mxu0 0.0
  %1792 = vmatpush2.msra.mxu0 0.0
  %1793 = vmatprep.subr.mxu0 0.0
  %1794 = vmatpush2.msra.mxu0 0.0
  %1795 = vmatprep.subr.mxu0 0.0
  %1796 = vmatpush2.msra.mxu0 0.0
  %1797 = vmatprep.subr.mxu0 0.0
  %1798 = vmatpush2.msra.mxu0 0.0
  %1799 = vmatprep.subr.mxu0 0.0
  %1800 = vmatpush2.msra.mxu0 0.0
  %1801 = vmatprep.subr.mxu0 0.0
  %1802 = vmatpush2.msra.mxu0 0.0
  %1803 = vmatprep.subr.mxu0 0.0
  %1804 = vmatpush2.msra.mxu0 0.0
  %1805 = vmatprep.subr.mxu0 0.0
  %1806 = vmatpush2.msra.mxu0 0.0
  %1807 = vmatprep.subr.mxu0 0.0
  %1808 = vmatpush2.msra.mxu0 0.0
  %1809 = vmatprep.subr.mxu0 0.0
  %1810 = vmatpush2.msra.mxu0 0.0
  %1811 = vmatprep.subr.mxu0 0.0
  %1812 = vmatpush2.msra.mxu0 0.0
  %1813 = vmatprep.mubr.f32.mxu0 0.0
  %1814 = vmatmul.mubr.f32.gmra.mxu0 %v1747
  %v1815 = vpop.f32.mrf.mxu0
  %v1816 = vadd.f32 0.0, %v1815
  %v1817 = vpop.f32.mrf.mxu0
  %1818 = vdwg.mxu0
  %1819 = vmatprep.subr.mxu0 0.0
  %1820 = vmatpush1.msra.mxu0 0.0
  %1821 = vmatprep.subr.mxu0 0.0
  %1822 = vmatpush1.msra.mxu0 0.0
  %1823 = vmatprep.subr.mxu0 0.0
  %1824 = vmatpush1.msra.mxu0 0.0
  %1825 = vmatprep.subr.mxu0 0.0
  %1826 = vmatpush1.msra.mxu0 0.0
  %1827 = vmatprep.subr.mxu0 0.0
  %1828 = vmatpush1.msra.mxu0 0.0
  %1829 = vmatprep.subr.mxu0 0.0
  %1830 = vmatpush1.msra.mxu0 0.0
  %1831 = vmatprep.subr.mxu0 0.0
  %1832 = vmatpush1.msra.mxu0 0.0
  %1833 = vmatprep.subr.mxu0 0.0
  %1834 = vmatpush1.msra.mxu0 0.0
  %1835 = vmatprep.subr.mxu0 0.0
  %1836 = vmatpush1.msra.mxu0 0.0
  %1837 = vmatprep.subr.mxu0 0.0
  %1838 = vmatpush1.msra.mxu0 0.0
  %1839 = vmatprep.subr.mxu0 0.0
  %1840 = vmatpush1.msra.mxu0 0.0
  %1841 = vmatprep.subr.mxu0 0.0
  %1842 = vmatpush1.msra.mxu0 0.0
  %1843 = vmatprep.subr.mxu0 0.0
  %1844 = vmatpush1.msra.mxu0 %v531
  %1845 = vmatprep.subr.mxu0 0.0
  %1846 = vmatpush1.msra.mxu0 %v530
  %1847 = vmatprep.subr.mxu0 0.0
  %1848 = vmatpush1.msra.mxu0 %v529
  %1849 = vmatprep.subr.mxu0 0.0
  %1850 = vmatpush1.msra.mxu0 %v528
  %1851 = vmatprep.subr.mxu0 0.0
  %1852 = vmatpush2.msra.mxu0 0.0
  %1853 = vmatprep.subr.mxu0 0.0
  %1854 = vmatpush2.msra.mxu0 0.0
  %1855 = vmatprep.subr.mxu0 0.0
  %1856 = vmatpush2.msra.mxu0 0.0
  %1857 = vmatprep.subr.mxu0 0.0
  %1858 = vmatpush2.msra.mxu0 0.0
  %1859 = vmatprep.subr.mxu0 0.0
  %1860 = vmatpush2.msra.mxu0 0.0
  %1861 = vmatprep.subr.mxu0 0.0
  %1862 = vmatpush2.msra.mxu0 0.0
  %1863 = vmatprep.subr.mxu0 0.0
  %1864 = vmatpush2.msra.mxu0 0.0
  %1865 = vmatprep.subr.mxu0 0.0
  %1866 = vmatpush2.msra.mxu0 0.0
  %1867 = vmatprep.subr.mxu0 0.0
  %1868 = vmatpush2.msra.mxu0 0.0
  %1869 = vmatprep.subr.mxu0 0.0
  %1870 = vmatpush2.msra.mxu0 0.0
  %1871 = vmatprep.subr.mxu0 0.0
  %1872 = vmatpush2.msra.mxu0 0.0
  %1873 = vmatprep.subr.mxu0 0.0
  %1874 = vmatpush2.msra.mxu0 0.0
  %1875 = vmatprep.subr.mxu0 0.0
  %1876 = vmatpush2.msra.mxu0 0.0
  %1877 = vmatprep.subr.mxu0 0.0
  %1878 = vmatpush2.msra.mxu0 0.0
  %1879 = vmatprep.subr.mxu0 0.0
  %1880 = vmatpush2.msra.mxu0 0.0
  %1881 = vmatprep.subr.mxu0 0.0
  %1882 = vmatpush2.msra.mxu0 0.0
  %1883 = vmatprep.mubr.f32.mxu0 0.0
  %1884 = vmatmul.mubr.f32.gmra.mxu0 %v1747
  %v1885 = vpop.f32.mrf.mxu0
  %v1886 = vadd.f32 0.0, %v1885
  %v1887 = vpop.f32.mrf.mxu0
  %1888 = vdwg.mxu0
  %1889 = vmatprep.subr.mxu0 0.0
  %1890 = vmatpush1.msra.mxu0 0.0
  %1891 = vmatprep.subr.mxu0 0.0
  %1892 = vmatpush1.msra.mxu0 0.0
  %1893 = vmatprep.subr.mxu0 0.0
  %1894 = vmatpush1.msra.mxu0 0.0
  %1895 = vmatprep.subr.mxu0 0.0
  %1896 = vmatpush1.msra.mxu0 0.0
  %1897 = vmatprep.subr.mxu0 0.0
  %1898 = vmatpush1.msra.mxu0 0.0
  %1899 = vmatprep.subr.mxu0 0.0
  %1900 = vmatpush1.msra.mxu0 0.0
  %1901 = vmatprep.subr.mxu0 0.0
  %1902 = vmatpush1.msra.mxu0 0.0
  %1903 = vmatprep.subr.mxu0 0.0
  %1904 = vmatpush1.msra.mxu0 0.0
  %1905 = vmatprep.subr.mxu0 0.0
  %1906 = vmatpush1.msra.mxu0 0.0
  %1907 = vmatprep.subr.mxu0 0.0
  %1908 = vmatpush1.msra.mxu0 0.0
  %1909 = vmatprep.subr.mxu0 0.0
  %1910 = vmatpush1.msra.mxu0 0.0
  %1911 = vmatprep.subr.mxu0 0.0
  %1912 = vmatpush1.msra.mxu0 0.0
  %1913 = vmatprep.subr.mxu0 0.0
  %1914 = vmatpush1.msra.mxu0 %v536
  %1915 = vmatprep.subr.mxu0 0.0
  %1916 = vmatpush1.msra.mxu0 %v535
  %1917 = vmatprep.subr.mxu0 0.0
  %1918 = vmatpush1.msra.mxu0 %v534
  %1919 = vmatprep.subr.mxu0 0.0
  %1920 = vmatpush1.msra.mxu0 %v533
  %1921 = vmatprep.subr.mxu0 0.0
  %1922 = vmatpush2.msra.mxu0 0.0
  %1923 = vmatprep.subr.mxu0 0.0
  %1924 = vmatpush2.msra.mxu0 0.0
  %1925 = vmatprep.subr.mxu0 0.0
  %1926 = vmatpush2.msra.mxu0 0.0
  %1927 = vmatprep.subr.mxu0 0.0
  %1928 = vmatpush2.msra.mxu0 0.0
  %1929 = vmatprep.subr.mxu0 0.0
  %1930 = vmatpush2.msra.mxu0 0.0
  %1931 = vmatprep.subr.mxu0 0.0
  %1932 = vmatpush2.msra.mxu0 0.0
  %1933 = vmatprep.subr.mxu0 0.0
  %1934 = vmatpush2.msra.mxu0 0.0
  %1935 = vmatprep.subr.mxu0 0.0
  %1936 = vmatpush2.msra.mxu0 0.0
  %1937 = vmatprep.subr.mxu0 0.0
  %1938 = vmatpush2.msra.mxu0 0.0
  %1939 = vmatprep.subr.mxu0 0.0
  %1940 = vmatpush2.msra.mxu0 0.0
  %1941 = vmatprep.subr.mxu0 0.0
  %1942 = vmatpush2.msra.mxu0 0.0
  %1943 = vmatprep.subr.mxu0 0.0
  %1944 = vmatpush2.msra.mxu0 0.0
  %1945 = vmatprep.subr.mxu0 0.0
  %1946 = vmatpush2.msra.mxu0 0.0
  %1947 = vmatprep.subr.mxu0 0.0
  %1948 = vmatpush2.msra.mxu0 0.0
  %1949 = vmatprep.subr.mxu0 0.0
  %1950 = vmatpush2.msra.mxu0 0.0
  %1951 = vmatprep.subr.mxu0 0.0
  %1952 = vmatpush2.msra.mxu0 0.0
  %1953 = vmatprep.mubr.f32.mxu0 0.0
  %1954 = vmatmul.mubr.f32.gmra.mxu0 %v1747
  %v1955 = vpop.f32.mrf.mxu0
  %v1956 = vadd.f32 %v688, %v1955
  %v1957 = vpop.f32.mrf.mxu0
  %1958 = vdwg.mxu0
  %v1959 = vadd.f32 %v1743, %v1816
  %v1960 = vxor.u32 %v1959, 2147483648
  %v1961 = vmul.f32 %v1960, 1.442695
  %v1962 = vpow.pop %v1961
  %v1963 = vadd.f32 %v1962, 1.0
  %v1964 = vrcp.pop %v1963
  %v1965 = vmul.f32 1.0, %v1964
  %v1966 = vadd.f32 %v1744, %v1886
  %v1967 = vxor.u32 %v1966, 2147483648
  %v1968 = vmul.f32 %v1967, 1.442695
  %v1969 = vpow.pop %v1968
  %v1970 = vadd.f32 %v1969, 1.0
  %v1971 = vrcp.pop %v1970
  %v1972 = vmul.f32 1.0, %v1971
  %v1973 = vmul.f32 %v1965, %v1956
  %v1974 = vadd.f32 %v1745, %v1973
  %v1975 = vtanh.pop %v1974
  %v1976 = vsub.f32 %v1742, %v1975
  %v1977 = vmul.f32 %v1972, %v1976
  %v1978 = vadd.f32 %v1975, %v1977
  %s1979 = scalar_lea.vmem %s1, 40
  %v1980 = vld [vmem:[%s1979] sm:$0xff]
  %vm1981 = vcmp.eq.f32.partialorder %v1980, 1.0
  %v1982 = vsel %vm1981, %v1978, %v1742
  %v1983 = vld [vmem:[#allocation2 + $0x30] sm:$0xff]
  %v1984 = vld [vmem:[%s361 + $0x30] sm:$0xff]
  %v1985 = vld [vmem:[%s510 + $0x30] sm:$0xff]
  %v1987 = vsel %vm212, %v1982, 0
  %1989 = vmatprep.subr.mxu0 0.0
  %1990 = vmatpush1.msra.mxu0 0.0
  %1991 = vmatprep.subr.mxu0 0.0
  %1992 = vmatpush1.msra.mxu0 0.0
  %1993 = vmatprep.subr.mxu0 0.0
  %1994 = vmatpush1.msra.mxu0 0.0
  %1995 = vmatprep.subr.mxu0 0.0
  %1996 = vmatpush1.msra.mxu0 0.0
  %1997 = vmatprep.subr.mxu0 0.0
  %1998 = vmatpush1.msra.mxu0 0.0
  %1999 = vmatprep.subr.mxu0 0.0
  %2000 = vmatpush1.msra.mxu0 0.0
  %2001 = vmatprep.subr.mxu0 0.0
  %2002 = vmatpush1.msra.mxu0 0.0
  %2003 = vmatprep.subr.mxu0 0.0
  %2004 = vmatpush1.msra.mxu0 0.0
  %2005 = vmatprep.subr.mxu0 0.0
  %2006 = vmatpush1.msra.mxu0 0.0
  %2007 = vmatprep.subr.mxu0 0.0
  %2008 = vmatpush1.msra.mxu0 0.0
  %2009 = vmatprep.subr.mxu0 0.0
  %2010 = vmatpush1.msra.mxu0 0.0
  %2011 = vmatprep.subr.mxu0 0.0
  %2012 = vmatpush1.msra.mxu0 0.0
  %2013 = vmatprep.subr.mxu0 0.0
  %2014 = vmatpush1.msra.mxu0 %v526
  %2015 = vmatprep.subr.mxu0 0.0
  %2016 = vmatpush1.msra.mxu0 %v525
  %2017 = vmatprep.subr.mxu0 0.0
  %2018 = vmatpush1.msra.mxu0 %v524
  %2019 = vmatprep.subr.mxu0 0.0
  %2020 = vmatpush1.msra.mxu0 %v523
  %2021 = vmatprep.subr.mxu0 0.0
  %2022 = vmatpush2.msra.mxu0 0.0
  %2023 = vmatprep.subr.mxu0 0.0
  %2024 = vmatpush2.msra.mxu0 0.0
  %2025 = vmatprep.subr.mxu0 0.0
  %2026 = vmatpush2.msra.mxu0 0.0
  %2027 = vmatprep.subr.mxu0 0.0
  %2028 = vmatpush2.msra.mxu0 0.0
  %2029 = vmatprep.subr.mxu0 0.0
  %2030 = vmatpush2.msra.mxu0 0.0
  %2031 = vmatprep.subr.mxu0 0.0
  %2032 = vmatpush2.msra.mxu0 0.0
  %2033 = vmatprep.subr.mxu0 0.0
  %2034 = vmatpush2.msra.mxu0 0.0
  %2035 = vmatprep.subr.mxu0 0.0
  %2036 = vmatpush2.msra.mxu0 0.0
  %2037 = vmatprep.subr.mxu0 0.0
  %2038 = vmatpush2.msra.mxu0 0.0
  %2039 = vmatprep.subr.mxu0 0.0
  %2040 = vmatpush2.msra.mxu0 0.0
  %2041 = vmatprep.subr.mxu0 0.0
  %2042 = vmatpush2.msra.mxu0 0.0
  %2043 = vmatprep.subr.mxu0 0.0
  %2044 = vmatpush2.msra.mxu0 0.0
  %2045 = vmatprep.subr.mxu0 0.0
  %2046 = vmatpush2.msra.mxu0 0.0
  %2047 = vmatprep.subr.mxu0 0.0
  %2048 = vmatpush2.msra.mxu0 0.0
  %2049 = vmatprep.subr.mxu0 0.0
  %2050 = vmatpush2.msra.mxu0 0.0
  %2051 = vmatprep.subr.mxu0 0.0
  %2052 = vmatpush2.msra.mxu0 0.0
  %2053 = vmatprep.mubr.f32.mxu0 0.0
  %2054 = vmatmul.mubr.f32.gmra.mxu0 %v1987
  %v2055 = vpop.f32.mrf.mxu0
  %v2056 = vadd.f32 0.0, %v2055
  %v2057 = vpop.f32.mrf.mxu0
  %2058 = vdwg.mxu0
  %2059 = vmatprep.subr.mxu0 0.0
  %2060 = vmatpush1.msra.mxu0 0.0
  %2061 = vmatprep.subr.mxu0 0.0
  %2062 = vmatpush1.msra.mxu0 0.0
  %2063 = vmatprep.subr.mxu0 0.0
  %2064 = vmatpush1.msra.mxu0 0.0
  %2065 = vmatprep.subr.mxu0 0.0
  %2066 = vmatpush1.msra.mxu0 0.0
  %2067 = vmatprep.subr.mxu0 0.0
  %2068 = vmatpush1.msra.mxu0 0.0
  %2069 = vmatprep.subr.mxu0 0.0
  %2070 = vmatpush1.msra.mxu0 0.0
  %2071 = vmatprep.subr.mxu0 0.0
  %2072 = vmatpush1.msra.mxu0 0.0
  %2073 = vmatprep.subr.mxu0 0.0
  %2074 = vmatpush1.msra.mxu0 0.0
  %2075 = vmatprep.subr.mxu0 0.0
  %2076 = vmatpush1.msra.mxu0 0.0
  %2077 = vmatprep.subr.mxu0 0.0
  %2078 = vmatpush1.msra.mxu0 0.0
  %2079 = vmatprep.subr.mxu0 0.0
  %2080 = vmatpush1.msra.mxu0 0.0
  %2081 = vmatprep.subr.mxu0 0.0
  %2082 = vmatpush1.msra.mxu0 0.0
  %2083 = vmatprep.subr.mxu0 0.0
  %2084 = vmatpush1.msra.mxu0 %v531
  %2085 = vmatprep.subr.mxu0 0.0
  %2086 = vmatpush1.msra.mxu0 %v530
  %2087 = vmatprep.subr.mxu0 0.0
  %2088 = vmatpush1.msra.mxu0 %v529
  %2089 = vmatprep.subr.mxu0 0.0
  %2090 = vmatpush1.msra.mxu0 %v528
  %2091 = vmatprep.subr.mxu0 0.0
  %2092 = vmatpush2.msra.mxu0 0.0
  %2093 = vmatprep.subr.mxu0 0.0
  %2094 = vmatpush2.msra.mxu0 0.0
  %2095 = vmatprep.subr.mxu0 0.0
  %2096 = vmatpush2.msra.mxu0 0.0
  %2097 = vmatprep.subr.mxu0 0.0
  %2098 = vmatpush2.msra.mxu0 0.0
  %2099 = vmatprep.subr.mxu0 0.0
  %2100 = vmatpush2.msra.mxu0 0.0
  %2101 = vmatprep.subr.mxu0 0.0
  %2102 = vmatpush2.msra.mxu0 0.0
  %2103 = vmatprep.subr.mxu0 0.0
  %2104 = vmatpush2.msra.mxu0 0.0
  %2105 = vmatprep.subr.mxu0 0.0
  %2106 = vmatpush2.msra.mxu0 0.0
  %2107 = vmatprep.subr.mxu0 0.0
  %2108 = vmatpush2.msra.mxu0 0.0
  %2109 = vmatprep.subr.mxu0 0.0
  %2110 = vmatpush2.msra.mxu0 0.0
  %2111 = vmatprep.subr.mxu0 0.0
  %2112 = vmatpush2.msra.mxu0 0.0
  %2113 = vmatprep.subr.mxu0 0.0
  %2114 = vmatpush2.msra.mxu0 0.0
  %2115 = vmatprep.subr.mxu0 0.0
  %2116 = vmatpush2.msra.mxu0 0.0
  %2117 = vmatprep.subr.mxu0 0.0
  %2118 = vmatpush2.msra.mxu0 0.0
  %2119 = vmatprep.subr.mxu0 0.0
  %2120 = vmatpush2.msra.mxu0 0.0
  %2121 = vmatprep.subr.mxu0 0.0
  %2122 = vmatpush2.msra.mxu0 0.0
  %2123 = vmatprep.mubr.f32.mxu0 0.0
  %2124 = vmatmul.mubr.f32.gmra.mxu0 %v1987
  %v2125 = vpop.f32.mrf.mxu0
  %v2126 = vadd.f32 0.0, %v2125
  %v2127 = vpop.f32.mrf.mxu0
  %2128 = vdwg.mxu0
  %2129 = vmatprep.subr.mxu0 0.0
  %2130 = vmatpush1.msra.mxu0 0.0
  %2131 = vmatprep.subr.mxu0 0.0
  %2132 = vmatpush1.msra.mxu0 0.0
  %2133 = vmatprep.subr.mxu0 0.0
  %2134 = vmatpush1.msra.mxu0 0.0
  %2135 = vmatprep.subr.mxu0 0.0
  %2136 = vmatpush1.msra.mxu0 0.0
  %2137 = vmatprep.subr.mxu0 0.0
  %2138 = vmatpush1.msra.mxu0 0.0
  %2139 = vmatprep.subr.mxu0 0.0
  %2140 = vmatpush1.msra.mxu0 0.0
  %2141 = vmatprep.subr.mxu0 0.0
  %2142 = vmatpush1.msra.mxu0 0.0
  %2143 = vmatprep.subr.mxu0 0.0
  %2144 = vmatpush1.msra.mxu0 0.0
  %2145 = vmatprep.subr.mxu0 0.0
  %2146 = vmatpush1.msra.mxu0 0.0
  %2147 = vmatprep.subr.mxu0 0.0
  %2148 = vmatpush1.msra.mxu0 0.0
  %2149 = vmatprep.subr.mxu0 0.0
  %2150 = vmatpush1.msra.mxu0 0.0
  %2151 = vmatprep.subr.mxu0 0.0
  %2152 = vmatpush1.msra.mxu0 0.0
  %2153 = vmatprep.subr.mxu0 0.0
  %2154 = vmatpush1.msra.mxu0 %v536
  %2155 = vmatprep.subr.mxu0 0.0
  %2156 = vmatpush1.msra.mxu0 %v535
  %2157 = vmatprep.subr.mxu0 0.0
  %2158 = vmatpush1.msra.mxu0 %v534
  %2159 = vmatprep.subr.mxu0 0.0
  %2160 = vmatpush1.msra.mxu0 %v533
  %2161 = vmatprep.subr.mxu0 0.0
  %2162 = vmatpush2.msra.mxu0 0.0
  %2163 = vmatprep.subr.mxu0 0.0
  %2164 = vmatpush2.msra.mxu0 0.0
  %2165 = vmatprep.subr.mxu0 0.0
  %2166 = vmatpush2.msra.mxu0 0.0
  %2167 = vmatprep.subr.mxu0 0.0
  %2168 = vmatpush2.msra.mxu0 0.0
  %2169 = vmatprep.subr.mxu0 0.0
  %2170 = vmatpush2.msra.mxu0 0.0
  %2171 = vmatprep.subr.mxu0 0.0
  %2172 = vmatpush2.msra.mxu0 0.0
  %2173 = vmatprep.subr.mxu0 0.0
  %2174 = vmatpush2.msra.mxu0 0.0
  %2175 = vmatprep.subr.mxu0 0.0
  %2176 = vmatpush2.msra.mxu0 0.0
  %2177 = vmatprep.subr.mxu0 0.0
  %2178 = vmatpush2.msra.mxu0 0.0
  %2179 = vmatprep.subr.mxu0 0.0
  %2180 = vmatpush2.msra.mxu0 0.0
  %2181 = vmatprep.subr.mxu0 0.0
  %2182 = vmatpush2.msra.mxu0 0.0
  %2183 = vmatprep.subr.mxu0 0.0
  %2184 = vmatpush2.msra.mxu0 0.0
  %2185 = vmatprep.subr.mxu0 0.0
  %2186 = vmatpush2.msra.mxu0 0.0
  %2187 = vmatprep.subr.mxu0 0.0
  %2188 = vmatpush2.msra.mxu0 0.0
  %2189 = vmatprep.subr.mxu0 0.0
  %2190 = vmatpush2.msra.mxu0 0.0
  %2191 = vmatprep.subr.mxu0 0.0
  %2192 = vmatpush2.msra.mxu0 0.0
  %2193 = vmatprep.mubr.f32.mxu0 0.0
  %2194 = vmatmul.mubr.f32.gmra.mxu0 %v1987
  %v2195 = vpop.f32.mrf.mxu0
  %v2196 = vadd.f32 %v688, %v2195
  %v2197 = vpop.f32.mrf.mxu0
  %2198 = vdwg.mxu0
  %v2199 = vadd.f32 %v1983, %v2056
  %v2200 = vxor.u32 %v2199, 2147483648
  %v2201 = vmul.f32 %v2200, 1.442695
  %v2202 = vpow.pop %v2201
  %v2203 = vadd.f32 %v2202, 1.0
  %v2204 = vrcp.pop %v2203
  %v2205 = vmul.f32 1.0, %v2204
  %v2206 = vadd.f32 %v1984, %v2126
  %v2207 = vxor.u32 %v2206, 2147483648
  %v2208 = vmul.f32 %v2207, 1.442695
  %v2209 = vpow.pop %v2208
  %v2210 = vadd.f32 %v2209, 1.0
  %v2211 = vrcp.pop %v2210
  %v2212 = vmul.f32 1.0, %v2211
  %v2213 = vmul.f32 %v2205, %v2196
  %v2214 = vadd.f32 %v1985, %v2213
  %v2215 = vtanh.pop %v2214
  %v2216 = vsub.f32 %v1982, %v2215
  %v2217 = vmul.f32 %v2212, %v2216
  %v2218 = vadd.f32 %v2215, %v2217
  %s2219 = scalar_lea.vmem %s1, 48
  %v2220 = vld [vmem:[%s2219] sm:$0xff]
  %vm2221 = vcmp.eq.f32.partialorder %v2220, 1.0
  %v2222 = vsel %vm2221, %v2218, %v1982
  %v2223 = vld [vmem:[#allocation2 + $0x38] sm:$0xff]
  %v2224 = vld [vmem:[%s361 + $0x38] sm:$0xff]
  %v2225 = vld [vmem:[%s510 + $0x38] sm:$0xff]
  %v2227 = vsel %vm212, %v2222, 0
  %2229 = vmatprep.subr.mxu0 0.0
  %2230 = vmatpush1.msra.mxu0 0.0
  %2231 = vmatprep.subr.mxu0 0.0
  %2232 = vmatpush1.msra.mxu0 0.0
  %2233 = vmatprep.subr.mxu0 0.0
  %2234 = vmatpush1.msra.mxu0 0.0
  %2235 = vmatprep.subr.mxu0 0.0
  %2236 = vmatpush1.msra.mxu0 0.0
  %2237 = vmatprep.subr.mxu0 0.0
  %2238 = vmatpush1.msra.mxu0 0.0
  %2239 = vmatprep.subr.mxu0 0.0
  %2240 = vmatpush1.msra.mxu0 0.0
  %2241 = vmatprep.subr.mxu0 0.0
  %2242 = vmatpush1.msra.mxu0 0.0
  %2243 = vmatprep.subr.mxu0 0.0
  %2244 = vmatpush1.msra.mxu0 0.0
  %2245 = vmatprep.subr.mxu0 0.0
  %2246 = vmatpush1.msra.mxu0 0.0
  %2247 = vmatprep.subr.mxu0 0.0
  %2248 = vmatpush1.msra.mxu0 0.0
  %2249 = vmatprep.subr.mxu0 0.0
  %2250 = vmatpush1.msra.mxu0 0.0
  %2251 = vmatprep.subr.mxu0 0.0
  %2252 = vmatpush1.msra.mxu0 0.0
  %2253 = vmatprep.subr.mxu0 0.0
  %2254 = vmatpush1.msra.mxu0 %v526
  %2255 = vmatprep.subr.mxu0 0.0
  %2256 = vmatpush1.msra.mxu0 %v525
  %2257 = vmatprep.subr.mxu0 0.0
  %2258 = vmatpush1.msra.mxu0 %v524
  %2259 = vmatprep.subr.mxu0 0.0
  %2260 = vmatpush1.msra.mxu0 %v523
  %2261 = vmatprep.subr.mxu0 0.0
  %2262 = vmatpush2.msra.mxu0 0.0
  %2263 = vmatprep.subr.mxu0 0.0
  %2264 = vmatpush2.msra.mxu0 0.0
  %2265 = vmatprep.subr.mxu0 0.0
  %2266 = vmatpush2.msra.mxu0 0.0
  %2267 = vmatprep.subr.mxu0 0.0
  %2268 = vmatpush2.msra.mxu0 0.0
  %2269 = vmatprep.subr.mxu0 0.0
  %2270 = vmatpush2.msra.mxu0 0.0
  %2271 = vmatprep.subr.mxu0 0.0
  %2272 = vmatpush2.msra.mxu0 0.0
  %2273 = vmatprep.subr.mxu0 0.0
  %2274 = vmatpush2.msra.mxu0 0.0
  %2275 = vmatprep.subr.mxu0 0.0
  %2276 = vmatpush2.msra.mxu0 0.0
  %2277 = vmatprep.subr.mxu0 0.0
  %2278 = vmatpush2.msra.mxu0 0.0
  %2279 = vmatprep.subr.mxu0 0.0
  %2280 = vmatpush2.msra.mxu0 0.0
  %2281 = vmatprep.subr.mxu0 0.0
  %2282 = vmatpush2.msra.mxu0 0.0
  %2283 = vmatprep.subr.mxu0 0.0
  %2284 = vmatpush2.msra.mxu0 0.0
  %2285 = vmatprep.subr.mxu0 0.0
  %2286 = vmatpush2.msra.mxu0 0.0
  %2287 = vmatprep.subr.mxu0 0.0
  %2288 = vmatpush2.msra.mxu0 0.0
  %2289 = vmatprep.subr.mxu0 0.0
  %2290 = vmatpush2.msra.mxu0 0.0
  %2291 = vmatprep.subr.mxu0 0.0
  %2292 = vmatpush2.msra.mxu0 0.0
  %2293 = vmatprep.mubr.f32.mxu0 0.0
  %2294 = vmatmul.mubr.f32.gmra.mxu0 %v2227
  %v2295 = vpop.f32.mrf.mxu0
  %v2296 = vadd.f32 0.0, %v2295
  %v2297 = vpop.f32.mrf.mxu0
  %2298 = vdwg.mxu0
  %2299 = vmatprep.subr.mxu0 0.0
  %2300 = vmatpush1.msra.mxu0 0.0
  %2301 = vmatprep.subr.mxu0 0.0
  %2302 = vmatpush1.msra.mxu0 0.0
  %2303 = vmatprep.subr.mxu0 0.0
  %2304 = vmatpush1.msra.mxu0 0.0
  %2305 = vmatprep.subr.mxu0 0.0
  %2306 = vmatpush1.msra.mxu0 0.0
  %2307 = vmatprep.subr.mxu0 0.0
  %2308 = vmatpush1.msra.mxu0 0.0
  %2309 = vmatprep.subr.mxu0 0.0
  %2310 = vmatpush1.msra.mxu0 0.0
  %2311 = vmatprep.subr.mxu0 0.0
  %2312 = vmatpush1.msra.mxu0 0.0
  %2313 = vmatprep.subr.mxu0 0.0
  %2314 = vmatpush1.msra.mxu0 0.0
  %2315 = vmatprep.subr.mxu0 0.0
  %2316 = vmatpush1.msra.mxu0 0.0
  %2317 = vmatprep.subr.mxu0 0.0
  %2318 = vmatpush1.msra.mxu0 0.0
  %2319 = vmatprep.subr.mxu0 0.0
  %2320 = vmatpush1.msra.mxu0 0.0
  %2321 = vmatprep.subr.mxu0 0.0
  %2322 = vmatpush1.msra.mxu0 0.0
  %2323 = vmatprep.subr.mxu0 0.0
  %2324 = vmatpush1.msra.mxu0 %v531
  %2325 = vmatprep.subr.mxu0 0.0
  %2326 = vmatpush1.msra.mxu0 %v530
  %2327 = vmatprep.subr.mxu0 0.0
  %2328 = vmatpush1.msra.mxu0 %v529
  %2329 = vmatprep.subr.mxu0 0.0
  %2330 = vmatpush1.msra.mxu0 %v528
  %2331 = vmatprep.subr.mxu0 0.0
  %2332 = vmatpush2.msra.mxu0 0.0
  %2333 = vmatprep.subr.mxu0 0.0
  %2334 = vmatpush2.msra.mxu0 0.0
  %2335 = vmatprep.subr.mxu0 0.0
  %2336 = vmatpush2.msra.mxu0 0.0
  %2337 = vmatprep.subr.mxu0 0.0
  %2338 = vmatpush2.msra.mxu0 0.0
  %2339 = vmatprep.subr.mxu0 0.0
  %2340 = vmatpush2.msra.mxu0 0.0
  %2341 = vmatprep.subr.mxu0 0.0
  %2342 = vmatpush2.msra.mxu0 0.0
  %2343 = vmatprep.subr.mxu0 0.0
  %2344 = vmatpush2.msra.mxu0 0.0
  %2345 = vmatprep.subr.mxu0 0.0
  %2346 = vmatpush2.msra.mxu0 0.0
  %2347 = vmatprep.subr.mxu0 0.0
  %2348 = vmatpush2.msra.mxu0 0.0
  %2349 = vmatprep.subr.mxu0 0.0
  %2350 = vmatpush2.msra.mxu0 0.0
  %2351 = vmatprep.subr.mxu0 0.0
  %2352 = vmatpush2.msra.mxu0 0.0
  %2353 = vmatprep.subr.mxu0 0.0
  %2354 = vmatpush2.msra.mxu0 0.0
  %2355 = vmatprep.subr.mxu0 0.0
  %2356 = vmatpush2.msra.mxu0 0.0
  %2357 = vmatprep.subr.mxu0 0.0
  %2358 = vmatpush2.msra.mxu0 0.0
  %2359 = vmatprep.subr.mxu0 0.0
  %2360 = vmatpush2.msra.mxu0 0.0
  %2361 = vmatprep.subr.mxu0 0.0
  %2362 = vmatpush2.msra.mxu0 0.0
  %2363 = vmatprep.mubr.f32.mxu0 0.0
  %2364 = vmatmul.mubr.f32.gmra.mxu0 %v2227
  %v2365 = vpop.f32.mrf.mxu0
  %v2366 = vadd.f32 0.0, %v2365
  %v2367 = vpop.f32.mrf.mxu0
  %2368 = vdwg.mxu0
  %2369 = vmatprep.subr.mxu0 0.0
  %2370 = vmatpush1.msra.mxu0 0.0
  %2371 = vmatprep.subr.mxu0 0.0
  %2372 = vmatpush1.msra.mxu0 0.0
  %2373 = vmatprep.subr.mxu0 0.0
  %2374 = vmatpush1.msra.mxu0 0.0
  %2375 = vmatprep.subr.mxu0 0.0
  %2376 = vmatpush1.msra.mxu0 0.0
  %2377 = vmatprep.subr.mxu0 0.0
  %2378 = vmatpush1.msra.mxu0 0.0
  %2379 = vmatprep.subr.mxu0 0.0
  %2380 = vmatpush1.msra.mxu0 0.0
  %2381 = vmatprep.subr.mxu0 0.0
  %2382 = vmatpush1.msra.mxu0 0.0
  %2383 = vmatprep.subr.mxu0 0.0
  %2384 = vmatpush1.msra.mxu0 0.0
  %2385 = vmatprep.subr.mxu0 0.0
  %2386 = vmatpush1.msra.mxu0 0.0
  %2387 = vmatprep.subr.mxu0 0.0
  %2388 = vmatpush1.msra.mxu0 0.0
  %2389 = vmatprep.subr.mxu0 0.0
  %2390 = vmatpush1.msra.mxu0 0.0
  %2391 = vmatprep.subr.mxu0 0.0
  %2392 = vmatpush1.msra.mxu0 0.0
  %2393 = vmatprep.subr.mxu0 0.0
  %2394 = vmatpush1.msra.mxu0 %v536
  %2395 = vmatprep.subr.mxu0 0.0
  %2396 = vmatpush1.msra.mxu0 %v535
  %2397 = vmatprep.subr.mxu0 0.0
  %2398 = vmatpush1.msra.mxu0 %v534
  %2399 = vmatprep.subr.mxu0 0.0
  %2400 = vmatpush1.msra.mxu0 %v533
  %2401 = vmatprep.subr.mxu0 0.0
  %2402 = vmatpush2.msra.mxu0 0.0
  %2403 = vmatprep.subr.mxu0 0.0
  %2404 = vmatpush2.msra.mxu0 0.0
  %2405 = vmatprep.subr.mxu0 0.0
  %2406 = vmatpush2.msra.mxu0 0.0
  %2407 = vmatprep.subr.mxu0 0.0
  %2408 = vmatpush2.msra.mxu0 0.0
  %2409 = vmatprep.subr.mxu0 0.0
  %2410 = vmatpush2.msra.mxu0 0.0
  %2411 = vmatprep.subr.mxu0 0.0
  %2412 = vmatpush2.msra.mxu0 0.0
  %2413 = vmatprep.subr.mxu0 0.0
  %2414 = vmatpush2.msra.mxu0 0.0
  %2415 = vmatprep.subr.mxu0 0.0
  %2416 = vmatpush2.msra.mxu0 0.0
  %2417 = vmatprep.subr.mxu0 0.0
  %2418 = vmatpush2.msra.mxu0 0.0
  %2419 = vmatprep.subr.mxu0 0.0
  %2420 = vmatpush2.msra.mxu0 0.0
  %2421 = vmatprep.subr.mxu0 0.0
  %2422 = vmatpush2.msra.mxu0 0.0
  %2423 = vmatprep.subr.mxu0 0.0
  %2424 = vmatpush2.msra.mxu0 0.0
  %2425 = vmatprep.subr.mxu0 0.0
  %2426 = vmatpush2.msra.mxu0 0.0
  %2427 = vmatprep.subr.mxu0 0.0
  %2428 = vmatpush2.msra.mxu0 0.0
  %2429 = vmatprep.subr.mxu0 0.0
  %2430 = vmatpush2.msra.mxu0 0.0
  %2431 = vmatprep.subr.mxu0 0.0
  %2432 = vmatpush2.msra.mxu0 0.0
  %2433 = vmatprep.mubr.f32.mxu0 0.0
  %2434 = vmatmul.mubr.f32.gmra.mxu0 %v2227
  %v2435 = vpop.f32.mrf.mxu0
  %v2436 = vadd.f32 %v688, %v2435
  %v2437 = vpop.f32.mrf.mxu0
  %2438 = vdwg.mxu0
  %v2439 = vadd.f32 %v2223, %v2296
  %v2440 = vxor.u32 %v2439, 2147483648
  %v2441 = vmul.f32 %v2440, 1.442695
  %v2442 = vpow.pop %v2441
  %v2443 = vadd.f32 %v2442, 1.0
  %v2444 = vrcp.pop %v2443
  %v2445 = vmul.f32 1.0, %v2444
  %v2446 = vadd.f32 %v2224, %v2366
  %v2447 = vxor.u32 %v2446, 2147483648
  %v2448 = vmul.f32 %v2447, 1.442695
  %v2449 = vpow.pop %v2448
  %v2450 = vadd.f32 %v2449, 1.0
  %v2451 = vrcp.pop %v2450
  %v2452 = vmul.f32 1.0, %v2451
  %v2453 = vmul.f32 %v2445, %v2436
  %v2454 = vadd.f32 %v2225, %v2453
  %v2455 = vtanh.pop %v2454
  %v2456 = vsub.f32 %v2222, %v2455
  %v2457 = vmul.f32 %v2452, %v2456
  %v2458 = vadd.f32 %v2455, %v2457
  %s2459 = scalar_lea.vmem %s1, 56
  %v2460 = vld [vmem:[%s2459] sm:$0xff]
  %vm2461 = vcmp.eq.f32.partialorder %v2460, 1.0
  %v2462 = vsel %vm2461, %v2458, %v2222
  %v2463 = vld [vmem:[#allocation2 + $0x40] sm:$0xff]
  %v2464 = vld [vmem:[%s361 + $0x40] sm:$0xff]
  %v2465 = vld [vmem:[%s510 + $0x40] sm:$0xff]
  %v2467 = vsel %vm212, %v2462, 0
  %2469 = vmatprep.subr.mxu0 0.0
  %2470 = vmatpush1.msra.mxu0 0.0
  %2471 = vmatprep.subr.mxu0 0.0
  %2472 = vmatpush1.msra.mxu0 0.0
  %2473 = vmatprep.subr.mxu0 0.0
  %2474 = vmatpush1.msra.mxu0 0.0
  %2475 = vmatprep.subr.mxu0 0.0
  %2476 = vmatpush1.msra.mxu0 0.0
  %2477 = vmatprep.subr.mxu0 0.0
  %2478 = vmatpush1.msra.mxu0 0.0
  %2479 = vmatprep.subr.mxu0 0.0
  %2480 = vmatpush1.msra.mxu0 0.0
  %2481 = vmatprep.subr.mxu0 0.0
  %2482 = vmatpush1.msra.mxu0 0.0
  %2483 = vmatprep.subr.mxu0 0.0
  %2484 = vmatpush1.msra.mxu0 0.0
  %2485 = vmatprep.subr.mxu0 0.0
  %2486 = vmatpush1.msra.mxu0 0.0
  %2487 = vmatprep.subr.mxu0 0.0
  %2488 = vmatpush1.msra.mxu0 0.0
  %2489 = vmatprep.subr.mxu0 0.0
  %2490 = vmatpush1.msra.mxu0 0.0
  %2491 = vmatprep.subr.mxu0 0.0
  %2492 = vmatpush1.msra.mxu0 0.0
  %2493 = vmatprep.subr.mxu0 0.0
  %2494 = vmatpush1.msra.mxu0 %v526
  %2495 = vmatprep.subr.mxu0 0.0
  %2496 = vmatpush1.msra.mxu0 %v525
  %2497 = vmatprep.subr.mxu0 0.0
  %2498 = vmatpush1.msra.mxu0 %v524
  %2499 = vmatprep.subr.mxu0 0.0
  %2500 = vmatpush1.msra.mxu0 %v523
  %2501 = vmatprep.subr.mxu0 0.0
  %2502 = vmatpush2.msra.mxu0 0.0
  %2503 = vmatprep.subr.mxu0 0.0
  %2504 = vmatpush2.msra.mxu0 0.0
  %2505 = vmatprep.subr.mxu0 0.0
  %2506 = vmatpush2.msra.mxu0 0.0
  %2507 = vmatprep.subr.mxu0 0.0
  %2508 = vmatpush2.msra.mxu0 0.0
  %2509 = vmatprep.subr.mxu0 0.0
  %2510 = vmatpush2.msra.mxu0 0.0
  %2511 = vmatprep.subr.mxu0 0.0
  %2512 = vmatpush2.msra.mxu0 0.0
  %2513 = vmatprep.subr.mxu0 0.0
  %2514 = vmatpush2.msra.mxu0 0.0
  %2515 = vmatprep.subr.mxu0 0.0
  %2516 = vmatpush2.msra.mxu0 0.0
  %2517 = vmatprep.subr.mxu0 0.0
  %2518 = vmatpush2.msra.mxu0 0.0
  %2519 = vmatprep.subr.mxu0 0.0
  %2520 = vmatpush2.msra.mxu0 0.0
  %2521 = vmatprep.subr.mxu0 0.0
  %2522 = vmatpush2.msra.mxu0 0.0
  %2523 = vmatprep.subr.mxu0 0.0
  %2524 = vmatpush2.msra.mxu0 0.0
  %2525 = vmatprep.subr.mxu0 0.0
  %2526 = vmatpush2.msra.mxu0 0.0
  %2527 = vmatprep.subr.mxu0 0.0
  %2528 = vmatpush2.msra.mxu0 0.0
  %2529 = vmatprep.subr.mxu0 0.0
  %2530 = vmatpush2.msra.mxu0 0.0
  %2531 = vmatprep.subr.mxu0 0.0
  %2532 = vmatpush2.msra.mxu0 0.0
  %2533 = vmatprep.mubr.f32.mxu0 0.0
  %2534 = vmatmul.mubr.f32.gmra.mxu0 %v2467
  %v2535 = vpop.f32.mrf.mxu0
  %v2536 = vadd.f32 0.0, %v2535
  %v2537 = vpop.f32.mrf.mxu0
  %2538 = vdwg.mxu0
  %2539 = vmatprep.subr.mxu0 0.0
  %2540 = vmatpush1.msra.mxu0 0.0
  %2541 = vmatprep.subr.mxu0 0.0
  %2542 = vmatpush1.msra.mxu0 0.0
  %2543 = vmatprep.subr.mxu0 0.0
  %2544 = vmatpush1.msra.mxu0 0.0
  %2545 = vmatprep.subr.mxu0 0.0
  %2546 = vmatpush1.msra.mxu0 0.0
  %2547 = vmatprep.subr.mxu0 0.0
  %2548 = vmatpush1.msra.mxu0 0.0
  %2549 = vmatprep.subr.mxu0 0.0
  %2550 = vmatpush1.msra.mxu0 0.0
  %2551 = vmatprep.subr.mxu0 0.0
  %2552 = vmatpush1.msra.mxu0 0.0
  %2553 = vmatprep.subr.mxu0 0.0
  %2554 = vmatpush1.msra.mxu0 0.0
  %2555 = vmatprep.subr.mxu0 0.0
  %2556 = vmatpush1.msra.mxu0 0.0
  %2557 = vmatprep.subr.mxu0 0.0
  %2558 = vmatpush1.msra.mxu0 0.0
  %2559 = vmatprep.subr.mxu0 0.0
  %2560 = vmatpush1.msra.mxu0 0.0
  %2561 = vmatprep.subr.mxu0 0.0
  %2562 = vmatpush1.msra.mxu0 0.0
  %2563 = vmatprep.subr.mxu0 0.0
  %2564 = vmatpush1.msra.mxu0 %v531
  %2565 = vmatprep.subr.mxu0 0.0
  %2566 = vmatpush1.msra.mxu0 %v530
  %2567 = vmatprep.subr.mxu0 0.0
  %2568 = vmatpush1.msra.mxu0 %v529
  %2569 = vmatprep.subr.mxu0 0.0
  %2570 = vmatpush1.msra.mxu0 %v528
  %2571 = vmatprep.subr.mxu0 0.0
  %2572 = vmatpush2.msra.mxu0 0.0
  %2573 = vmatprep.subr.mxu0 0.0
  %2574 = vmatpush2.msra.mxu0 0.0
  %2575 = vmatprep.subr.mxu0 0.0
  %2576 = vmatpush2.msra.mxu0 0.0
  %2577 = vmatprep.subr.mxu0 0.0
  %2578 = vmatpush2.msra.mxu0 0.0
  %2579 = vmatprep.subr.mxu0 0.0
  %2580 = vmatpush2.msra.mxu0 0.0
  %2581 = vmatprep.subr.mxu0 0.0
  %2582 = vmatpush2.msra.mxu0 0.0
  %2583 = vmatprep.subr.mxu0 0.0
  %2584 = vmatpush2.msra.mxu0 0.0
  %2585 = vmatprep.subr.mxu0 0.0
  %2586 = vmatpush2.msra.mxu0 0.0
  %2587 = vmatprep.subr.mxu0 0.0
  %2588 = vmatpush2.msra.mxu0 0.0
  %2589 = vmatprep.subr.mxu0 0.0
  %2590 = vmatpush2.msra.mxu0 0.0
  %2591 = vmatprep.subr.mxu0 0.0
  %2592 = vmatpush2.msra.mxu0 0.0
  %2593 = vmatprep.subr.mxu0 0.0
  %2594 = vmatpush2.msra.mxu0 0.0
  %2595 = vmatprep.subr.mxu0 0.0
  %2596 = vmatpush2.msra.mxu0 0.0
  %2597 = vmatprep.subr.mxu0 0.0
  %2598 = vmatpush2.msra.mxu0 0.0
  %2599 = vmatprep.subr.mxu0 0.0
  %2600 = vmatpush2.msra.mxu0 0.0
  %2601 = vmatprep.subr.mxu0 0.0
  %2602 = vmatpush2.msra.mxu0 0.0
  %2603 = vmatprep.mubr.f32.mxu0 0.0
  %2604 = vmatmul.mubr.f32.gmra.mxu0 %v2467
  %v2605 = vpop.f32.mrf.mxu0
  %v2606 = vadd.f32 0.0, %v2605
  %v2607 = vpop.f32.mrf.mxu0
  %2608 = vdwg.mxu0
  %2609 = vmatprep.subr.mxu0 0.0
  %2610 = vmatpush1.msra.mxu0 0.0
  %2611 = vmatprep.subr.mxu0 0.0
  %2612 = vmatpush1.msra.mxu0 0.0
  %2613 = vmatprep.subr.mxu0 0.0
  %2614 = vmatpush1.msra.mxu0 0.0
  %2615 = vmatprep.subr.mxu0 0.0
  %2616 = vmatpush1.msra.mxu0 0.0
  %2617 = vmatprep.subr.mxu0 0.0
  %2618 = vmatpush1.msra.mxu0 0.0
  %2619 = vmatprep.subr.mxu0 0.0
  %2620 = vmatpush1.msra.mxu0 0.0
  %2621 = vmatprep.subr.mxu0 0.0
  %2622 = vmatpush1.msra.mxu0 0.0
  %2623 = vmatprep.subr.mxu0 0.0
  %2624 = vmatpush1.msra.mxu0 0.0
  %2625 = vmatprep.subr.mxu0 0.0
  %2626 = vmatpush1.msra.mxu0 0.0
  %2627 = vmatprep.subr.mxu0 0.0
  %2628 = vmatpush1.msra.mxu0 0.0
  %2629 = vmatprep.subr.mxu0 0.0
  %2630 = vmatpush1.msra.mxu0 0.0
  %2631 = vmatprep.subr.mxu0 0.0
  %2632 = vmatpush1.msra.mxu0 0.0
  %2633 = vmatprep.subr.mxu0 0.0
  %2634 = vmatpush1.msra.mxu0 %v536
  %2635 = vmatprep.subr.mxu0 0.0
  %2636 = vmatpush1.msra.mxu0 %v535
  %2637 = vmatprep.subr.mxu0 0.0
  %2638 = vmatpush1.msra.mxu0 %v534
  %2639 = vmatprep.subr.mxu0 0.0
  %2640 = vmatpush1.msra.mxu0 %v533
  %2641 = vmatprep.subr.mxu0 0.0
  %2642 = vmatpush2.msra.mxu0 0.0
  %2643 = vmatprep.subr.mxu0 0.0
  %2644 = vmatpush2.msra.mxu0 0.0
  %2645 = vmatprep.subr.mxu0 0.0
  %2646 = vmatpush2.msra.mxu0 0.0
  %2647 = vmatprep.subr.mxu0 0.0
  %2648 = vmatpush2.msra.mxu0 0.0
  %2649 = vmatprep.subr.mxu0 0.0
  %2650 = vmatpush2.msra.mxu0 0.0
  %2651 = vmatprep.subr.mxu0 0.0
  %2652 = vmatpush2.msra.mxu0 0.0
  %2653 = vmatprep.subr.mxu0 0.0
  %2654 = vmatpush2.msra.mxu0 0.0
  %2655 = vmatprep.subr.mxu0 0.0
  %2656 = vmatpush2.msra.mxu0 0.0
  %2657 = vmatprep.subr.mxu0 0.0
  %2658 = vmatpush2.msra.mxu0 0.0
  %2659 = vmatprep.subr.mxu0 0.0
  %2660 = vmatpush2.msra.mxu0 0.0
  %2661 = vmatprep.subr.mxu0 0.0
  %2662 = vmatpush2.msra.mxu0 0.0
  %2663 = vmatprep.subr.mxu0 0.0
  %2664 = vmatpush2.msra.mxu0 0.0
  %2665 = vmatprep.subr.mxu0 0.0
  %2666 = vmatpush2.msra.mxu0 0.0
  %2667 = vmatprep.subr.mxu0 0.0
  %2668 = vmatpush2.msra.mxu0 0.0
  %2669 = vmatprep.subr.mxu0 0.0
  %2670 = vmatpush2.msra.mxu0 0.0
  %2671 = vmatprep.subr.mxu0 0.0
  %2672 = vmatpush2.msra.mxu0 0.0
  %2673 = vmatprep.mubr.f32.mxu0 0.0
  %2674 = vmatmul.mubr.f32.gmra.mxu0 %v2467
  %v2675 = vpop.f32.mrf.mxu0
  %v2676 = vadd.f32 %v688, %v2675
  %v2677 = vpop.f32.mrf.mxu0
  %2678 = vdwg.mxu0
  %v2679 = vadd.f32 %v2463, %v2536
  %v2680 = vxor.u32 %v2679, 2147483648
  %v2681 = vmul.f32 %v2680, 1.442695
  %v2682 = vpow.pop %v2681
  %v2683 = vadd.f32 %v2682, 1.0
  %v2684 = vrcp.pop %v2683
  %v2685 = vmul.f32 1.0, %v2684
  %v2686 = vadd.f32 %v2464, %v2606
  %v2687 = vxor.u32 %v2686, 2147483648
  %v2688 = vmul.f32 %v2687, 1.442695
  %v2689 = vpow.pop %v2688
  %v2690 = vadd.f32 %v2689, 1.0
  %v2691 = vrcp.pop %v2690
  %v2692 = vmul.f32 1.0, %v2691
  %v2693 = vmul.f32 %v2685, %v2676
  %v2694 = vadd.f32 %v2465, %v2693
  %v2695 = vtanh.pop %v2694
  %v2696 = vsub.f32 %v2462, %v2695
  %v2697 = vmul.f32 %v2692, %v2696
  %v2698 = vadd.f32 %v2695, %v2697
  %s2699 = scalar_lea.vmem %s1, 64
  %v2700 = vld [vmem:[%s2699] sm:$0xff]
  %vm2701 = vcmp.eq.f32.partialorder %v2700, 1.0
  %v2702 = vsel %vm2701, %v2698, %v2462
  %v2703 = vld [vmem:[#allocation2 + $0x48] sm:$0xff]
  %v2704 = vld [vmem:[%s361 + $0x48] sm:$0xff]
  %v2705 = vld [vmem:[%s510 + $0x48] sm:$0xff]
  %v2707 = vsel %vm212, %v2702, 0
  %2709 = vmatprep.subr.mxu0 0.0
  %2710 = vmatpush1.msra.mxu0 0.0
  %2711 = vmatprep.subr.mxu0 0.0
  %2712 = vmatpush1.msra.mxu0 0.0
  %2713 = vmatprep.subr.mxu0 0.0
  %2714 = vmatpush1.msra.mxu0 0.0
  %2715 = vmatprep.subr.mxu0 0.0
  %2716 = vmatpush1.msra.mxu0 0.0
  %2717 = vmatprep.subr.mxu0 0.0
  %2718 = vmatpush1.msra.mxu0 0.0
  %2719 = vmatprep.subr.mxu0 0.0
  %2720 = vmatpush1.msra.mxu0 0.0
  %2721 = vmatprep.subr.mxu0 0.0
  %2722 = vmatpush1.msra.mxu0 0.0
  %2723 = vmatprep.subr.mxu0 0.0
  %2724 = vmatpush1.msra.mxu0 0.0
  %2725 = vmatprep.subr.mxu0 0.0
  %2726 = vmatpush1.msra.mxu0 0.0
  %2727 = vmatprep.subr.mxu0 0.0
  %2728 = vmatpush1.msra.mxu0 0.0
  %2729 = vmatprep.subr.mxu0 0.0
  %2730 = vmatpush1.msra.mxu0 0.0
  %2731 = vmatprep.subr.mxu0 0.0
  %2732 = vmatpush1.msra.mxu0 0.0
  %2733 = vmatprep.subr.mxu0 0.0
  %2734 = vmatpush1.msra.mxu0 %v526
  %2735 = vmatprep.subr.mxu0 0.0
  %2736 = vmatpush1.msra.mxu0 %v525
  %2737 = vmatprep.subr.mxu0 0.0
  %2738 = vmatpush1.msra.mxu0 %v524
  %2739 = vmatprep.subr.mxu0 0.0
  %2740 = vmatpush1.msra.mxu0 %v523
  %2741 = vmatprep.subr.mxu0 0.0
  %2742 = vmatpush2.msra.mxu0 0.0
  %2743 = vmatprep.subr.mxu0 0.0
  %2744 = vmatpush2.msra.mxu0 0.0
  %2745 = vmatprep.subr.mxu0 0.0
  %2746 = vmatpush2.msra.mxu0 0.0
  %2747 = vmatprep.subr.mxu0 0.0
  %2748 = vmatpush2.msra.mxu0 0.0
  %2749 = vmatprep.subr.mxu0 0.0
  %2750 = vmatpush2.msra.mxu0 0.0
  %2751 = vmatprep.subr.mxu0 0.0
  %2752 = vmatpush2.msra.mxu0 0.0
  %2753 = vmatprep.subr.mxu0 0.0
  %2754 = vmatpush2.msra.mxu0 0.0
  %2755 = vmatprep.subr.mxu0 0.0
  %2756 = vmatpush2.msra.mxu0 0.0
  %2757 = vmatprep.subr.mxu0 0.0
  %2758 = vmatpush2.msra.mxu0 0.0
  %2759 = vmatprep.subr.mxu0 0.0
  %2760 = vmatpush2.msra.mxu0 0.0
  %2761 = vmatprep.subr.mxu0 0.0
  %2762 = vmatpush2.msra.mxu0 0.0
  %2763 = vmatprep.subr.mxu0 0.0
  %2764 = vmatpush2.msra.mxu0 0.0
  %2765 = vmatprep.subr.mxu0 0.0
  %2766 = vmatpush2.msra.mxu0 0.0
  %2767 = vmatprep.subr.mxu0 0.0
  %2768 = vmatpush2.msra.mxu0 0.0
  %2769 = vmatprep.subr.mxu0 0.0
  %2770 = vmatpush2.msra.mxu0 0.0
  %2771 = vmatprep.subr.mxu0 0.0
  %2772 = vmatpush2.msra.mxu0 0.0
  %2773 = vmatprep.mubr.f32.mxu0 0.0
  %2774 = vmatmul.mubr.f32.gmra.mxu0 %v2707
  %v2775 = vpop.f32.mrf.mxu0
  %v2776 = vadd.f32 0.0, %v2775
  %v2777 = vpop.f32.mrf.mxu0
  %2778 = vdwg.mxu0
  %2779 = vmatprep.subr.mxu0 0.0
  %2780 = vmatpush1.msra.mxu0 0.0
  %2781 = vmatprep.subr.mxu0 0.0
  %2782 = vmatpush1.msra.mxu0 0.0
  %2783 = vmatprep.subr.mxu0 0.0
  %2784 = vmatpush1.msra.mxu0 0.0
  %2785 = vmatprep.subr.mxu0 0.0
  %2786 = vmatpush1.msra.mxu0 0.0
  %2787 = vmatprep.subr.mxu0 0.0
  %2788 = vmatpush1.msra.mxu0 0.0
  %2789 = vmatprep.subr.mxu0 0.0
  %2790 = vmatpush1.msra.mxu0 0.0
  %2791 = vmatprep.subr.mxu0 0.0
  %2792 = vmatpush1.msra.mxu0 0.0
  %2793 = vmatprep.subr.mxu0 0.0
  %2794 = vmatpush1.msra.mxu0 0.0
  %2795 = vmatprep.subr.mxu0 0.0
  %2796 = vmatpush1.msra.mxu0 0.0
  %2797 = vmatprep.subr.mxu0 0.0
  %2798 = vmatpush1.msra.mxu0 0.0
  %2799 = vmatprep.subr.mxu0 0.0
  %2800 = vmatpush1.msra.mxu0 0.0
  %2801 = vmatprep.subr.mxu0 0.0
  %2802 = vmatpush1.msra.mxu0 0.0
  %2803 = vmatprep.subr.mxu0 0.0
  %2804 = vmatpush1.msra.mxu0 %v531
  %2805 = vmatprep.subr.mxu0 0.0
  %2806 = vmatpush1.msra.mxu0 %v530
  %2807 = vmatprep.subr.mxu0 0.0
  %2808 = vmatpush1.msra.mxu0 %v529
  %2809 = vmatprep.subr.mxu0 0.0
  %2810 = vmatpush1.msra.mxu0 %v528
  %2811 = vmatprep.subr.mxu0 0.0
  %2812 = vmatpush2.msra.mxu0 0.0
  %2813 = vmatprep.subr.mxu0 0.0
  %2814 = vmatpush2.msra.mxu0 0.0
  %2815 = vmatprep.subr.mxu0 0.0
  %2816 = vmatpush2.msra.mxu0 0.0
  %2817 = vmatprep.subr.mxu0 0.0
  %2818 = vmatpush2.msra.mxu0 0.0
  %2819 = vmatprep.subr.mxu0 0.0
  %2820 = vmatpush2.msra.mxu0 0.0
  %2821 = vmatprep.subr.mxu0 0.0
  %2822 = vmatpush2.msra.mxu0 0.0
  %2823 = vmatprep.subr.mxu0 0.0
  %2824 = vmatpush2.msra.mxu0 0.0
  %2825 = vmatprep.subr.mxu0 0.0
  %2826 = vmatpush2.msra.mxu0 0.0
  %2827 = vmatprep.subr.mxu0 0.0
  %2828 = vmatpush2.msra.mxu0 0.0
  %2829 = vmatprep.subr.mxu0 0.0
  %2830 = vmatpush2.msra.mxu0 0.0
  %2831 = vmatprep.subr.mxu0 0.0
  %2832 = vmatpush2.msra.mxu0 0.0
  %2833 = vmatprep.subr.mxu0 0.0
  %2834 = vmatpush2.msra.mxu0 0.0
  %2835 = vmatprep.subr.mxu0 0.0
  %2836 = vmatpush2.msra.mxu0 0.0
  %2837 = vmatprep.subr.mxu0 0.0
  %2838 = vmatpush2.msra.mxu0 0.0
  %2839 = vmatprep.subr.mxu0 0.0
  %2840 = vmatpush2.msra.mxu0 0.0
  %2841 = vmatprep.subr.mxu0 0.0
  %2842 = vmatpush2.msra.mxu0 0.0
  %2843 = vmatprep.mubr.f32.mxu0 0.0
  %2844 = vmatmul.mubr.f32.gmra.mxu0 %v2707
  %v2845 = vpop.f32.mrf.mxu0
  %v2846 = vadd.f32 0.0, %v2845
  %v2847 = vpop.f32.mrf.mxu0
  %2848 = vdwg.mxu0
  %2849 = vmatprep.subr.mxu0 0.0
  %2850 = vmatpush1.msra.mxu0 0.0
  %2851 = vmatprep.subr.mxu0 0.0
  %2852 = vmatpush1.msra.mxu0 0.0
  %2853 = vmatprep.subr.mxu0 0.0
  %2854 = vmatpush1.msra.mxu0 0.0
  %2855 = vmatprep.subr.mxu0 0.0
  %2856 = vmatpush1.msra.mxu0 0.0
  %2857 = vmatprep.subr.mxu0 0.0
  %2858 = vmatpush1.msra.mxu0 0.0
  %2859 = vmatprep.subr.mxu0 0.0
  %2860 = vmatpush1.msra.mxu0 0.0
  %2861 = vmatprep.subr.mxu0 0.0
  %2862 = vmatpush1.msra.mxu0 0.0
  %2863 = vmatprep.subr.mxu0 0.0
  %2864 = vmatpush1.msra.mxu0 0.0
  %2865 = vmatprep.subr.mxu0 0.0
  %2866 = vmatpush1.msra.mxu0 0.0
  %2867 = vmatprep.subr.mxu0 0.0
  %2868 = vmatpush1.msra.mxu0 0.0
  %2869 = vmatprep.subr.mxu0 0.0
  %2870 = vmatpush1.msra.mxu0 0.0
  %2871 = vmatprep.subr.mxu0 0.0
  %2872 = vmatpush1.msra.mxu0 0.0
  %2873 = vmatprep.subr.mxu0 0.0
  %2874 = vmatpush1.msra.mxu0 %v536
  %2875 = vmatprep.subr.mxu0 0.0
  %2876 = vmatpush1.msra.mxu0 %v535
  %2877 = vmatprep.subr.mxu0 0.0
  %2878 = vmatpush1.msra.mxu0 %v534
  %2879 = vmatprep.subr.mxu0 0.0
  %2880 = vmatpush1.msra.mxu0 %v533
  %2881 = vmatprep.subr.mxu0 0.0
  %2882 = vmatpush2.msra.mxu0 0.0
  %2883 = vmatprep.subr.mxu0 0.0
  %2884 = vmatpush2.msra.mxu0 0.0
  %2885 = vmatprep.subr.mxu0 0.0
  %2886 = vmatpush2.msra.mxu0 0.0
  %2887 = vmatprep.subr.mxu0 0.0
  %2888 = vmatpush2.msra.mxu0 0.0
  %2889 = vmatprep.subr.mxu0 0.0
  %2890 = vmatpush2.msra.mxu0 0.0
  %2891 = vmatprep.subr.mxu0 0.0
  %2892 = vmatpush2.msra.mxu0 0.0
  %2893 = vmatprep.subr.mxu0 0.0
  %2894 = vmatpush2.msra.mxu0 0.0
  %2895 = vmatprep.subr.mxu0 0.0
  %2896 = vmatpush2.msra.mxu0 0.0
  %2897 = vmatprep.subr.mxu0 0.0
  %2898 = vmatpush2.msra.mxu0 0.0
  %2899 = vmatprep.subr.mxu0 0.0
  %2900 = vmatpush2.msra.mxu0 0.0
  %2901 = vmatprep.subr.mxu0 0.0
  %2902 = vmatpush2.msra.mxu0 0.0
  %2903 = vmatprep.subr.mxu0 0.0
  %2904 = vmatpush2.msra.mxu0 0.0
  %2905 = vmatprep.subr.mxu0 0.0
  %2906 = vmatpush2.msra.mxu0 0.0
  %2907 = vmatprep.subr.mxu0 0.0
  %2908 = vmatpush2.msra.mxu0 0.0
  %2909 = vmatprep.subr.mxu0 0.0
  %2910 = vmatpush2.msra.mxu0 0.0
  %2911 = vmatprep.subr.mxu0 0.0
  %2912 = vmatpush2.msra.mxu0 0.0
  %2913 = vmatprep.mubr.f32.mxu0 0.0
  %2914 = vmatmul.mubr.f32.gmra.mxu0 %v2707
  %v2915 = vpop.f32.mrf.mxu0
  %v2916 = vadd.f32 %v688, %v2915
  %v2917 = vpop.f32.mrf.mxu0
  %2918 = vdwg.mxu0
  %v2919 = vadd.f32 %v2703, %v2776
  %v2920 = vxor.u32 %v2919, 2147483648
  %v2921 = vmul.f32 %v2920, 1.442695
  %v2922 = vpow.pop %v2921
  %v2923 = vadd.f32 %v2922, 1.0
  %v2924 = vrcp.pop %v2923
  %v2925 = vmul.f32 1.0, %v2924
  %v2926 = vadd.f32 %v2704, %v2846
  %v2927 = vxor.u32 %v2926, 2147483648
  %v2928 = vmul.f32 %v2927, 1.442695
  %v2929 = vpow.pop %v2928
  %v2930 = vadd.f32 %v2929, 1.0
  %v2931 = vrcp.pop %v2930
  %v2932 = vmul.f32 1.0, %v2931
  %v2933 = vmul.f32 %v2925, %v2916
  %v2934 = vadd.f32 %v2705, %v2933
  %v2935 = vtanh.pop %v2934
  %v2936 = vsub.f32 %v2702, %v2935
  %v2937 = vmul.f32 %v2932, %v2936
  %v2938 = vadd.f32 %v2935, %v2937
  %s2939 = scalar_lea.vmem %s1, 72
  %v2940 = vld [vmem:[%s2939] sm:$0xff]
  %vm2941 = vcmp.eq.f32.partialorder %v2940, 1.0
  %v2942 = vsel %vm2941, %v2938, %v2702
  %v2943 = vld [vmem:[#allocation2 + $0x50] sm:$0xff]
  %v2944 = vld [vmem:[%s361 + $0x50] sm:$0xff]
  %v2945 = vld [vmem:[%s510 + $0x50] sm:$0xff]
  %v2947 = vsel %vm212, %v2942, 0
  %2949 = vmatprep.subr.mxu0 0.0
  %2950 = vmatpush1.msra.mxu0 0.0
  %2951 = vmatprep.subr.mxu0 0.0
  %2952 = vmatpush1.msra.mxu0 0.0
  %2953 = vmatprep.subr.mxu0 0.0
  %2954 = vmatpush1.msra.mxu0 0.0
  %2955 = vmatprep.subr.mxu0 0.0
  %2956 = vmatpush1.msra.mxu0 0.0
  %2957 = vmatprep.subr.mxu0 0.0
  %2958 = vmatpush1.msra.mxu0 0.0
  %2959 = vmatprep.subr.mxu0 0.0
  %2960 = vmatpush1.msra.mxu0 0.0
  %2961 = vmatprep.subr.mxu0 0.0
  %2962 = vmatpush1.msra.mxu0 0.0
  %2963 = vmatprep.subr.mxu0 0.0
  %2964 = vmatpush1.msra.mxu0 0.0
  %2965 = vmatprep.subr.mxu0 0.0
  %2966 = vmatpush1.msra.mxu0 0.0
  %2967 = vmatprep.subr.mxu0 0.0
  %2968 = vmatpush1.msra.mxu0 0.0
  %2969 = vmatprep.subr.mxu0 0.0
  %2970 = vmatpush1.msra.mxu0 0.0
  %2971 = vmatprep.subr.mxu0 0.0
  %2972 = vmatpush1.msra.mxu0 0.0
  %2973 = vmatprep.subr.mxu0 0.0
  %2974 = vmatpush1.msra.mxu0 %v526
  %2975 = vmatprep.subr.mxu0 0.0
  %2976 = vmatpush1.msra.mxu0 %v525
  %2977 = vmatprep.subr.mxu0 0.0
  %2978 = vmatpush1.msra.mxu0 %v524
  %2979 = vmatprep.subr.mxu0 0.0
  %2980 = vmatpush1.msra.mxu0 %v523
  %2981 = vmatprep.subr.mxu0 0.0
  %2982 = vmatpush2.msra.mxu0 0.0
  %2983 = vmatprep.subr.mxu0 0.0
  %2984 = vmatpush2.msra.mxu0 0.0
  %2985 = vmatprep.subr.mxu0 0.0
  %2986 = vmatpush2.msra.mxu0 0.0
  %2987 = vmatprep.subr.mxu0 0.0
  %2988 = vmatpush2.msra.mxu0 0.0
  %2989 = vmatprep.subr.mxu0 0.0
  %2990 = vmatpush2.msra.mxu0 0.0
  %2991 = vmatprep.subr.mxu0 0.0
  %2992 = vmatpush2.msra.mxu0 0.0
  %2993 = vmatprep.subr.mxu0 0.0
  %2994 = vmatpush2.msra.mxu0 0.0
  %2995 = vmatprep.subr.mxu0 0.0
  %2996 = vmatpush2.msra.mxu0 0.0
  %2997 = vmatprep.subr.mxu0 0.0
  %2998 = vmatpush2.msra.mxu0 0.0
  %2999 = vmatprep.subr.mxu0 0.0
  %3000 = vmatpush2.msra.mxu0 0.0
  %3001 = vmatprep.subr.mxu0 0.0
  %3002 = vmatpush2.msra.mxu0 0.0
  %3003 = vmatprep.subr.mxu0 0.0
  %3004 = vmatpush2.msra.mxu0 0.0
  %3005 = vmatprep.subr.mxu0 0.0
  %3006 = vmatpush2.msra.mxu0 0.0
  %3007 = vmatprep.subr.mxu0 0.0
  %3008 = vmatpush2.msra.mxu0 0.0
  %3009 = vmatprep.subr.mxu0 0.0
  %3010 = vmatpush2.msra.mxu0 0.0
  %3011 = vmatprep.subr.mxu0 0.0
  %3012 = vmatpush2.msra.mxu0 0.0
  %3013 = vmatprep.mubr.f32.mxu0 0.0
  %3014 = vmatmul.mubr.f32.gmra.mxu0 %v2947
  %v3015 = vpop.f32.mrf.mxu0
  %v3016 = vadd.f32 0.0, %v3015
  %v3017 = vpop.f32.mrf.mxu0
  %3018 = vdwg.mxu0
  %3019 = vmatprep.subr.mxu0 0.0
  %3020 = vmatpush1.msra.mxu0 0.0
  %3021 = vmatprep.subr.mxu0 0.0
  %3022 = vmatpush1.msra.mxu0 0.0
  %3023 = vmatprep.subr.mxu0 0.0
  %3024 = vmatpush1.msra.mxu0 0.0
  %3025 = vmatprep.subr.mxu0 0.0
  %3026 = vmatpush1.msra.mxu0 0.0
  %3027 = vmatprep.subr.mxu0 0.0
  %3028 = vmatpush1.msra.mxu0 0.0
  %3029 = vmatprep.subr.mxu0 0.0
  %3030 = vmatpush1.msra.mxu0 0.0
  %3031 = vmatprep.subr.mxu0 0.0
  %3032 = vmatpush1.msra.mxu0 0.0
  %3033 = vmatprep.subr.mxu0 0.0
  %3034 = vmatpush1.msra.mxu0 0.0
  %3035 = vmatprep.subr.mxu0 0.0
  %3036 = vmatpush1.msra.mxu0 0.0
  %3037 = vmatprep.subr.mxu0 0.0
  %3038 = vmatpush1.msra.mxu0 0.0
  %3039 = vmatprep.subr.mxu0 0.0
  %3040 = vmatpush1.msra.mxu0 0.0
  %3041 = vmatprep.subr.mxu0 0.0
  %3042 = vmatpush1.msra.mxu0 0.0
  %3043 = vmatprep.subr.mxu0 0.0
  %3044 = vmatpush1.msra.mxu0 %v531
  %3045 = vmatprep.subr.mxu0 0.0
  %3046 = vmatpush1.msra.mxu0 %v530
  %3047 = vmatprep.subr.mxu0 0.0
  %3048 = vmatpush1.msra.mxu0 %v529
  %3049 = vmatprep.subr.mxu0 0.0
  %3050 = vmatpush1.msra.mxu0 %v528
  %3051 = vmatprep.subr.mxu0 0.0
  %3052 = vmatpush2.msra.mxu0 0.0
  %3053 = vmatprep.subr.mxu0 0.0
  %3054 = vmatpush2.msra.mxu0 0.0
  %3055 = vmatprep.subr.mxu0 0.0
  %3056 = vmatpush2.msra.mxu0 0.0
  %3057 = vmatprep.subr.mxu0 0.0
  %3058 = vmatpush2.msra.mxu0 0.0
  %3059 = vmatprep.subr.mxu0 0.0
  %3060 = vmatpush2.msra.mxu0 0.0
  %3061 = vmatprep.subr.mxu0 0.0
  %3062 = vmatpush2.msra.mxu0 0.0
  %3063 = vmatprep.subr.mxu0 0.0
  %3064 = vmatpush2.msra.mxu0 0.0
  %3065 = vmatprep.subr.mxu0 0.0
  %3066 = vmatpush2.msra.mxu0 0.0
  %3067 = vmatprep.subr.mxu0 0.0
  %3068 = vmatpush2.msra.mxu0 0.0
  %3069 = vmatprep.subr.mxu0 0.0
  %3070 = vmatpush2.msra.mxu0 0.0
  %3071 = vmatprep.subr.mxu0 0.0
  %3072 = vmatpush2.msra.mxu0 0.0
  %3073 = vmatprep.subr.mxu0 0.0
  %3074 = vmatpush2.msra.mxu0 0.0
  %3075 = vmatprep.subr.mxu0 0.0
  %3076 = vmatpush2.msra.mxu0 0.0
  %3077 = vmatprep.subr.mxu0 0.0
  %3078 = vmatpush2.msra.mxu0 0.0
  %3079 = vmatprep.subr.mxu0 0.0
  %3080 = vmatpush2.msra.mxu0 0.0
  %3081 = vmatprep.subr.mxu0 0.0
  %3082 = vmatpush2.msra.mxu0 0.0
  %3083 = vmatprep.mubr.f32.mxu0 0.0
  %3084 = vmatmul.mubr.f32.gmra.mxu0 %v2947
  %v3085 = vpop.f32.mrf.mxu0
  %v3086 = vadd.f32 0.0, %v3085
  %v3087 = vpop.f32.mrf.mxu0
  %3088 = vdwg.mxu0
  %3089 = vmatprep.subr.mxu0 0.0
  %3090 = vmatpush1.msra.mxu0 0.0
  %3091 = vmatprep.subr.mxu0 0.0
  %3092 = vmatpush1.msra.mxu0 0.0
  %3093 = vmatprep.subr.mxu0 0.0
  %3094 = vmatpush1.msra.mxu0 0.0
  %3095 = vmatprep.subr.mxu0 0.0
  %3096 = vmatpush1.msra.mxu0 0.0
  %3097 = vmatprep.subr.mxu0 0.0
  %3098 = vmatpush1.msra.mxu0 0.0
  %3099 = vmatprep.subr.mxu0 0.0
  %3100 = vmatpush1.msra.mxu0 0.0
  %3101 = vmatprep.subr.mxu0 0.0
  %3102 = vmatpush1.msra.mxu0 0.0
  %3103 = vmatprep.subr.mxu0 0.0
  %3104 = vmatpush1.msra.mxu0 0.0
  %3105 = vmatprep.subr.mxu0 0.0
  %3106 = vmatpush1.msra.mxu0 0.0
  %3107 = vmatprep.subr.mxu0 0.0
  %3108 = vmatpush1.msra.mxu0 0.0
  %3109 = vmatprep.subr.mxu0 0.0
  %3110 = vmatpush1.msra.mxu0 0.0
  %3111 = vmatprep.subr.mxu0 0.0
  %3112 = vmatpush1.msra.mxu0 0.0
  %3113 = vmatprep.subr.mxu0 0.0
  %3114 = vmatpush1.msra.mxu0 %v536
  %3115 = vmatprep.subr.mxu0 0.0
  %3116 = vmatpush1.msra.mxu0 %v535
  %3117 = vmatprep.subr.mxu0 0.0
  %3118 = vmatpush1.msra.mxu0 %v534
  %3119 = vmatprep.subr.mxu0 0.0
  %3120 = vmatpush1.msra.mxu0 %v533
  %3121 = vmatprep.subr.mxu0 0.0
  %3122 = vmatpush2.msra.mxu0 0.0
  %3123 = vmatprep.subr.mxu0 0.0
  %3124 = vmatpush2.msra.mxu0 0.0
  %3125 = vmatprep.subr.mxu0 0.0
  %3126 = vmatpush2.msra.mxu0 0.0
  %3127 = vmatprep.subr.mxu0 0.0
  %3128 = vmatpush2.msra.mxu0 0.0
  %3129 = vmatprep.subr.mxu0 0.0
  %3130 = vmatpush2.msra.mxu0 0.0
  %3131 = vmatprep.subr.mxu0 0.0
  %3132 = vmatpush2.msra.mxu0 0.0
  %3133 = vmatprep.subr.mxu0 0.0
  %3134 = vmatpush2.msra.mxu0 0.0
  %3135 = vmatprep.subr.mxu0 0.0
  %3136 = vmatpush2.msra.mxu0 0.0
  %3137 = vmatprep.subr.mxu0 0.0
  %3138 = vmatpush2.msra.mxu0 0.0
  %3139 = vmatprep.subr.mxu0 0.0
  %3140 = vmatpush2.msra.mxu0 0.0
  %3141 = vmatprep.subr.mxu0 0.0
  %3142 = vmatpush2.msra.mxu0 0.0
  %3143 = vmatprep.subr.mxu0 0.0
  %3144 = vmatpush2.msra.mxu0 0.0
  %3145 = vmatprep.subr.mxu0 0.0
  %3146 = vmatpush2.msra.mxu0 0.0
  %3147 = vmatprep.subr.mxu0 0.0
  %3148 = vmatpush2.msra.mxu0 0.0
  %3149 = vmatprep.subr.mxu0 0.0
  %3150 = vmatpush2.msra.mxu0 0.0
  %3151 = vmatprep.subr.mxu0 0.0
  %3152 = vmatpush2.msra.mxu0 0.0
  %3153 = vmatprep.mubr.f32.mxu0 0.0
  %3154 = vmatmul.mubr.f32.gmra.mxu0 %v2947
  %v3155 = vpop.f32.mrf.mxu0
  %v3156 = vadd.f32 %v688, %v3155
  %v3157 = vpop.f32.mrf.mxu0
  %3158 = vdwg.mxu0
  %v3159 = vadd.f32 %v2943, %v3016
  %v3160 = vxor.u32 %v3159, 2147483648
  %v3161 = vmul.f32 %v3160, 1.442695
  %v3162 = vpow.pop %v3161
  %v3163 = vadd.f32 %v3162, 1.0
  %v3164 = vrcp.pop %v3163
  %v3165 = vmul.f32 1.0, %v3164
  %v3166 = vadd.f32 %v2944, %v3086
  %v3167 = vxor.u32 %v3166, 2147483648
  %v3168 = vmul.f32 %v3167, 1.442695
  %v3169 = vpow.pop %v3168
  %v3170 = vadd.f32 %v3169, 1.0
  %v3171 = vrcp.pop %v3170
  %v3172 = vmul.f32 1.0, %v3171
  %v3173 = vmul.f32 %v3165, %v3156
  %v3174 = vadd.f32 %v2945, %v3173
  %v3175 = vtanh.pop %v3174
  %v3176 = vsub.f32 %v2942, %v3175
  %v3177 = vmul.f32 %v3172, %v3176
  %v3178 = vadd.f32 %v3175, %v3177
  %s3179 = scalar_lea.vmem %s1, 80
  %v3180 = vld [vmem:[%s3179] sm:$0xff]
  %vm3181 = vcmp.eq.f32.partialorder %v3180, 1.0
  %v3182 = vsel %vm3181, %v3178, %v2942
  %v3183 = vld [vmem:[#allocation2 + $0x58] sm:$0xff]
  %v3184 = vld [vmem:[%s361 + $0x58] sm:$0xff]
  %v3185 = vld [vmem:[%s510 + $0x58] sm:$0xff]
  %v3187 = vsel %vm212, %v3182, 0
  %3189 = vmatprep.subr.mxu0 0.0
  %3190 = vmatpush1.msra.mxu0 0.0
  %3191 = vmatprep.subr.mxu0 0.0
  %3192 = vmatpush1.msra.mxu0 0.0
  %3193 = vmatprep.subr.mxu0 0.0
  %3194 = vmatpush1.msra.mxu0 0.0
  %3195 = vmatprep.subr.mxu0 0.0
  %3196 = vmatpush1.msra.mxu0 0.0
  %3197 = vmatprep.subr.mxu0 0.0
  %3198 = vmatpush1.msra.mxu0 0.0
  %3199 = vmatprep.subr.mxu0 0.0
  %3200 = vmatpush1.msra.mxu0 0.0
  %3201 = vmatprep.subr.mxu0 0.0
  %3202 = vmatpush1.msra.mxu0 0.0
  %3203 = vmatprep.subr.mxu0 0.0
  %3204 = vmatpush1.msra.mxu0 0.0
  %3205 = vmatprep.subr.mxu0 0.0
  %3206 = vmatpush1.msra.mxu0 0.0
  %3207 = vmatprep.subr.mxu0 0.0
  %3208 = vmatpush1.msra.mxu0 0.0
  %3209 = vmatprep.subr.mxu0 0.0
  %3210 = vmatpush1.msra.mxu0 0.0
  %3211 = vmatprep.subr.mxu0 0.0
  %3212 = vmatpush1.msra.mxu0 0.0
  %3213 = vmatprep.subr.mxu0 0.0
  %3214 = vmatpush1.msra.mxu0 %v526
  %3215 = vmatprep.subr.mxu0 0.0
  %3216 = vmatpush1.msra.mxu0 %v525
  %3217 = vmatprep.subr.mxu0 0.0
  %3218 = vmatpush1.msra.mxu0 %v524
  %3219 = vmatprep.subr.mxu0 0.0
  %3220 = vmatpush1.msra.mxu0 %v523
  %3221 = vmatprep.subr.mxu0 0.0
  %3222 = vmatpush2.msra.mxu0 0.0
  %3223 = vmatprep.subr.mxu0 0.0
  %3224 = vmatpush2.msra.mxu0 0.0
  %3225 = vmatprep.subr.mxu0 0.0
  %3226 = vmatpush2.msra.mxu0 0.0
  %3227 = vmatprep.subr.mxu0 0.0
  %3228 = vmatpush2.msra.mxu0 0.0
  %3229 = vmatprep.subr.mxu0 0.0
  %3230 = vmatpush2.msra.mxu0 0.0
  %3231 = vmatprep.subr.mxu0 0.0
  %3232 = vmatpush2.msra.mxu0 0.0
  %3233 = vmatprep.subr.mxu0 0.0
  %3234 = vmatpush2.msra.mxu0 0.0
  %3235 = vmatprep.subr.mxu0 0.0
  %3236 = vmatpush2.msra.mxu0 0.0
  %3237 = vmatprep.subr.mxu0 0.0
  %3238 = vmatpush2.msra.mxu0 0.0
  %3239 = vmatprep.subr.mxu0 0.0
  %3240 = vmatpush2.msra.mxu0 0.0
  %3241 = vmatprep.subr.mxu0 0.0
  %3242 = vmatpush2.msra.mxu0 0.0
  %3243 = vmatprep.subr.mxu0 0.0
  %3244 = vmatpush2.msra.mxu0 0.0
  %3245 = vmatprep.subr.mxu0 0.0
  %3246 = vmatpush2.msra.mxu0 0.0
  %3247 = vmatprep.subr.mxu0 0.0
  %3248 = vmatpush2.msra.mxu0 0.0
  %3249 = vmatprep.subr.mxu0 0.0
  %3250 = vmatpush2.msra.mxu0 0.0
  %3251 = vmatprep.subr.mxu0 0.0
  %3252 = vmatpush2.msra.mxu0 0.0
  %3253 = vmatprep.mubr.f32.mxu0 0.0
  %3254 = vmatmul.mubr.f32.gmra.mxu0 %v3187
  %v3255 = vpop.f32.mrf.mxu0
  %v3256 = vadd.f32 0.0, %v3255
  %v3257 = vpop.f32.mrf.mxu0
  %3258 = vdwg.mxu0
  %3259 = vmatprep.subr.mxu0 0.0
  %3260 = vmatpush1.msra.mxu0 0.0
  %3261 = vmatprep.subr.mxu0 0.0
  %3262 = vmatpush1.msra.mxu0 0.0
  %3263 = vmatprep.subr.mxu0 0.0
  %3264 = vmatpush1.msra.mxu0 0.0
  %3265 = vmatprep.subr.mxu0 0.0
  %3266 = vmatpush1.msra.mxu0 0.0
  %3267 = vmatprep.subr.mxu0 0.0
  %3268 = vmatpush1.msra.mxu0 0.0
  %3269 = vmatprep.subr.mxu0 0.0
  %3270 = vmatpush1.msra.mxu0 0.0
  %3271 = vmatprep.subr.mxu0 0.0
  %3272 = vmatpush1.msra.mxu0 0.0
  %3273 = vmatprep.subr.mxu0 0.0
  %3274 = vmatpush1.msra.mxu0 0.0
  %3275 = vmatprep.subr.mxu0 0.0
  %3276 = vmatpush1.msra.mxu0 0.0
  %3277 = vmatprep.subr.mxu0 0.0
  %3278 = vmatpush1.msra.mxu0 0.0
  %3279 = vmatprep.subr.mxu0 0.0
  %3280 = vmatpush1.msra.mxu0 0.0
  %3281 = vmatprep.subr.mxu0 0.0
  %3282 = vmatpush1.msra.mxu0 0.0
  %3283 = vmatprep.subr.mxu0 0.0
  %3284 = vmatpush1.msra.mxu0 %v531
  %3285 = vmatprep.subr.mxu0 0.0
  %3286 = vmatpush1.msra.mxu0 %v530
  %3287 = vmatprep.subr.mxu0 0.0
  %3288 = vmatpush1.msra.mxu0 %v529
  %3289 = vmatprep.subr.mxu0 0.0
  %3290 = vmatpush1.msra.mxu0 %v528
  %3291 = vmatprep.subr.mxu0 0.0
  %3292 = vmatpush2.msra.mxu0 0.0
  %3293 = vmatprep.subr.mxu0 0.0
  %3294 = vmatpush2.msra.mxu0 0.0
  %3295 = vmatprep.subr.mxu0 0.0
  %3296 = vmatpush2.msra.mxu0 0.0
  %3297 = vmatprep.subr.mxu0 0.0
  %3298 = vmatpush2.msra.mxu0 0.0
  %3299 = vmatprep.subr.mxu0 0.0
  %3300 = vmatpush2.msra.mxu0 0.0
  %3301 = vmatprep.subr.mxu0 0.0
  %3302 = vmatpush2.msra.mxu0 0.0
  %3303 = vmatprep.subr.mxu0 0.0
  %3304 = vmatpush2.msra.mxu0 0.0
  %3305 = vmatprep.subr.mxu0 0.0
  %3306 = vmatpush2.msra.mxu0 0.0
  %3307 = vmatprep.subr.mxu0 0.0
  %3308 = vmatpush2.msra.mxu0 0.0
  %3309 = vmatprep.subr.mxu0 0.0
  %3310 = vmatpush2.msra.mxu0 0.0
  %3311 = vmatprep.subr.mxu0 0.0
  %3312 = vmatpush2.msra.mxu0 0.0
  %3313 = vmatprep.subr.mxu0 0.0
  %3314 = vmatpush2.msra.mxu0 0.0
  %3315 = vmatprep.subr.mxu0 0.0
  %3316 = vmatpush2.msra.mxu0 0.0
  %3317 = vmatprep.subr.mxu0 0.0
  %3318 = vmatpush2.msra.mxu0 0.0
  %3319 = vmatprep.subr.mxu0 0.0
  %3320 = vmatpush2.msra.mxu0 0.0
  %3321 = vmatprep.subr.mxu0 0.0
  %3322 = vmatpush2.msra.mxu0 0.0
  %3323 = vmatprep.mubr.f32.mxu0 0.0
  %3324 = vmatmul.mubr.f32.gmra.mxu0 %v3187
  %v3325 = vpop.f32.mrf.mxu0
  %v3326 = vadd.f32 0.0, %v3325
  %v3327 = vpop.f32.mrf.mxu0
  %3328 = vdwg.mxu0
  %3329 = vmatprep.subr.mxu0 0.0
  %3330 = vmatpush1.msra.mxu0 0.0
  %3331 = vmatprep.subr.mxu0 0.0
  %3332 = vmatpush1.msra.mxu0 0.0
  %3333 = vmatprep.subr.mxu0 0.0
  %3334 = vmatpush1.msra.mxu0 0.0
  %3335 = vmatprep.subr.mxu0 0.0
  %3336 = vmatpush1.msra.mxu0 0.0
  %3337 = vmatprep.subr.mxu0 0.0
  %3338 = vmatpush1.msra.mxu0 0.0
  %3339 = vmatprep.subr.mxu0 0.0
  %3340 = vmatpush1.msra.mxu0 0.0
  %3341 = vmatprep.subr.mxu0 0.0
  %3342 = vmatpush1.msra.mxu0 0.0
  %3343 = vmatprep.subr.mxu0 0.0
  %3344 = vmatpush1.msra.mxu0 0.0
  %3345 = vmatprep.subr.mxu0 0.0
  %3346 = vmatpush1.msra.mxu0 0.0
  %3347 = vmatprep.subr.mxu0 0.0
  %3348 = vmatpush1.msra.mxu0 0.0
  %3349 = vmatprep.subr.mxu0 0.0
  %3350 = vmatpush1.msra.mxu0 0.0
  %3351 = vmatprep.subr.mxu0 0.0
  %3352 = vmatpush1.msra.mxu0 0.0
  %3353 = vmatprep.subr.mxu0 0.0
  %3354 = vmatpush1.msra.mxu0 %v536
  %3355 = vmatprep.subr.mxu0 0.0
  %3356 = vmatpush1.msra.mxu0 %v535
  %3357 = vmatprep.subr.mxu0 0.0
  %3358 = vmatpush1.msra.mxu0 %v534
  %3359 = vmatprep.subr.mxu0 0.0
  %3360 = vmatpush1.msra.mxu0 %v533
  %3361 = vmatprep.subr.mxu0 0.0
  %3362 = vmatpush2.msra.mxu0 0.0
  %3363 = vmatprep.subr.mxu0 0.0
  %3364 = vmatpush2.msra.mxu0 0.0
  %3365 = vmatprep.subr.mxu0 0.0
  %3366 = vmatpush2.msra.mxu0 0.0
  %3367 = vmatprep.subr.mxu0 0.0
  %3368 = vmatpush2.msra.mxu0 0.0
  %3369 = vmatprep.subr.mxu0 0.0
  %3370 = vmatpush2.msra.mxu0 0.0
  %3371 = vmatprep.subr.mxu0 0.0
  %3372 = vmatpush2.msra.mxu0 0.0
  %3373 = vmatprep.subr.mxu0 0.0
  %3374 = vmatpush2.msra.mxu0 0.0
  %3375 = vmatprep.subr.mxu0 0.0
  %3376 = vmatpush2.msra.mxu0 0.0
  %3377 = vmatprep.subr.mxu0 0.0
  %3378 = vmatpush2.msra.mxu0 0.0
  %3379 = vmatprep.subr.mxu0 0.0
  %3380 = vmatpush2.msra.mxu0 0.0
  %3381 = vmatprep.subr.mxu0 0.0
  %3382 = vmatpush2.msra.mxu0 0.0
  %3383 = vmatprep.subr.mxu0 0.0
  %3384 = vmatpush2.msra.mxu0 0.0
  %3385 = vmatprep.subr.mxu0 0.0
  %3386 = vmatpush2.msra.mxu0 0.0
  %3387 = vmatprep.subr.mxu0 0.0
  %3388 = vmatpush2.msra.mxu0 0.0
  %3389 = vmatprep.subr.mxu0 0.0
  %3390 = vmatpush2.msra.mxu0 0.0
  %3391 = vmatprep.subr.mxu0 0.0
  %3392 = vmatpush2.msra.mxu0 0.0
  %3393 = vmatprep.mubr.f32.mxu0 0.0
  %3394 = vmatmul.mubr.f32.gmra.mxu0 %v3187
  %v3395 = vpop.f32.mrf.mxu0
  %v3396 = vadd.f32 %v688, %v3395
  %v3397 = vpop.f32.mrf.mxu0
  %3398 = vdwg.mxu0
  %v3399 = vadd.f32 %v3183, %v3256
  %v3400 = vxor.u32 %v3399, 2147483648
  %v3401 = vmul.f32 %v3400, 1.442695
  %v3402 = vpow.pop %v3401
  %v3403 = vadd.f32 %v3402, 1.0
  %v3404 = vrcp.pop %v3403
  %v3405 = vmul.f32 1.0, %v3404
  %v3406 = vadd.f32 %v3184, %v3326
  %v3407 = vxor.u32 %v3406, 2147483648
  %v3408 = vmul.f32 %v3407, 1.442695
  %v3409 = vpow.pop %v3408
  %v3410 = vadd.f32 %v3409, 1.0
  %v3411 = vrcp.pop %v3410
  %v3412 = vmul.f32 1.0, %v3411
  %v3413 = vmul.f32 %v3405, %v3396
  %v3414 = vadd.f32 %v3185, %v3413
  %v3415 = vtanh.pop %v3414
  %v3416 = vsub.f32 %v3182, %v3415
  %v3417 = vmul.f32 %v3412, %v3416
  %v3418 = vadd.f32 %v3415, %v3417
  %s3419 = scalar_lea.vmem %s1, 88
  %v3420 = vld [vmem:[%s3419] sm:$0xff]
  %vm3421 = vcmp.eq.f32.partialorder %v3420, 1.0
  %v3422 = vsel %vm3421, %v3418, %v3182
  %v3423 = vld [vmem:[%s6] sm:$0xff]
  %v3424 = vld [vmem:[%s6 + $0x8] sm:$0xff]
  %v3425 = vld [vmem:[%s6 + $0x10] sm:$0xff]
  %v3426 = vld [vmem:[%s6 + $0x18] sm:$0xff]
  %v3427 = vld [vmem:[%s7] sm:$0x1]
  %v3429 = vlaneseq
  %v3430 = vshrl.u32 %v3429, 7
  %v3431 = vsub.s32 0, %v3430
  %v3432 = vrot.slane %v3427, %v3431
  %v3435 = vsel %vm212, %v3422, 0
  %3437 = vmatprep.subr.mxu0 0.0
  %3438 = vmatpush1.msra.mxu0 0.0
  %3439 = vmatprep.subr.mxu0 0.0
  %3440 = vmatpush1.msra.mxu0 0.0
  %3441 = vmatprep.subr.mxu0 0.0
  %3442 = vmatpush1.msra.mxu0 0.0
  %3443 = vmatprep.subr.mxu0 0.0
  %3444 = vmatpush1.msra.mxu0 0.0
  %3445 = vmatprep.subr.mxu0 0.0
  %3446 = vmatpush1.msra.mxu0 0.0
  %3447 = vmatprep.subr.mxu0 0.0
  %3448 = vmatpush1.msra.mxu0 0.0
  %3449 = vmatprep.subr.mxu0 0.0
  %3450 = vmatpush1.msra.mxu0 0.0
  %3451 = vmatprep.subr.mxu0 0.0
  %3452 = vmatpush1.msra.mxu0 0.0
  %3453 = vmatprep.subr.mxu0 0.0
  %3454 = vmatpush1.msra.mxu0 0.0
  %3455 = vmatprep.subr.mxu0 0.0
  %3456 = vmatpush1.msra.mxu0 0.0
  %3457 = vmatprep.subr.mxu0 0.0
  %3458 = vmatpush1.msra.mxu0 0.0
  %3459 = vmatprep.subr.mxu0 0.0
  %3460 = vmatpush1.msra.mxu0 0.0
  %3461 = vmatprep.subr.mxu0 0.0
  %3462 = vmatpush1.msra.mxu0 %v3426
  %3463 = vmatprep.subr.mxu0 0.0
  %3464 = vmatpush1.msra.mxu0 %v3425
  %3465 = vmatprep.subr.mxu0 0.0
  %3466 = vmatpush1.msra.mxu0 %v3424
  %3467 = vmatprep.subr.mxu0 0.0
  %3468 = vmatpush1.msra.mxu0 %v3423
  %3469 = vmatprep.subr.mxu0 0.0
  %3470 = vmatpush2.msra.mxu0 0.0
  %3471 = vmatprep.subr.mxu0 0.0
  %3472 = vmatpush2.msra.mxu0 0.0
  %3473 = vmatprep.subr.mxu0 0.0
  %3474 = vmatpush2.msra.mxu0 0.0
  %3475 = vmatprep.subr.mxu0 0.0
  %3476 = vmatpush2.msra.mxu0 0.0
  %3477 = vmatprep.subr.mxu0 0.0
  %3478 = vmatpush2.msra.mxu0 0.0
  %3479 = vmatprep.subr.mxu0 0.0
  %3480 = vmatpush2.msra.mxu0 0.0
  %3481 = vmatprep.subr.mxu0 0.0
  %3482 = vmatpush2.msra.mxu0 0.0
  %3483 = vmatprep.subr.mxu0 0.0
  %3484 = vmatpush2.msra.mxu0 0.0
  %3485 = vmatprep.subr.mxu0 0.0
  %3486 = vmatpush2.msra.mxu0 0.0
  %3487 = vmatprep.subr.mxu0 0.0
  %3488 = vmatpush2.msra.mxu0 0.0
  %3489 = vmatprep.subr.mxu0 0.0
  %3490 = vmatpush2.msra.mxu0 0.0
  %3491 = vmatprep.subr.mxu0 0.0
  %3492 = vmatpush2.msra.mxu0 0.0
  %3493 = vmatprep.subr.mxu0 0.0
  %3494 = vmatpush2.msra.mxu0 0.0
  %3495 = vmatprep.subr.mxu0 0.0
  %3496 = vmatpush2.msra.mxu0 0.0
  %3497 = vmatprep.subr.mxu0 0.0
  %3498 = vmatpush2.msra.mxu0 0.0
  %3499 = vmatprep.subr.mxu0 0.0
  %3500 = vmatpush2.msra.mxu0 0.0
  %3501 = vmatprep.mubr.f32.mxu0 0.0
  %3502 = vmatmul.mubr.f32.gmra.mxu0 %v3435
  %v3503 = vpop.f32.mrf.mxu0
  %v3504 = vadd.f32 %v3432, %v3503
  %v3505 = vpop.f32.mrf.mxu0
  %3506 = vdwg.mxu0
  %vm3507 = vcmask 64512
  %v3508 = vsel %vm3507, %v3504, -inf
  %3509 = vmax.xlane.f32.xlu0 %v3508
  %v3510 = vpop.xlane.xlu0 %3509
  %v3511 = vsub.f32 %v3504, %v3510
  %v3512 = vmul.f32 %v3511, 1.442695
  %v3513 = vpow.pop %v3512
  %v3514 = vsel %vm3507, %v3513, 0.0
  %3515 = vadd.xlane.f32.xlu0 %v3514
  %v3516 = vpop.xlane.xlu0 %3515
  %v3517 = vlog2.pop %v3516
  %v3518 = vmul.f32 %v3517, 0.6931472
  %v3519 = vsub.f32 %v3511, %v3518
  %3520 = vst.msk [vmem:[%s8] sm:$0xff] %vm3507, %v3519
  // Predicated region
  $region34: #{model16_forward.1} parent=0 // pred_check
    _
  $region35: #{model16_forward.1} parent=0 // pred_check_branch
    %3522 = sbr.rel (0) target = $region37
  $region36: #{model16_forward.1} parent=0 // pred_region
    _
  $region37: #{model16_forward.1} parent=0 // pred_fallthru
    _
  // Predicated region
  $region38: #{model16_forward.1} parent=0 // pred_check
    _
  $region39: #{model16_forward.1} parent=0 // pred_check_branch
    %3524 = sbr.rel (0) target = $region41
  $region40: #{model16_forward.1} parent=0 // pred_region
    _
  $region41: #{model16_forward.1} parent=0 // pred_fallthru
    _

</llo_original>
